<compile_context>
chip_gen: v7x
topology: tpu7x:2x2x1
jax: 0.10.0
libtpu: 0.0.40
codegen_flags: <defaults>
</compile_context>

<pallas_src>
import functools
import math

import jax
import jax.numpy as jnp
from jax import lax
from jax.experimental import pallas as pl
from jax.experimental.pallas import tpu as pltpu


def _gelu_tanh(x):
    # TODO(synk): torch.nn.GELU() defaults to the exact erf formulation; the
    # tanh approximation (max abs err ~3e-4) is used in-kernel since erf has
    # no guaranteed Mosaic lowering.
    c = math.sqrt(2.0 / math.pi)
    return 0.5 * x * (1.0 + jnp.tanh(c * (x + 0.044715 * x * x * x)))


def _metamixer_kernel(x_ref, wqkv_ref, emb_ref,
                      m1_w1_ref, m2_w1_ref, b1cat_ref,
                      w2cat_ref, b2sum_ref,
                      o_ref, *, bb, heads, dim_head):
    # Per grid step (= `bb` batch elements):
    #   x_ref    : (bb, N, C)          bf16 activations, channels-last
    #   wqkv_ref : (C, 3*heads*D)      bf16 fused QKV weight, layout [Q|K|V],
    #                                  head-major / dim_head-minor; Q pre-scaled
    #   emb_ref  : (N, D)              fp32 absolute positional embedding table
    #   m*_w1    : (hidden, N)         bf16 SpatialMLP first-stage weights
    #   b1cat    : (2*hidden, 1)       fp32 [m1_b1 ; m2_b1]
    #   w2cat    : (N, 2*hidden)       bf16 [m1_w2 | m2_w2]
    #   b2sum    : (N, 1)              fp32 m1_b2 + m2_b2
    #   o_ref    : (bb, N, C)          fp32, lane-dense (C = heads*D)
    D = dim_head
    inner = heads * D
    N = x_ref.shape[1]
    C = x_ref.shape[2]
    G = bb * heads

    x = x_ref[...]                                  # (bb, N, C) bf16
    x2 = x.reshape(bb * N, C)                       # rows batch-major

    # ---- fused QKV projection: one wide, lane-dense MXU matmul -------------
    qkv = jnp.dot(x2, wqkv_ref[...],
                  preferred_element_type=jnp.float32)     # (bb*N, 3*inner) f32

    # ---- gather per-(batch, head) tiles into leading-batch stacks ----------
    # Lane slices are D=128-aligned, row slices are N-aligned -> cheap copies.
    def gather(col0):
        return jnp.stack(
            [qkv[b * N:(b + 1) * N, col0 + h * D:col0 + (h + 1) * D]
             for b in range(bb) for h in range(heads)], axis=0)   # (G, N, D)

    qs = gather(0)                 # scale already folded into W_q (wrapper)
    ks = gather(inner)
    vs = gather(2 * inner)

    # ---- attention, batched over (batch, head) ------------------------------
    # q@k^T + q@emb^T == q@(k+emb)^T : one batched NxN matmul instead of two.
    # TODO(synk): for very large N this block needs flash-style q/kv tiling
    # (online softmax) to respect v7x's 64 MiB VMEM.
    kpe = (ks + emb_ref[...]).astype(jnp.bfloat16)             # (G, N, D)
    sim = jnp.einsum('gid,gjd->gij', qs.astype(jnp.bfloat16), kpe,
                     preferred_element_type=jnp.float32)       # (G, N, N)

    # numerically-stable softmax (fp32), run once for all heads/batch
    m = jnp.max(sim, axis=-1, keepdims=True)
    p = jnp.exp(sim - m)
    denom = jnp.sum(p, axis=-1, keepdims=True)
    # un-normalized attn @ v; normalization folded into an EUP reciprocal
    o = jnp.einsum('gij,gjd->gid', p.astype(jnp.bfloat16),
                   vs.astype(jnp.bfloat16),
                   preferred_element_type=jnp.float32)         # (G, N, D)
    o = (o * pl.reciprocal(denom, approx=True)).astype(jnp.bfloat16)

    # lane-concat heads (batch-major, head-minor) -> channels-last slabs
    a_l = jnp.concatenate([o[g] for g in range(G)], axis=-1)        # (N, bb*C)
    x_l = jnp.concatenate([x[b] for b in range(bb)], axis=-1)       # (N, bb*C)

    # ---- dual SpatialMLP, second stages + final add fused -------------------
    h1 = jnp.dot(m1_w1_ref[...], a_l,
                 preferred_element_type=jnp.float32)            # (hidden, bb*C)
    h2 = jnp.dot(m2_w1_ref[...], x_l,
                 preferred_element_type=jnp.float32)            # (hidden, bb*C)
    hcat = jnp.concatenate([h1, h2], axis=0) + b1cat_ref[...]   # (2*hidden, bb*C)
    hcat = _gelu_tanh(hcat).astype(jnp.bfloat16)
    y = jnp.dot(w2cat_ref[...], hcat,
                preferred_element_type=jnp.float32) + b2sum_ref[...]   # (N, bb*C)

    for b in range(bb):
        o_ref[b, :, :] = y[:, b * C:(b + 1) * C].astype(o_ref.dtype)


def _tensorcores_per_chip():
    """2 for v7x (megacore via 'parallel' grid axis), 1 for v5e/v6e, None if unknown."""
    try:
        kind = jax.devices()[0].device_kind.lower()
    except Exception:
        return None
    if "v7" in kind or "7x" in kind:
        return 2
    if "v6" in kind or "v5e" in kind or "v5 lite" in kind or "v5lite" in kind:
        return 1
    return None


def metamixer_pallas(fmap, w_qkv, emb_h, emb_w,
                     m1_w1, m1_b1, m1_w2, m1_b2,
                     m2_w1, m2_b1, m2_w2, m2_b2,
                     *, heads, dim_head):
    """fmap: (B, C, H, W) fp32 NCHW.  w_qkv: (3*heads*dim_head, C) 1x1-conv weight.
       emb_h: (H, dim_head), emb_w: (W, dim_head).  m*_: SpatialMLP Linear params."""
    B, C, H, W = fmap.shape
    N = H * W
    D = dim_head
    inner = heads * D
    scale = D ** (-0.5)
    assert C == inner, "MetaMixerEntrance requires dim == heads*dim_head"

    # ---- generation-aware grid: fold batch on single-TC chips, keep >=2
    # parallel steps on v7x, default to grid=(B,) on unknown hardware.
    cores = _tensorcores_per_chip()
    if cores == 1:
        bb = B
    elif cores == 2 and B > 2 and B % 2 == 0:
        bb = B // 2
    else:
        bb = 1
    steps = B // bb

    # glue: NCHW -> (B, N, C) channels-last, bf16 (only consumed via the MXU)
    x = jnp.transpose(fmap, (0, 2, 3, 1)).reshape(B, N, C).astype(jnp.bfloat16)

    # glue: positional embedding table (h,1,d) + (1,w,d) -> (N, D)
    emb = (emb_h[:, None, :] + emb_w[None, :, :]).reshape(N, D).astype(jnp.float32)

    # glue: fuse the per-head Q/K/V projections into one (C, 3*inner) bf16
    # weight, columns laid out [Q | K | V], each head-major / dim_head-minor
    # (matches chunk(3, dim=1) + 'b (h d) x y -> b h (x y) d').  The attention
    # scale is folded into the Q columns.
    wq = w_qkv[0 * inner:1 * inner].T * scale
    wk = w_qkv[1 * inner:2 * inner].T
    wv = w_qkv[2 * inner:3 * inner].T
    w_all = jnp.concatenate([wq, wk, wv], axis=1).astype(jnp.bfloat16)

    # glue: SpatialMLP params; second stages fused (concat weights, sum biases)
    m1_w1b = m1_w1.astype(jnp.bfloat16)
    m2_w1b = m2_w1.astype(jnp.bfloat16)
    w2cat = jnp.concatenate([m1_w2, m2_w2], axis=1).astype(jnp.bfloat16)   # (N, 2*hidden)
    b1cat = jnp.concatenate([m1_b1, m2_b1]).reshape(-1, 1).astype(jnp.float32)
    b2sum = (m1_b2 + m2_b2).reshape(-1, 1).astype(jnp.float32)

    full2d = lambda arr: pl.BlockSpec(arr.shape, lambda g: (0, 0))

    out = pl.pallas_call(
        functools.partial(_metamixer_kernel,
                          bb=bb, heads=heads, dim_head=D),
        out_shape=jax.ShapeDtypeStruct((B, N, C), jnp.float32),
        grid_spec=pltpu.PrefetchScalarGridSpec(
            num_scalar_prefetch=0,
            grid=(steps,),
            in_specs=[
                pl.BlockSpec((bb, N, C), lambda g: (g, 0, 0)),
                full2d(w_all), full2d(emb),
                full2d(m1_w1b), full2d(m2_w1b), full2d(b1cat),
                full2d(w2cat), full2d(b2sum),
            ],
            out_specs=pl.BlockSpec((bb, N, C), lambda g: (g, 0, 0)),
        ),
        compiler_params=pltpu.CompilerParams(
            dimension_semantics=("parallel",),        # batch steps -> v7x megacore
            vmem_limit_bytes=32 * 1024 * 1024),
    )(x, w_all, emb, m1_w1b, m2_w1b, b1cat, w2cat, b2sum)

    # glue: lane-dense (B, N, C) -> NCHW (B, C, H, W)
    return jnp.transpose(out, (0, 2, 1)).reshape(B, C, H, W)


def metamixer_reference(fmap, w_qkv, emb_h, emb_w,
                        m1_w1, m1_b1, m1_w2, m1_b2,
                        m2_w1, m2_b1, m2_w2, m2_b2,
                        *, heads, dim_head):
    """Pure-JAX fp32 mirror of the PyTorch forward (sanity check)."""
    hp = jax.lax.Precision.HIGHEST
    B, C, H, W = fmap.shape
    N = H * W
    D = dim_head
    inner = heads * D
    scale = D ** (-0.5)

    xf = fmap.reshape(B, C, N)
    qkv = jnp.einsum('oc,bcn->bon', w_qkv, xf, precision=hp)     # 1x1 conv
    q, k, v = jnp.split(qkv, 3, axis=1)
    to_heads = lambda t: t.reshape(B, heads, D, N).transpose(0, 1, 3, 2)
    q, k, v = map(to_heads, (q, k, v))                           # (B, h, N, D)
    q = q * scale
    emb = (emb_h[:, None, :] + emb_w[None, :, :]).reshape(N, D)
    sim = (jnp.einsum('bhid,bhjd->bhij', q, k, precision=hp)
           + jnp.einsum('bhid,jd->bhij', q, emb, precision=hp))
    attn = jax.nn.softmax(sim, axis=-1)
    out = jnp.einsum('bhij,bhjd->bhid', attn, v, precision=hp)
    out = out.transpose(0, 1, 3, 2).reshape(B, inner, N)         # 'b h n d -> b (h d) n'

    def spatial_mlp(t, w1, b1, w2, b2):                          # t: (B, C, N)
        h = jnp.einsum('bcn,mn->bcm', t, w1, precision=hp) + b1
        h = jax.nn.gelu(h, approximate=False)                    # torch.nn.GELU
        return jnp.einsum('bcm,nm->bcn', h, w2, precision=hp) + b2

    y = (spatial_mlp(out, m1_w1, m1_b1, m1_w2, m1_b2)
         + spatial_mlp(xf, m2_w1, m2_b1, m2_w2, m2_b2))
    return y.reshape(B, C, H, W)


if __name__ == "__main__":
    # Shapes implied by MetaMixerEntrance: Attention defaults heads=4,
    # dim_head=128, so the final add requires dim == heads*dim_head = 512.
    B = 2
    H = W = 8                       # fmap_size = (8, 8) -> N = 64
    heads, dim_head = 4, 128
    dim = heads * dim_head          # 512
    N = H * W
    hidden = int(N * 0.5)           # SpatialMLP(hidden_rate=0.5) -> 32
    inner = heads * dim_head

    key = jax.random.PRNGKey(0)
    ks = jax.random.split(key, 12)

    fmap = jax.random.normal(ks[0], (B, dim, H, W), dtype=jnp.float32)

    # nn.Conv2d(dim, 3*inner, 1, bias=False): deterministic kaiming-uniform-like init
    bc = 1.0 / math.sqrt(dim)
    w_qkv = jax.random.uniform(ks[1], (3 * inner, dim), jnp.float32, -bc, bc)

    # AbsPosEmb parameters: randn * dim_head**-0.5
    pe = dim_head ** (-0.5)
    emb_h = jax.random.normal(ks[2], (H, dim_head), jnp.float32) * pe
    emb_w = jax.random.normal(ks[3], (W, dim_head), jnp.float32) * pe

    # Two SpatialMLPs: Linear(N, hidden) -> GELU -> Linear(hidden, N)
    bf1 = 1.0 / math.sqrt(N)
    bf2 = 1.0 / math.sqrt(hidden)
    m1_w1 = jax.random.uniform(ks[4], (hidden, N), jnp.float32, -bf1, bf1)
    m1_b1 = jax.random.uniform(ks[5], (hidden,), jnp.float32, -bf1, bf1)
    m1_w2 = jax.random.uniform(ks[6], (N, hidden), jnp.float32, -bf2, bf2)
    m1_b2 = jax.random.uniform(ks[7], (N,), jnp.float32, -bf2, bf2)
    m2_w1 = jax.random.uniform(ks[8], (hidden, N), jnp.float32, -bf1, bf1)
    m2_b1 = jax.random.uniform(ks[9], (hidden,), jnp.float32, -bf1, bf1)
    m2_w2 = jax.random.uniform(ks[10], (N, hidden), jnp.float32, -bf2, bf2)
    m2_b2 = jax.random.uniform(ks[11], (N,), jnp.float32, -bf2, bf2)

    args = (fmap, w_qkv, emb_h, emb_w,
            m1_w1, m1_b1, m1_w2, m1_b2,
            m2_w1, m2_b1, m2_w2, m2_b2)

    fwd = jax.jit(functools.partial(metamixer_pallas,
                                    heads=heads, dim_head=dim_head))
    out = jax.block_until_ready(fwd(*args))

    ref = metamixer_reference(*args, heads=heads, dim_head=dim_head)
    assert out.shape == (B, dim, H, W)
    # bf16 MXU inputs (fp32 accumulation, fp32 softmax/GELU) + tanh-GELU approx
    # => compare to the fp32 reference with a mixed-precision tolerance.
    assert jnp.allclose(out, ref, atol=2e-2, rtol=2e-2), "mismatch vs reference"

    print("KERNEL_OK")
</pallas_src>

<mosaic_0001>
module attributes {stable_mosaic.version = 11 : i64} {
  func.func @_metamixer_kernel(%arg0: i32, %arg1: memref<1x64x512xbf16, #tpu.memory_space<vmem>>, %arg2: memref<512x1536xbf16, #tpu.memory_space<vmem>>, %arg3: memref<64x128xf32, #tpu.memory_space<vmem>>, %arg4: memref<32x64xbf16, #tpu.memory_space<vmem>>, %arg5: memref<32x64xbf16, #tpu.memory_space<vmem>>, %arg6: memref<64x1xf32, #tpu.memory_space<vmem>>, %arg7: memref<64x64xbf16, #tpu.memory_space<vmem>>, %arg8: memref<64x1xf32, #tpu.memory_space<vmem>>, %arg9: memref<1x64x512xf32, #tpu.memory_space<vmem>>) attributes {dimension_semantics = [#tpu.dimension_semantics<parallel>], iteration_bounds = array<i64: 2>, scalar_prefetch = 0 : i64, scratch_operands = 0 : i64, tpu.core_type = #tpu.core_type<tc>, window_params = [{transform_indices = @transform_0, window_bounds = array<i64: 1, 64, 512>}, {pipeline_mode = #tpu.pipeline_mode<synchronous>, transform_indices = @transform_1, window_bounds = array<i64: 512, 1536>}, {pipeline_mode = #tpu.pipeline_mode<synchronous>, transform_indices = @transform_2, window_bounds = array<i64: 64, 128>}, {pipeline_mode = #tpu.pipeline_mode<synchronous>, transform_indices = @transform_3, window_bounds = array<i64: 32, 64>}, {pipeline_mode = #tpu.pipeline_mode<synchronous>, transform_indices = @transform_4, window_bounds = array<i64: 32, 64>}, {pipeline_mode = #tpu.pipeline_mode<synchronous>, transform_indices = @transform_5, window_bounds = array<i64: 64, 1>}, {pipeline_mode = #tpu.pipeline_mode<synchronous>, transform_indices = @transform_6, window_bounds = array<i64: 64, 64>}, {pipeline_mode = #tpu.pipeline_mode<synchronous>, transform_indices = @transform_7, window_bounds = array<i64: 64, 1>}, {transform_indices = @transform_8, window_bounds = array<i64: 1, 64, 512>}]} {
    %c0 = arith.constant 0 : index
    %c0_0 = arith.constant 0 : index
    %c0_1 = arith.constant 0 : index
    %0 = vector.load %arg1[%c0, %c0_0, %c0_1] : memref<1x64x512xbf16, #tpu.memory_space<vmem>>, vector<1x64x512xbf16>
    %1 = vector.shape_cast %0 : vector<1x64x512xbf16> to vector<64x512xbf16>
    %c0_2 = arith.constant 0 : index
    %c0_3 = arith.constant 0 : index
    %2 = vector.load %arg2[%c0_2, %c0_3] : memref<512x1536xbf16, #tpu.memory_space<vmem>>, vector<512x1536xbf16>
    %cst = arith.constant dense<0.000000e+00> : vector<64x1536xf32>
    %3 = tpu.matmul %1, %2, %cst {dimension_numbers = #tpu.dot_dimension_numbers<[1], [0], [0], [1], [0, 0, 1, 1], [], []>} : vector<64x512xbf16>, vector<512x1536xbf16>, vector<64x1536xf32> -> vector<64x1536xf32>
    %4 = vector.extract_strided_slice %3 {offsets = [0, 0], sizes = [64, 128], strides = [1, 1]} : vector<64x1536xf32> to vector<64x128xf32>
    %5 = vector.extract_strided_slice %3 {offsets = [0, 128], sizes = [64, 128], strides = [1, 1]} : vector<64x1536xf32> to vector<64x128xf32>
    %6 = vector.extract_strided_slice %3 {offsets = [0, 256], sizes = [64, 128], strides = [1, 1]} : vector<64x1536xf32> to vector<64x128xf32>
    %7 = vector.extract_strided_slice %3 {offsets = [0, 384], sizes = [64, 128], strides = [1, 1]} : vector<64x1536xf32> to vector<64x128xf32>
    %8 = vector.shape_cast %4 : vector<64x128xf32> to vector<1x64x128xf32>
    %9 = vector.shape_cast %5 : vector<64x128xf32> to vector<1x64x128xf32>
    %10 = vector.shape_cast %6 : vector<64x128xf32> to vector<1x64x128xf32>
    %11 = vector.shape_cast %7 : vector<64x128xf32> to vector<1x64x128xf32>
    %12 = tpu.concatenate %8, %9, %10, %11 in 0 : vector<1x64x128xf32>, vector<1x64x128xf32>, vector<1x64x128xf32>, vector<1x64x128xf32> -> vector<4x64x128xf32>
    %13 = vector.extract_strided_slice %3 {offsets = [0, 512], sizes = [64, 128], strides = [1, 1]} : vector<64x1536xf32> to vector<64x128xf32>
    %14 = vector.extract_strided_slice %3 {offsets = [0, 640], sizes = [64, 128], strides = [1, 1]} : vector<64x1536xf32> to vector<64x128xf32>
    %15 = vector.extract_strided_slice %3 {offsets = [0, 768], sizes = [64, 128], strides = [1, 1]} : vector<64x1536xf32> to vector<64x128xf32>
    %16 = vector.extract_strided_slice %3 {offsets = [0, 896], sizes = [64, 128], strides = [1, 1]} : vector<64x1536xf32> to vector<64x128xf32>
    %17 = vector.shape_cast %13 : vector<64x128xf32> to vector<1x64x128xf32>
    %18 = vector.shape_cast %14 : vector<64x128xf32> to vector<1x64x128xf32>
    %19 = vector.shape_cast %15 : vector<64x128xf32> to vector<1x64x128xf32>
    %20 = vector.shape_cast %16 : vector<64x128xf32> to vector<1x64x128xf32>
    %21 = tpu.concatenate %17, %18, %19, %20 in 0 : vector<1x64x128xf32>, vector<1x64x128xf32>, vector<1x64x128xf32>, vector<1x64x128xf32> -> vector<4x64x128xf32>
    %22 = vector.extract_strided_slice %3 {offsets = [0, 1024], sizes = [64, 128], strides = [1, 1]} : vector<64x1536xf32> to vector<64x128xf32>
    %23 = vector.extract_strided_slice %3 {offsets = [0, 1152], sizes = [64, 128], strides = [1, 1]} : vector<64x1536xf32> to vector<64x128xf32>
    %24 = vector.extract_strided_slice %3 {offsets = [0, 1280], sizes = [64, 128], strides = [1, 1]} : vector<64x1536xf32> to vector<64x128xf32>
    %25 = vector.extract_strided_slice %3 {offsets = [0, 1408], sizes = [64, 128], strides = [1, 1]} : vector<64x1536xf32> to vector<64x128xf32>
    %26 = vector.shape_cast %22 : vector<64x128xf32> to vector<1x64x128xf32>
    %27 = vector.shape_cast %23 : vector<64x128xf32> to vector<1x64x128xf32>
    %28 = vector.shape_cast %24 : vector<64x128xf32> to vector<1x64x128xf32>
    %29 = vector.shape_cast %25 : vector<64x128xf32> to vector<1x64x128xf32>
    %30 = tpu.concatenate %26, %27, %28, %29 in 0 : vector<1x64x128xf32>, vector<1x64x128xf32>, vector<1x64x128xf32>, vector<1x64x128xf32> -> vector<4x64x128xf32>
    %c0_4 = arith.constant 0 : index
    %c0_5 = arith.constant 0 : index
    %31 = vector.load %arg3[%c0_4, %c0_5] : memref<64x128xf32, #tpu.memory_space<vmem>>, vector<64x128xf32>
    %32 = vector.shape_cast %31 : vector<64x128xf32> to vector<1x64x128xf32>
    %33 = vector.broadcast %32 : vector<1x64x128xf32> to vector<4x64x128xf32>
    %34 = arith.addf %21, %33 : vector<4x64x128xf32>
    %35 = arith.truncf %34 : vector<4x64x128xf32> to vector<4x64x128xbf16>
    %36 = arith.truncf %12 : vector<4x64x128xf32> to vector<4x64x128xbf16>
    "tpu.trace_start"() <{level = 10 : i32, message = "gid,gjd->gij"}> : () -> ()
    %cst_6 = arith.constant dense<0.000000e+00> : vector<4x64x64xf32>
    %37 = tpu.matmul %36, %35, %cst_6 {dimension_numbers = #tpu.dot_dimension_numbers<[2], [2], [1], [1], [0, 0, 0, 1, 1, 1], [0], [0]>} : vector<4x64x128xbf16>, vector<4x64x128xbf16>, vector<4x64x64xf32> -> vector<4x64x64xf32>
    "tpu.trace_stop"() : () -> ()
    %cst_7 = arith.constant dense<0xFF800000> : vector<4x64xf32>
    %38 = vector.multi_reduction <maximumf>, %37, %cst_7 [2] : vector<4x64x64xf32> to vector<4x64xf32>
    %39 = vector.shape_cast %38 : vector<4x64xf32> to vector<4x64x1xf32>
    %40 = vector.broadcast %39 : vector<4x64x1xf32> to vector<4x64x64xf32>
    %41 = arith.subf %37, %40 : vector<4x64x64xf32>
    %42 = math.exp %41 : vector<4x64x64xf32>
    %cst_8 = arith.constant dense<0.000000e+00> : vector<4x64xf32>
    %43 = vector.multi_reduction <add>, %42, %cst_8 [2] : vector<4x64x64xf32> to vector<4x64xf32>
    %44 = vector.shape_cast %43 : vector<4x64xf32> to vector<4x64x1xf32>
    %45 = arith.truncf %42 : vector<4x64x64xf32> to vector<4x64x64xbf16>
    %46 = arith.truncf %30 : vector<4x64x128xf32> to vector<4x64x128xbf16>
    "tpu.trace_start"() <{level = 10 : i32, message = "gij,gjd->gid"}> : () -> ()
    %cst_9 = arith.constant dense<0.000000e+00> : vector<4x64x128xf32>
    %47 = tpu.matmul %45, %46, %cst_9 {dimension_numbers = #tpu.dot_dimension_numbers<[2], [1], [1], [2], [0, 0, 0, 1, 1, 2], [0], [0]>} : vector<4x64x64xbf16>, vector<4x64x128xbf16>, vector<4x64x128xf32> -> vector<4x64x128xf32>
    "tpu.trace_stop"() : () -> ()
    %48 = tpu.reciprocal %44 {approx = true} : vector<4x64x1xf32> -> vector<4x64x1xf32>
    %49 = vector.broadcast %48 : vector<4x64x1xf32> to vector<4x64x128xf32>
    %50 = arith.mulf %47, %49 : vector<4x64x128xf32>
    %51 = arith.truncf %50 : vector<4x64x128xf32> to vector<4x64x128xbf16>
    %52 = vector.extract_strided_slice %51 {offsets = [0, 0, 0], sizes = [1, 64, 128], strides = [1, 1, 1]} : vector<4x64x128xbf16> to vector<1x64x128xbf16>
    %53 = vector.shape_cast %52 : vector<1x64x128xbf16> to vector<64x128xbf16>
    %54 = vector.extract_strided_slice %51 {offsets = [1, 0, 0], sizes = [1, 64, 128], strides = [1, 1, 1]} : vector<4x64x128xbf16> to vector<1x64x128xbf16>
    %55 = vector.shape_cast %54 : vector<1x64x128xbf16> to vector<64x128xbf16>
    %56 = vector.extract_strided_slice %51 {offsets = [2, 0, 0], sizes = [1, 64, 128], strides = [1, 1, 1]} : vector<4x64x128xbf16> to vector<1x64x128xbf16>
    %57 = vector.shape_cast %56 : vector<1x64x128xbf16> to vector<64x128xbf16>
    %58 = vector.extract_strided_slice %51 {offsets = [3, 0, 0], sizes = [1, 64, 128], strides = [1, 1, 1]} : vector<4x64x128xbf16> to vector<1x64x128xbf16>
    %59 = vector.shape_cast %58 : vector<1x64x128xbf16> to vector<64x128xbf16>
    %60 = tpu.concatenate %53, %55, %57, %59 in 1 : vector<64x128xbf16>, vector<64x128xbf16>, vector<64x128xbf16>, vector<64x128xbf16> -> vector<64x512xbf16>
    %61 = vector.shape_cast %0 : vector<1x64x512xbf16> to vector<64x512xbf16>
    %c0_10 = arith.constant 0 : index
    %c0_11 = arith.constant 0 : index
    %62 = vector.load %arg4[%c0_10, %c0_11] : memref<32x64xbf16, #tpu.memory_space<vmem>>, vector<32x64xbf16>
    %cst_12 = arith.constant dense<0.000000e+00> : vector<32x512xf32>
    %63 = tpu.matmul %62, %60, %cst_12 {dimension_numbers = #tpu.dot_dimension_numbers<[1], [0], [0], [1], [0, 0, 1, 1], [], []>} : vector<32x64xbf16>, vector<64x512xbf16>, vector<32x512xf32> -> vector<32x512xf32>
    %c0_13 = arith.constant 0 : index
    %c0_14 = arith.constant 0 : index
    %64 = vector.load %arg5[%c0_13, %c0_14] : memref<32x64xbf16, #tpu.memory_space<vmem>>, vector<32x64xbf16>
    %cst_15 = arith.constant dense<0.000000e+00> : vector<32x512xf32>
    %65 = tpu.matmul %64, %61, %cst_15 {dimension_numbers = #tpu.dot_dimension_numbers<[1], [0], [0], [1], [0, 0, 1, 1], [], []>} : vector<32x64xbf16>, vector<64x512xbf16>, vector<32x512xf32> -> vector<32x512xf32>
    %66 = tpu.concatenate %63, %65 in 0 : vector<32x512xf32>, vector<32x512xf32> -> vector<64x512xf32>
    %c0_16 = arith.constant 0 : index
    %c0_17 = arith.constant 0 : index
    %67 = vector.load %arg6[%c0_16, %c0_17] : memref<64x1xf32, #tpu.memory_space<vmem>>, vector<64x1xf32>
    %68 = vector.broadcast %67 : vector<64x1xf32> to vector<64x512xf32>
    %69 = arith.addf %66, %68 : vector<64x512xf32>
    %cst_18 = arith.constant 5.000000e-01 : f32
    %70 = vector.broadcast %cst_18 : f32 to vector<64x512xf32>
    %71 = arith.mulf %70, %69 : vector<64x512xf32>
    %cst_19 = arith.constant 4.471500e-02 : f32
    %72 = vector.broadcast %cst_19 : f32 to vector<64x512xf32>
    %73 = arith.mulf %72, %69 : vector<64x512xf32>
    %74 = arith.mulf %73, %69 : vector<64x512xf32>
    %75 = arith.mulf %74, %69 : vector<64x512xf32>
    %76 = arith.addf %69, %75 : vector<64x512xf32>
    %cst_20 = arith.constant 0.797884583 : f32
    %77 = vector.broadcast %cst_20 : f32 to vector<64x512xf32>
    %78 = arith.mulf %77, %76 : vector<64x512xf32>
    %79 = math.tanh %78 : vector<64x512xf32>
    %cst_21 = arith.constant 1.000000e+00 : f32
    %80 = vector.broadcast %cst_21 : f32 to vector<64x512xf32>
    %81 = arith.addf %80, %79 : vector<64x512xf32>
    %82 = arith.mulf %71, %81 : vector<64x512xf32>
    %83 = arith.truncf %82 : vector<64x512xf32> to vector<64x512xbf16>
    %c0_22 = arith.constant 0 : index
    %c0_23 = arith.constant 0 : index
    %84 = vector.load %arg7[%c0_22, %c0_23] : memref<64x64xbf16, #tpu.memory_space<vmem>>, vector<64x64xbf16>
    %cst_24 = arith.constant dense<0.000000e+00> : vector<64x512xf32>
    %85 = tpu.matmul %84, %83, %cst_24 {dimension_numbers = #tpu.dot_dimension_numbers<[1], [0], [0], [1], [0, 0, 1, 1], [], []>} : vector<64x64xbf16>, vector<64x512xbf16>, vector<64x512xf32> -> vector<64x512xf32>
    %c0_25 = arith.constant 0 : index
    %c0_26 = arith.constant 0 : index
    %86 = vector.load %arg8[%c0_25, %c0_26] : memref<64x1xf32, #tpu.memory_space<vmem>>, vector<64x1xf32>
    %87 = vector.broadcast %86 : vector<64x1xf32> to vector<64x512xf32>
    %88 = arith.addf %85, %87 : vector<64x512xf32>
    %c0_27 = arith.constant 0 : index
    %c0_28 = arith.constant 0 : index
    %c0_29 = arith.constant 0 : index
    %89 = vector.load %arg9[%c0_27, %c0_28, %c0_29] : memref<1x64x512xf32, #tpu.memory_space<vmem>>, vector<1x64x512xf32>
    %90 = vector.shape_cast %89 : vector<1x64x512xf32> to vector<64x512xf32>
    %91 = vector.shape_cast %88 : vector<64x512xf32> to vector<1x64x512xf32>
    tpu.vector_store %arg9[%c0_27, %c0_28, %c0_29], %91 {strides = array<i32>} : memref<1x64x512xf32, #tpu.memory_space<vmem>>, vector<1x64x512xf32>,
    return
  }
  func.func @transform_0(%arg0: i32) -> (i32, i32, i32) {
    %c0_i32 = arith.constant 0 : i32
    %c0_i32_0 = arith.constant 0 : i32
    %c0_i32_1 = arith.constant 0 : i32
    return %arg0, %c0_i32, %c0_i32_0 : i32, i32, i32
  }
  func.func @transform_1(%arg0: i32) -> (i32, i32) {
    %c0_i32 = arith.constant 0 : i32
    %c0_i32_0 = arith.constant 0 : i32
    %c0_i32_1 = arith.constant 0 : i32
    return %c0_i32, %c0_i32_0 : i32, i32
  }
  func.func @transform_2(%arg0: i32) -> (i32, i32) {
    %c0_i32 = arith.constant 0 : i32
    %c0_i32_0 = arith.constant 0 : i32
    %c0_i32_1 = arith.constant 0 : i32
    return %c0_i32, %c0_i32_0 : i32, i32
  }
  func.func @transform_3(%arg0: i32) -> (i32, i32) {
    %c0_i32 = arith.constant 0 : i32
    %c0_i32_0 = arith.constant 0 : i32
    %c0_i32_1 = arith.constant 0 : i32
    return %c0_i32, %c0_i32_0 : i32, i32
  }
  func.func @transform_4(%arg0: i32) -> (i32, i32) {
    %c0_i32 = arith.constant 0 : i32
    %c0_i32_0 = arith.constant 0 : i32
    %c0_i32_1 = arith.constant 0 : i32
    return %c0_i32, %c0_i32_0 : i32, i32
  }
  func.func @transform_5(%arg0: i32) -> (i32, i32) {
    %c0_i32 = arith.constant 0 : i32
    %c0_i32_0 = arith.constant 0 : i32
    %c0_i32_1 = arith.constant 0 : i32
    return %c0_i32, %c0_i32_0 : i32, i32
  }
  func.func @transform_6(%arg0: i32) -> (i32, i32) {
    %c0_i32 = arith.constant 0 : i32
    %c0_i32_0 = arith.constant 0 : i32
    %c0_i32_1 = arith.constant 0 : i32
    return %c0_i32, %c0_i32_0 : i32, i32
  }
  func.func @transform_7(%arg0: i32) -> (i32, i32) {
    %c0_i32 = arith.constant 0 : i32
    %c0_i32_0 = arith.constant 0 : i32
    %c0_i32_1 = arith.constant 0 : i32
    return %c0_i32, %c0_i32_0 : i32, i32
  }
  func.func @transform_8(%arg0: i32) -> (i32, i32, i32) {
    %c0_i32 = arith.constant 0 : i32
    %c0_i32_0 = arith.constant 0 : i32
    %c0_i32_1 = arith.constant 0 : i32
    return %arg0, %c0_i32, %c0_i32_0 : i32, i32, i32
  }
}

</mosaic_0001>

<llo_original>
// kernel: metamixer_pallas.1
$region0: #{metamixer_pallas.1}
  #allocation0 [shape = 'u32[]', space=smem, size = 0x4, offset = 0x4, fixed_abs, tag = 'smem constant byte address 0x4 - core index']
  #allocation1 [shape = 'u32[144,128]{1,0:T(1,128)}', space=vmem, size = 0x12000, scoped, tag = 'internal scratch']
  %s0 = inlined_call_operand.vmem [shape: bf16[2,64,512], index: 0, kind: input, shape index: {}]
  %s1 = inlined_call_operand.vmem [shape: bf16[512,1536], index: 1, kind: input, shape index: {}]
  %s2 = inlined_call_operand.vmem [shape: f32[64,128], index: 2, kind: input, shape index: {}]
  %s3 = inlined_call_operand.vmem [shape: bf16[32,64], index: 3, kind: input, shape index: {}]
  %s4 = inlined_call_operand.vmem [shape: bf16[32,64], index: 4, kind: input, shape index: {}]
  %s5 = inlined_call_operand.vmem [shape: f32[64,1], index: 5, kind: input, shape index: {}]
  %s6 = inlined_call_operand.vmem [shape: bf16[64,64], index: 6, kind: input, shape index: {}]
  %s7 = inlined_call_operand.vmem [shape: f32[64,1], index: 7, kind: input, shape index: {}]
  %s8 = inlined_call_operand.hbm [shape: f32[2,64,512], index: 8, kind: output, shape index: {}]
  %s9 = sld [smem:[#allocation0]]
  $region65: #{metamixer_pallas.1} parent=0
    _
  %s11 = ssub.s32 1, %s9
  %s12 = scalar_select 0, %s11, %s9
  $region1: #{metamixer_pallas.1} parent=0
    #allocation2 [shape = 'u8[262144]{0}', space=vmem, size = 0x40000, scoped, tag = 'output window, operand 0']
    #allocation3 [shape = 's32[2]{0}', space=sflag, size = 0x8, scoped, tag = 'scoped memory for metamixer_pallas.1']
    %13 = vsyncpa [#allocation3], 0
    %s14 = scalar_lea.sflag [#allocation3], 1
    %15 = vsyncpa %s14, 0
    loop: start=0, step=1, limit=4
    $region2: #{metamixer_pallas.1} parent=1 // loop_pre_header
      _
    $region3: #{metamixer_pallas.1} parent=1 // loop_header
      %s17 = sphi 0, %s21
      %p18 = scmp.ge.s32.totalorder %s17, 4
      %s27 = sphi 0, %s29
      %s30 = sphi 0, %s27
      %s31 = sphi 0, %s30
      %s47 = sphi 0, %s31
      %s51 = sphi 0, %s51
      %s53 = sphi 0, %s51
      %s54 = sphi 0, %s53
      %s68 = sphi 0, %s54
      %s72 = sphi 0, %s72
      %s74 = sphi 0, %s72
      %s75 = sphi 0, %s74
      %s89 = sphi 0, %s75
      %s93 = sphi 0, %s93
      %s95 = sphi 0, %s93
      %s96 = sphi 0, %s95
      %s110 = sphi 0, %s96
      %s114 = sphi 0, %s114
      %s116 = sphi 0, %s114
      %s117 = sphi 0, %s116
      %s131 = sphi 0, %s117
      %s135 = sphi 0, %s135
      %s137 = sphi 0, %s135
      %s138 = sphi 0, %s137
      %s152 = sphi 0, %s138
      %s156 = sphi 0, %s156
      %s158 = sphi 0, %s156
      %s159 = sphi 0, %s158
      %s173 = sphi 0, %s159
      %s177 = sphi 0, %s177
      %s179 = sphi 0, %s177
      %s180 = sphi 0, %s179
      %s194 = sphi 0, %s180
      %s200 = sphi 0, %s202
      %s203 = sphi 0, %s200
      %s204 = sphi 0, %s203
      %s220 = sphi 0, %s204
    $region4: #{metamixer_pallas.1} parent=1 // loop_header_branch
      %20 = sbr.rel (%p18) target = $region8
    $region5: #{metamixer_pallas.1} parent=1 // loop_body
      %s22 = ssub.s32 %s17, 1
      %s23 = ssub.s32 %s17, 2
      %s24 = sadd.s32 %s17, 1
      %s25 = ssub.s32 %s17, %s24
      %p26 = scmp.eq.s32.totalorder %s25, 0
      %s28 = sadd.s32 %s27, 1
      %s29 = scalar_select %p26, %s27, %s28
      %p32 = pneg %p26
      %p33 = scmp.eq.s32.totalorder %s17, 1
      %p34 = por %p32, %p33
      %p35 = scmp.ne.s32.totalorder %s27, %s30
      %p36 = scmp.eq.s32.totalorder %s17, 0
      %p37 = por %p35, %p36
      %p38 = scmp.ne.s32.totalorder %s27, %s30
      %p39 = scmp.eq.s32.totalorder %s22, 1
      %p40 = por %p38, %p39
      %p41 = scmp.ne.s32.totalorder %s30, %s31
      %p42 = scmp.eq.s32.totalorder %s22, 0
      %p43 = por %p41, %p42
      %p44 = scmp.ne.s32.totalorder %s30, %s31
      %p45 = scmp.eq.s32.totalorder %s23, 1
      %p46 = por %p44, %p45
      %p48 = scmp.ne.s32.totalorder %s31, %s47
      %p49 = scmp.eq.s32.totalorder %s23, 0
      %p50 = por %p48, %p49
      %s52 = sadd.s32 %s51, 1
      %p55 = scmp.eq.s32.totalorder %s17, 1
      %p56 = scmp.ne.s32.totalorder %s51, %s53
      %p57 = scmp.eq.s32.totalorder %s17, 0
      %p58 = por %p56, %p57
      %p59 = scmp.ne.s32.totalorder %s51, %s53
      %p60 = scmp.eq.s32.totalorder %s22, 1
      %p61 = por %p59, %p60
      %p62 = scmp.ne.s32.totalorder %s53, %s54
      %p63 = scmp.eq.s32.totalorder %s22, 0
      %p64 = por %p62, %p63
      %p65 = scmp.ne.s32.totalorder %s53, %s54
      %p66 = scmp.eq.s32.totalorder %s23, 1
      %p67 = por %p65, %p66
      %p69 = scmp.ne.s32.totalorder %s54, %s68
      %p70 = scmp.eq.s32.totalorder %s23, 0
      %p71 = por %p69, %p70
      %s73 = sadd.s32 %s72, 1
      %p76 = scmp.eq.s32.totalorder %s17, 1
      %p77 = scmp.ne.s32.totalorder %s72, %s74
      %p78 = scmp.eq.s32.totalorder %s17, 0
      %p79 = por %p77, %p78
      %p80 = scmp.ne.s32.totalorder %s72, %s74
      %p81 = scmp.eq.s32.totalorder %s22, 1
      %p82 = por %p80, %p81
      %p83 = scmp.ne.s32.totalorder %s74, %s75
      %p84 = scmp.eq.s32.totalorder %s22, 0
      %p85 = por %p83, %p84
      %p86 = scmp.ne.s32.totalorder %s74, %s75
      %p87 = scmp.eq.s32.totalorder %s23, 1
      %p88 = por %p86, %p87
      %p90 = scmp.ne.s32.totalorder %s75, %s89
      %p91 = scmp.eq.s32.totalorder %s23, 0
      %p92 = por %p90, %p91
      %s94 = sadd.s32 %s93, 1
      %p97 = scmp.eq.s32.totalorder %s17, 1
      %p98 = scmp.ne.s32.totalorder %s93, %s95
      %p99 = scmp.eq.s32.totalorder %s17, 0
      %p100 = por %p98, %p99
      %p101 = scmp.ne.s32.totalorder %s93, %s95
      %p102 = scmp.eq.s32.totalorder %s22, 1
      %p103 = por %p101, %p102
      %p104 = scmp.ne.s32.totalorder %s95, %s96
      %p105 = scmp.eq.s32.totalorder %s22, 0
      %p106 = por %p104, %p105
      %p107 = scmp.ne.s32.totalorder %s95, %s96
      %p108 = scmp.eq.s32.totalorder %s23, 1
      %p109 = por %p107, %p108
      %p111 = scmp.ne.s32.totalorder %s96, %s110
      %p112 = scmp.eq.s32.totalorder %s23, 0
      %p113 = por %p111, %p112
      %s115 = sadd.s32 %s114, 1
      %p118 = scmp.eq.s32.totalorder %s17, 1
      %p119 = scmp.ne.s32.totalorder %s114, %s116
      %p120 = scmp.eq.s32.totalorder %s17, 0
      %p121 = por %p119, %p120
      %p122 = scmp.ne.s32.totalorder %s114, %s116
      %p123 = scmp.eq.s32.totalorder %s22, 1
      %p124 = por %p122, %p123
      %p125 = scmp.ne.s32.totalorder %s116, %s117
      %p126 = scmp.eq.s32.totalorder %s22, 0
      %p127 = por %p125, %p126
      %p128 = scmp.ne.s32.totalorder %s116, %s117
      %p129 = scmp.eq.s32.totalorder %s23, 1
      %p130 = por %p128, %p129
      %p132 = scmp.ne.s32.totalorder %s117, %s131
      %p133 = scmp.eq.s32.totalorder %s23, 0
      %p134 = por %p132, %p133
      %s136 = sadd.s32 %s135, 1
      %p139 = scmp.eq.s32.totalorder %s17, 1
      %p140 = scmp.ne.s32.totalorder %s135, %s137
      %p141 = scmp.eq.s32.totalorder %s17, 0
      %p142 = por %p140, %p141
      %p143 = scmp.ne.s32.totalorder %s135, %s137
      %p144 = scmp.eq.s32.totalorder %s22, 1
      %p145 = por %p143, %p144
      %p146 = scmp.ne.s32.totalorder %s137, %s138
      %p147 = scmp.eq.s32.totalorder %s22, 0
      %p148 = por %p146, %p147
      %p149 = scmp.ne.s32.totalorder %s137, %s138
      %p150 = scmp.eq.s32.totalorder %s23, 1
      %p151 = por %p149, %p150
      %p153 = scmp.ne.s32.totalorder %s138, %s152
      %p154 = scmp.eq.s32.totalorder %s23, 0
      %p155 = por %p153, %p154
      %s157 = sadd.s32 %s156, 1
      %p160 = scmp.eq.s32.totalorder %s17, 1
      %p161 = scmp.ne.s32.totalorder %s156, %s158
      %p162 = scmp.eq.s32.totalorder %s17, 0
      %p163 = por %p161, %p162
      %p164 = scmp.ne.s32.totalorder %s156, %s158
      %p165 = scmp.eq.s32.totalorder %s22, 1
      %p166 = por %p164, %p165
      %p167 = scmp.ne.s32.totalorder %s158, %s159
      %p168 = scmp.eq.s32.totalorder %s22, 0
      %p169 = por %p167, %p168
      %p170 = scmp.ne.s32.totalorder %s158, %s159
      %p171 = scmp.eq.s32.totalorder %s23, 1
      %p172 = por %p170, %p171
      %p174 = scmp.ne.s32.totalorder %s159, %s173
      %p175 = scmp.eq.s32.totalorder %s23, 0
      %p176 = por %p174, %p175
      %s178 = sadd.s32 %s177, 1
      %p181 = scmp.eq.s32.totalorder %s17, 1
      %p182 = scmp.ne.s32.totalorder %s177, %s179
      %p183 = scmp.eq.s32.totalorder %s17, 0
      %p184 = por %p182, %p183
      %p185 = scmp.ne.s32.totalorder %s177, %s179
      %p186 = scmp.eq.s32.totalorder %s22, 1
      %p187 = por %p185, %p186
      %p188 = scmp.ne.s32.totalorder %s179, %s180
      %p189 = scmp.eq.s32.totalorder %s22, 0
      %p190 = por %p188, %p189
      %p191 = scmp.ne.s32.totalorder %s179, %s180
      %p192 = scmp.eq.s32.totalorder %s23, 1
      %p193 = por %p191, %p192
      %p195 = scmp.ne.s32.totalorder %s180, %s194
      %p196 = scmp.eq.s32.totalorder %s23, 0
      %p197 = por %p195, %p196
      %s198 = ssub.s32 %s17, %s24
      %p199 = scmp.eq.s32.totalorder %s198, 0
      %s201 = sadd.s32 %s200, 1
      %s202 = scalar_select %p199, %s200, %s201
      %p205 = pneg %p199
      %p206 = scmp.eq.s32.totalorder %s17, 1
      %p207 = por %p205, %p206
      %p208 = scmp.ne.s32.totalorder %s200, %s203
      %p209 = scmp.eq.s32.totalorder %s17, 0
      %p210 = por %p208, %p209
      %p211 = scmp.ne.s32.totalorder %s200, %s203
      %p212 = scmp.eq.s32.totalorder %s22, 1
      %p213 = por %p211, %p212
      %p214 = scmp.ne.s32.totalorder %s203, %s204
      %p215 = scmp.eq.s32.totalorder %s22, 0
      %p216 = por %p214, %p215
      %p217 = scmp.ne.s32.totalorder %s203, %s204
      %p218 = scmp.eq.s32.totalorder %s23, 1
      %p219 = por %p217, %p218
      %p221 = scmp.ne.s32.totalorder %s204, %s220
      %p222 = scmp.eq.s32.totalorder %s23, 0
      %p223 = por %p221, %p222
      %p224 = scmp.le.s32.totalorder 1, %s17
      %p225 = scmp.lt.s32.totalorder %s17, 3
      %p226 = pnand %p224, %p225
      %p227 = pneg %p226
      // Predicated region
      $region9: #{metamixer_pallas.1} parent=5 // pred_check
        _
      $region10: #{metamixer_pallas.1} parent=5 // pred_check_branch
        %229 = sbr.rel (%p226) target = $region12
      $region11: #{metamixer_pallas.1} parent=5 // pred_region
        %s230 = ssub.s32 %s17, 1
        // Predicated region
        $region13: #{metamixer_pallas.1} parent=11 // pred_check
          %p231 = pneg %p64
        $region14: #{metamixer_pallas.1} parent=11 // pred_check_branch
          %233 = sbr.rel (%p231) target = $region16
        $region15: #{metamixer_pallas.1} parent=11 // pred_region
          _
        $region16: #{metamixer_pallas.1} parent=11 // pred_fallthru
          _
        // Predicated region
        $region17: #{metamixer_pallas.1} parent=11 // pred_check
          %p234 = pneg %p85
        $region18: #{metamixer_pallas.1} parent=11 // pred_check_branch
          %236 = sbr.rel (%p234) target = $region20
        $region19: #{metamixer_pallas.1} parent=11 // pred_region
          _
        $region20: #{metamixer_pallas.1} parent=11 // pred_fallthru
          _
        // Predicated region
        $region21: #{metamixer_pallas.1} parent=11 // pred_check
          %p237 = pneg %p106
        $region22: #{metamixer_pallas.1} parent=11 // pred_check_branch
          %239 = sbr.rel (%p237) target = $region24
        $region23: #{metamixer_pallas.1} parent=11 // pred_region
          _
        $region24: #{metamixer_pallas.1} parent=11 // pred_fallthru
          _
        // Predicated region
        $region25: #{metamixer_pallas.1} parent=11 // pred_check
          %p240 = pneg %p127
        $region26: #{metamixer_pallas.1} parent=11 // pred_check_branch
          %242 = sbr.rel (%p240) target = $region28
        $region27: #{metamixer_pallas.1} parent=11 // pred_region
          _
        $region28: #{metamixer_pallas.1} parent=11 // pred_fallthru
          _
        // Predicated region
        $region29: #{metamixer_pallas.1} parent=11 // pred_check
          %p243 = pneg %p148
        $region30: #{metamixer_pallas.1} parent=11 // pred_check_branch
          %245 = sbr.rel (%p243) target = $region32
        $region31: #{metamixer_pallas.1} parent=11 // pred_region
          _
        $region32: #{metamixer_pallas.1} parent=11 // pred_fallthru
          _
        // Predicated region
        $region33: #{metamixer_pallas.1} parent=11 // pred_check
          %p246 = pneg %p169
        $region34: #{metamixer_pallas.1} parent=11 // pred_check_branch
          %248 = sbr.rel (%p246) target = $region36
        $region35: #{metamixer_pallas.1} parent=11 // pred_region
          _
        $region36: #{metamixer_pallas.1} parent=11 // pred_fallthru
          _
        // Predicated region
        $region37: #{metamixer_pallas.1} parent=11 // pred_check
          %p249 = pneg %p190
        $region38: #{metamixer_pallas.1} parent=11 // pred_check_branch
          %251 = sbr.rel (%p249) target = $region40
        $region39: #{metamixer_pallas.1} parent=11 // pred_region
          _
        $region40: #{metamixer_pallas.1} parent=11 // pred_fallthru
          _
      $region12: #{metamixer_pallas.1} parent=5 // pred_fallthru
        _
      %p252 = scmp.lt.s32.totalorder %s17, 2
      // Predicated region
      $region41: #{metamixer_pallas.1} parent=5 // pred_check
        %p253 = pneg %p252
      $region42: #{metamixer_pallas.1} parent=5 // pred_check_branch
        %255 = sbr.rel (%p253) target = $region44
      $region43: #{metamixer_pallas.1} parent=5 // pred_region
        // Predicated region
        $region45: #{metamixer_pallas.1} parent=43 // pred_check
          %p256 = pneg %p37
        $region46: #{metamixer_pallas.1} parent=43 // pred_check_branch
          %258 = sbr.rel (%p256) target = $region48
        $region47: #{metamixer_pallas.1} parent=43 // pred_region
          %p259 = scmp.lt.s32.totalorder %s17, 1
          %s260 = scalar_select %p259, %s17, 1
          %s261 = smul.addr %s260, 32
          %s262 = smul.addr %s261, 4
          %s263 = scalar_lea.vmem %s0, %s262
        $region48: #{metamixer_pallas.1} parent=43 // pred_fallthru
          _
      $region44: #{metamixer_pallas.1} parent=5 // pred_fallthru
        _
      %p264 = scmp.le.s32.totalorder 1, %s17
      %p265 = scmp.lt.s32.totalorder %s17, 3
      %p266 = pnand %p264, %p265
      %p267 = pneg %p266
      // Predicated region
      $region49: #{metamixer_pallas.1} parent=5 // pred_check
        _
      $region50: #{metamixer_pallas.1} parent=5 // pred_check_branch
        %269 = sbr.rel (%p266) target = $region52
      $region51: #{metamixer_pallas.1} parent=5 // pred_region
        %s270 = ssub.s32 %s17, 1
        %p271 = scmp.lt.s32.totalorder %s22, 1
        %s272 = scalar_select %p271, %s22, 1
        %s273 = smul.addr %s272, 32
        %s274 = smul.addr %s273, 4
        %s275 = scalar_lea.vmem %s0, %s274
        %p276 = pneg %p43
        %p277 = pneg %p40
        %p278 = pneg %p64
        %p279 = pneg %p61
        %p280 = pneg %p85
        %p281 = pneg %p82
        %p282 = pneg %p106
        %p283 = pneg %p103
        %p284 = pneg %p127
        %p285 = pneg %p124
        %p286 = pneg %p148
        %p287 = pneg %p145
        %p288 = pneg %p169
        %p289 = pneg %p166
        %p290 = pneg %p190
        %p291 = pneg %p187
        %p292 = pneg %p216
        %p293 = pneg %p213
        %s294 = sand.u32 %s203, 1
        %s295 = scalar_lea.sflag [#allocation3], %s294
        %s296 = sand.u32 %s203, 1
        %s297 = smul.addr %s296, 256
        %s298 = scalar_lea.vmem [#allocation2], %s297
        %p299 = scmp.lt.s32.totalorder %s22, 1
        %s300 = scalar_select %p299, %s22, 1
        %s301 = smul.addr %s300, 32
        %s302 = smul.addr %s301, 4
        %s303 = scalar_lea.vmem %s0, %s302
        %v305 = vld [vmem:[%s303] sm:$0xff]
        %v306 = vld [vmem:[%s303 + $0x8] sm:$0xff]
        %v307 = vld [vmem:[%s303 + $0x10] sm:$0xff]
        %v308 = vld [vmem:[%s303 + $0x18] sm:$0xff]
        %v309 = vld [vmem:[%s303 + $0x20] sm:$0xff]
        %v310 = vld [vmem:[%s303 + $0x28] sm:$0xff]
        %v311 = vld [vmem:[%s303 + $0x30] sm:$0xff]
        %v312 = vld [vmem:[%s303 + $0x38] sm:$0xff]
        %v313 = vld [vmem:[%s303 + $0x40] sm:$0xff]
        %v314 = vld [vmem:[%s303 + $0x48] sm:$0xff]
        %v315 = vld [vmem:[%s303 + $0x50] sm:$0xff]
        %v316 = vld [vmem:[%s303 + $0x58] sm:$0xff]
        %v317 = vld [vmem:[%s303 + $0x60] sm:$0xff]
        %v318 = vld [vmem:[%s303 + $0x68] sm:$0xff]
        %v319 = vld [vmem:[%s303 + $0x70] sm:$0xff]
        %v320 = vld [vmem:[%s303 + $0x78] sm:$0xff]
        %v321 = vld [vmem:[%s1] sm:$0xff]
        %v322 = vld [vmem:[%s1 + $0x8] sm:$0xff]
        %v323 = vld [vmem:[%s1 + $0x10] sm:$0xff]
        %v324 = vld [vmem:[%s1 + $0x18] sm:$0xff]
        %v325 = vld [vmem:[%s1 + $0x20] sm:$0xff]
        %v326 = vld [vmem:[%s1 + $0x28] sm:$0xff]
        %v327 = vld [vmem:[%s1 + $0x30] sm:$0xff]
        %v328 = vld [vmem:[%s1 + $0x38] sm:$0xff]
        %v329 = vld [vmem:[%s1 + $0x40] sm:$0xff]
        %v330 = vld [vmem:[%s1 + $0x48] sm:$0xff]
        %v331 = vld [vmem:[%s1 + $0x50] sm:$0xff]
        %v332 = vld [vmem:[%s1 + $0x58] sm:$0xff]
        %v333 = vld [vmem:[%s1 + $0x60] sm:$0xff]
        %v334 = vld [vmem:[%s1 + $0x68] sm:$0xff]
        %v335 = vld [vmem:[%s1 + $0x70] sm:$0xff]
        %v336 = vld [vmem:[%s1 + $0x78] sm:$0xff]
        %v337 = vld [vmem:[%s1 + $0x80] sm:$0xff]
        %v338 = vld [vmem:[%s1 + $0x88] sm:$0xff]
        %v339 = vld [vmem:[%s1 + $0x90] sm:$0xff]
        %v340 = vld [vmem:[%s1 + $0x98] sm:$0xff]
        %v341 = vld [vmem:[%s1 + $0xa0] sm:$0xff]
        %v342 = vld [vmem:[%s1 + $0xa8] sm:$0xff]
        %v343 = vld [vmem:[%s1 + $0xb0] sm:$0xff]
        %v344 = vld [vmem:[%s1 + $0xb8] sm:$0xff]
        %v345 = vld [vmem:[%s1 + $0xc0] sm:$0xff]
        %v346 = vld [vmem:[%s1 + $0xc8] sm:$0xff]
        %v347 = vld [vmem:[%s1 + $0xd0] sm:$0xff]
        %v348 = vld [vmem:[%s1 + $0xd8] sm:$0xff]
        %v349 = vld [vmem:[%s1 + $0xe0] sm:$0xff]
        %v350 = vld [vmem:[%s1 + $0xe8] sm:$0xff]
        %v351 = vld [vmem:[%s1 + $0xf0] sm:$0xff]
        %v352 = vld [vmem:[%s1 + $0xf8] sm:$0xff]
        %v353 = vld [vmem:[%s1 + $0x100] sm:$0xff]
        %v354 = vld [vmem:[%s1 + $0x108] sm:$0xff]
        %v355 = vld [vmem:[%s1 + $0x110] sm:$0xff]
        %v356 = vld [vmem:[%s1 + $0x118] sm:$0xff]
        %v357 = vld [vmem:[%s1 + $0x120] sm:$0xff]
        %v358 = vld [vmem:[%s1 + $0x128] sm:$0xff]
        %v359 = vld [vmem:[%s1 + $0x130] sm:$0xff]
        %v360 = vld [vmem:[%s1 + $0x138] sm:$0xff]
        %v361 = vld [vmem:[%s1 + $0x140] sm:$0xff]
        %v362 = vld [vmem:[%s1 + $0x148] sm:$0xff]
        %v363 = vld [vmem:[%s1 + $0x150] sm:$0xff]
        %v364 = vld [vmem:[%s1 + $0x158] sm:$0xff]
        %v365 = vld [vmem:[%s1 + $0x160] sm:$0xff]
        %v366 = vld [vmem:[%s1 + $0x168] sm:$0xff]
        %v367 = vld [vmem:[%s1 + $0x170] sm:$0xff]
        %v368 = vld [vmem:[%s1 + $0x178] sm:$0xff]
        %v369 = vld [vmem:[%s1 + $0x180] sm:$0xff]
        %v370 = vld [vmem:[%s1 + $0x188] sm:$0xff]
        %v371 = vld [vmem:[%s1 + $0x190] sm:$0xff]
        %v372 = vld [vmem:[%s1 + $0x198] sm:$0xff]
        %v373 = vld [vmem:[%s1 + $0x1a0] sm:$0xff]
        %v374 = vld [vmem:[%s1 + $0x1a8] sm:$0xff]
        %v375 = vld [vmem:[%s1 + $0x1b0] sm:$0xff]
        %v376 = vld [vmem:[%s1 + $0x1b8] sm:$0xff]
        %v377 = vld [vmem:[%s1 + $0x1c0] sm:$0xff]
        %v378 = vld [vmem:[%s1 + $0x1c8] sm:$0xff]
        %v379 = vld [vmem:[%s1 + $0x1d0] sm:$0xff]
        %v380 = vld [vmem:[%s1 + $0x1d8] sm:$0xff]
        %v381 = vld [vmem:[%s1 + $0x1e0] sm:$0xff]
        %v382 = vld [vmem:[%s1 + $0x1e8] sm:$0xff]
        %v383 = vld [vmem:[%s1 + $0x1f0] sm:$0xff]
        %v384 = vld [vmem:[%s1 + $0x1f8] sm:$0xff]
        %v385 = vld [vmem:[%s1 + $0x200] sm:$0xff]
        %v386 = vld [vmem:[%s1 + $0x208] sm:$0xff]
        %v387 = vld [vmem:[%s1 + $0x210] sm:$0xff]
        %v388 = vld [vmem:[%s1 + $0x218] sm:$0xff]
        %v389 = vld [vmem:[%s1 + $0x220] sm:$0xff]
        %v390 = vld [vmem:[%s1 + $0x228] sm:$0xff]
        %v391 = vld [vmem:[%s1 + $0x230] sm:$0xff]
        %v392 = vld [vmem:[%s1 + $0x238] sm:$0xff]
        %v393 = vld [vmem:[%s1 + $0x240] sm:$0xff]
        %v394 = vld [vmem:[%s1 + $0x248] sm:$0xff]
        %v395 = vld [vmem:[%s1 + $0x250] sm:$0xff]
        %v396 = vld [vmem:[%s1 + $0x258] sm:$0xff]
        %v397 = vld [vmem:[%s1 + $0x260] sm:$0xff]
        %v398 = vld [vmem:[%s1 + $0x268] sm:$0xff]
        %v399 = vld [vmem:[%s1 + $0x270] sm:$0xff]
        %v400 = vld [vmem:[%s1 + $0x278] sm:$0xff]
        %v401 = vld [vmem:[%s1 + $0x280] sm:$0xff]
        %v402 = vld [vmem:[%s1 + $0x288] sm:$0xff]
        %v403 = vld [vmem:[%s1 + $0x290] sm:$0xff]
        %v404 = vld [vmem:[%s1 + $0x298] sm:$0xff]
        %v405 = vld [vmem:[%s1 + $0x2a0] sm:$0xff]
        %v406 = vld [vmem:[%s1 + $0x2a8] sm:$0xff]
        %v407 = vld [vmem:[%s1 + $0x2b0] sm:$0xff]
        %v408 = vld [vmem:[%s1 + $0x2b8] sm:$0xff]
        %v409 = vld [vmem:[%s1 + $0x2c0] sm:$0xff]
        %v410 = vld [vmem:[%s1 + $0x2c8] sm:$0xff]
        %v411 = vld [vmem:[%s1 + $0x2d0] sm:$0xff]
        %v412 = vld [vmem:[%s1 + $0x2d8] sm:$0xff]
        %v413 = vld [vmem:[%s1 + $0x2e0] sm:$0xff]
        %v414 = vld [vmem:[%s1 + $0x2e8] sm:$0xff]
        %v415 = vld [vmem:[%s1 + $0x2f0] sm:$0xff]
        %v416 = vld [vmem:[%s1 + $0x2f8] sm:$0xff]
        %v417 = vld [vmem:[%s1 + $0x300] sm:$0xff]
        %v418 = vld [vmem:[%s1 + $0x308] sm:$0xff]
        %v419 = vld [vmem:[%s1 + $0x310] sm:$0xff]
        %v420 = vld [vmem:[%s1 + $0x318] sm:$0xff]
        %v421 = vld [vmem:[%s1 + $0x320] sm:$0xff]
        %v422 = vld [vmem:[%s1 + $0x328] sm:$0xff]
        %v423 = vld [vmem:[%s1 + $0x330] sm:$0xff]
        %v424 = vld [vmem:[%s1 + $0x338] sm:$0xff]
        %v425 = vld [vmem:[%s1 + $0x340] sm:$0xff]
        %v426 = vld [vmem:[%s1 + $0x348] sm:$0xff]
        %v427 = vld [vmem:[%s1 + $0x350] sm:$0xff]
        %v428 = vld [vmem:[%s1 + $0x358] sm:$0xff]
        %v429 = vld [vmem:[%s1 + $0x360] sm:$0xff]
        %v430 = vld [vmem:[%s1 + $0x368] sm:$0xff]
        %v431 = vld [vmem:[%s1 + $0x370] sm:$0xff]
        %v432 = vld [vmem:[%s1 + $0x378] sm:$0xff]
        %v433 = vld [vmem:[%s1 + $0x380] sm:$0xff]
        %v434 = vld [vmem:[%s1 + $0x388] sm:$0xff]
        %v435 = vld [vmem:[%s1 + $0x390] sm:$0xff]
        %v436 = vld [vmem:[%s1 + $0x398] sm:$0xff]
        %v437 = vld [vmem:[%s1 + $0x3a0] sm:$0xff]
        %v438 = vld [vmem:[%s1 + $0x3a8] sm:$0xff]
        %v439 = vld [vmem:[%s1 + $0x3b0] sm:$0xff]
        %v440 = vld [vmem:[%s1 + $0x3b8] sm:$0xff]
        %v441 = vld [vmem:[%s1 + $0x3c0] sm:$0xff]
        %v442 = vld [vmem:[%s1 + $0x3c8] sm:$0xff]
        %v443 = vld [vmem:[%s1 + $0x3d0] sm:$0xff]
        %v444 = vld [vmem:[%s1 + $0x3d8] sm:$0xff]
        %v445 = vld [vmem:[%s1 + $0x3e0] sm:$0xff]
        %v446 = vld [vmem:[%s1 + $0x3e8] sm:$0xff]
        %v447 = vld [vmem:[%s1 + $0x3f0] sm:$0xff]
        %v448 = vld [vmem:[%s1 + $0x3f8] sm:$0xff]
        %v449 = vld [vmem:[%s1 + $0x400] sm:$0xff]
        %v450 = vld [vmem:[%s1 + $0x408] sm:$0xff]
        %v451 = vld [vmem:[%s1 + $0x410] sm:$0xff]
        %v452 = vld [vmem:[%s1 + $0x418] sm:$0xff]
        %v453 = vld [vmem:[%s1 + $0x420] sm:$0xff]
        %v454 = vld [vmem:[%s1 + $0x428] sm:$0xff]
        %v455 = vld [vmem:[%s1 + $0x430] sm:$0xff]
        %v456 = vld [vmem:[%s1 + $0x438] sm:$0xff]
        %v457 = vld [vmem:[%s1 + $0x440] sm:$0xff]
        %v458 = vld [vmem:[%s1 + $0x448] sm:$0xff]
        %v459 = vld [vmem:[%s1 + $0x450] sm:$0xff]
        %v460 = vld [vmem:[%s1 + $0x458] sm:$0xff]
        %v461 = vld [vmem:[%s1 + $0x460] sm:$0xff]
        %v462 = vld [vmem:[%s1 + $0x468] sm:$0xff]
        %v463 = vld [vmem:[%s1 + $0x470] sm:$0xff]
        %v464 = vld [vmem:[%s1 + $0x478] sm:$0xff]
        %v465 = vld [vmem:[%s1 + $0x480] sm:$0xff]
        %v466 = vld [vmem:[%s1 + $0x488] sm:$0xff]
        %v467 = vld [vmem:[%s1 + $0x490] sm:$0xff]
        %v468 = vld [vmem:[%s1 + $0x498] sm:$0xff]
        %v469 = vld [vmem:[%s1 + $0x4a0] sm:$0xff]
        %v470 = vld [vmem:[%s1 + $0x4a8] sm:$0xff]
        %v471 = vld [vmem:[%s1 + $0x4b0] sm:$0xff]
        %v472 = vld [vmem:[%s1 + $0x4b8] sm:$0xff]
        %v473 = vld [vmem:[%s1 + $0x4c0] sm:$0xff]
        %v474 = vld [vmem:[%s1 + $0x4c8] sm:$0xff]
        %v475 = vld [vmem:[%s1 + $0x4d0] sm:$0xff]
        %v476 = vld [vmem:[%s1 + $0x4d8] sm:$0xff]
        %v477 = vld [vmem:[%s1 + $0x4e0] sm:$0xff]
        %v478 = vld [vmem:[%s1 + $0x4e8] sm:$0xff]
        %v479 = vld [vmem:[%s1 + $0x4f0] sm:$0xff]
        %v480 = vld [vmem:[%s1 + $0x4f8] sm:$0xff]
        %v481 = vld [vmem:[%s1 + $0x500] sm:$0xff]
        %v482 = vld [vmem:[%s1 + $0x508] sm:$0xff]
        %v483 = vld [vmem:[%s1 + $0x510] sm:$0xff]
        %v484 = vld [vmem:[%s1 + $0x518] sm:$0xff]
        %v485 = vld [vmem:[%s1 + $0x520] sm:$0xff]
        %v486 = vld [vmem:[%s1 + $0x528] sm:$0xff]
        %v487 = vld [vmem:[%s1 + $0x530] sm:$0xff]
        %v488 = vld [vmem:[%s1 + $0x538] sm:$0xff]
        %v489 = vld [vmem:[%s1 + $0x540] sm:$0xff]
        %v490 = vld [vmem:[%s1 + $0x548] sm:$0xff]
        %v491 = vld [vmem:[%s1 + $0x550] sm:$0xff]
        %v492 = vld [vmem:[%s1 + $0x558] sm:$0xff]
        %v493 = vld [vmem:[%s1 + $0x560] sm:$0xff]
        %v494 = vld [vmem:[%s1 + $0x568] sm:$0xff]
        %v495 = vld [vmem:[%s1 + $0x570] sm:$0xff]
        %v496 = vld [vmem:[%s1 + $0x578] sm:$0xff]
        %v497 = vld [vmem:[%s1 + $0x580] sm:$0xff]
        %v498 = vld [vmem:[%s1 + $0x588] sm:$0xff]
        %v499 = vld [vmem:[%s1 + $0x590] sm:$0xff]
        %v500 = vld [vmem:[%s1 + $0x598] sm:$0xff]
        %v501 = vld [vmem:[%s1 + $0x5a0] sm:$0xff]
        %v502 = vld [vmem:[%s1 + $0x5a8] sm:$0xff]
        %v503 = vld [vmem:[%s1 + $0x5b0] sm:$0xff]
        %v504 = vld [vmem:[%s1 + $0x5b8] sm:$0xff]
        %v505 = vld [vmem:[%s1 + $0x5c0] sm:$0xff]
        %v506 = vld [vmem:[%s1 + $0x5c8] sm:$0xff]
        %v507 = vld [vmem:[%s1 + $0x5d0] sm:$0xff]
        %v508 = vld [vmem:[%s1 + $0x5d8] sm:$0xff]
        %v509 = vld [vmem:[%s1 + $0x5e0] sm:$0xff]
        %v510 = vld [vmem:[%s1 + $0x5e8] sm:$0xff]
        %v511 = vld [vmem:[%s1 + $0x5f0] sm:$0xff]
        %v512 = vld [vmem:[%s1 + $0x5f8] sm:$0xff]
        %v513 = vld [vmem:[%s1 + $0x600] sm:$0xff]
        %v514 = vld [vmem:[%s1 + $0x608] sm:$0xff]
        %v515 = vld [vmem:[%s1 + $0x610] sm:$0xff]
        %v516 = vld [vmem:[%s1 + $0x618] sm:$0xff]
        %v517 = vld [vmem:[%s1 + $0x620] sm:$0xff]
        %v518 = vld [vmem:[%s1 + $0x628] sm:$0xff]
        %v519 = vld [vmem:[%s1 + $0x630] sm:$0xff]
        %v520 = vld [vmem:[%s1 + $0x638] sm:$0xff]
        %v521 = vld [vmem:[%s1 + $0x640] sm:$0xff]
        %v522 = vld [vmem:[%s1 + $0x648] sm:$0xff]
        %v523 = vld [vmem:[%s1 + $0x650] sm:$0xff]
        %v524 = vld [vmem:[%s1 + $0x658] sm:$0xff]
        %v525 = vld [vmem:[%s1 + $0x660] sm:$0xff]
        %v526 = vld [vmem:[%s1 + $0x668] sm:$0xff]
        %v527 = vld [vmem:[%s1 + $0x670] sm:$0xff]
        %v528 = vld [vmem:[%s1 + $0x678] sm:$0xff]
        %v529 = vld [vmem:[%s1 + $0x680] sm:$0xff]
        %v530 = vld [vmem:[%s1 + $0x688] sm:$0xff]
        %v531 = vld [vmem:[%s1 + $0x690] sm:$0xff]
        %v532 = vld [vmem:[%s1 + $0x698] sm:$0xff]
        %v533 = vld [vmem:[%s1 + $0x6a0] sm:$0xff]
        %v534 = vld [vmem:[%s1 + $0x6a8] sm:$0xff]
        %v535 = vld [vmem:[%s1 + $0x6b0] sm:$0xff]
        %v536 = vld [vmem:[%s1 + $0x6b8] sm:$0xff]
        %v537 = vld [vmem:[%s1 + $0x6c0] sm:$0xff]
        %v538 = vld [vmem:[%s1 + $0x6c8] sm:$0xff]
        %v539 = vld [vmem:[%s1 + $0x6d0] sm:$0xff]
        %v540 = vld [vmem:[%s1 + $0x6d8] sm:$0xff]
        %v541 = vld [vmem:[%s1 + $0x6e0] sm:$0xff]
        %v542 = vld [vmem:[%s1 + $0x6e8] sm:$0xff]
        %v543 = vld [vmem:[%s1 + $0x6f0] sm:$0xff]
        %v544 = vld [vmem:[%s1 + $0x6f8] sm:$0xff]
        %v545 = vld [vmem:[%s1 + $0x700] sm:$0xff]
        %v546 = vld [vmem:[%s1 + $0x708] sm:$0xff]
        %v547 = vld [vmem:[%s1 + $0x710] sm:$0xff]
        %v548 = vld [vmem:[%s1 + $0x718] sm:$0xff]
        %v549 = vld [vmem:[%s1 + $0x720] sm:$0xff]
        %v550 = vld [vmem:[%s1 + $0x728] sm:$0xff]
        %v551 = vld [vmem:[%s1 + $0x730] sm:$0xff]
        %v552 = vld [vmem:[%s1 + $0x738] sm:$0xff]
        %v553 = vld [vmem:[%s1 + $0x740] sm:$0xff]
        %v554 = vld [vmem:[%s1 + $0x748] sm:$0xff]
        %v555 = vld [vmem:[%s1 + $0x750] sm:$0xff]
        %v556 = vld [vmem:[%s1 + $0x758] sm:$0xff]
        %v557 = vld [vmem:[%s1 + $0x760] sm:$0xff]
        %v558 = vld [vmem:[%s1 + $0x768] sm:$0xff]
        %v559 = vld [vmem:[%s1 + $0x770] sm:$0xff]
        %v560 = vld [vmem:[%s1 + $0x778] sm:$0xff]
        %v561 = vld [vmem:[%s1 + $0x780] sm:$0xff]
        %v562 = vld [vmem:[%s1 + $0x788] sm:$0xff]
        %v563 = vld [vmem:[%s1 + $0x790] sm:$0xff]
        %v564 = vld [vmem:[%s1 + $0x798] sm:$0xff]
        %v565 = vld [vmem:[%s1 + $0x7a0] sm:$0xff]
        %v566 = vld [vmem:[%s1 + $0x7a8] sm:$0xff]
        %v567 = vld [vmem:[%s1 + $0x7b0] sm:$0xff]
        %v568 = vld [vmem:[%s1 + $0x7b8] sm:$0xff]
        %v569 = vld [vmem:[%s1 + $0x7c0] sm:$0xff]
        %v570 = vld [vmem:[%s1 + $0x7c8] sm:$0xff]
        %v571 = vld [vmem:[%s1 + $0x7d0] sm:$0xff]
        %v572 = vld [vmem:[%s1 + $0x7d8] sm:$0xff]
        %v573 = vld [vmem:[%s1 + $0x7e0] sm:$0xff]
        %v574 = vld [vmem:[%s1 + $0x7e8] sm:$0xff]
        %v575 = vld [vmem:[%s1 + $0x7f0] sm:$0xff]
        %v576 = vld [vmem:[%s1 + $0x7f8] sm:$0xff]
        %v577 = vld [vmem:[%s1 + $0x800] sm:$0xff]
        %v578 = vld [vmem:[%s1 + $0x808] sm:$0xff]
        %v579 = vld [vmem:[%s1 + $0x810] sm:$0xff]
        %v580 = vld [vmem:[%s1 + $0x818] sm:$0xff]
        %v581 = vld [vmem:[%s1 + $0x820] sm:$0xff]
        %v582 = vld [vmem:[%s1 + $0x828] sm:$0xff]
        %v583 = vld [vmem:[%s1 + $0x830] sm:$0xff]
        %v584 = vld [vmem:[%s1 + $0x838] sm:$0xff]
        %v585 = vld [vmem:[%s1 + $0x840] sm:$0xff]
        %v586 = vld [vmem:[%s1 + $0x848] sm:$0xff]
        %v587 = vld [vmem:[%s1 + $0x850] sm:$0xff]
        %v588 = vld [vmem:[%s1 + $0x858] sm:$0xff]
        %v589 = vld [vmem:[%s1 + $0x860] sm:$0xff]
        %v590 = vld [vmem:[%s1 + $0x868] sm:$0xff]
        %v591 = vld [vmem:[%s1 + $0x870] sm:$0xff]
        %v592 = vld [vmem:[%s1 + $0x878] sm:$0xff]
        %v593 = vld [vmem:[%s1 + $0x880] sm:$0xff]
        %v594 = vld [vmem:[%s1 + $0x888] sm:$0xff]
        %v595 = vld [vmem:[%s1 + $0x890] sm:$0xff]
        %v596 = vld [vmem:[%s1 + $0x898] sm:$0xff]
        %v597 = vld [vmem:[%s1 + $0x8a0] sm:$0xff]
        %v598 = vld [vmem:[%s1 + $0x8a8] sm:$0xff]
        %v599 = vld [vmem:[%s1 + $0x8b0] sm:$0xff]
        %v600 = vld [vmem:[%s1 + $0x8b8] sm:$0xff]
        %v601 = vld [vmem:[%s1 + $0x8c0] sm:$0xff]
        %v602 = vld [vmem:[%s1 + $0x8c8] sm:$0xff]
        %v603 = vld [vmem:[%s1 + $0x8d0] sm:$0xff]
        %v604 = vld [vmem:[%s1 + $0x8d8] sm:$0xff]
        %v605 = vld [vmem:[%s1 + $0x8e0] sm:$0xff]
        %v606 = vld [vmem:[%s1 + $0x8e8] sm:$0xff]
        %v607 = vld [vmem:[%s1 + $0x8f0] sm:$0xff]
        %v608 = vld [vmem:[%s1 + $0x8f8] sm:$0xff]
        %v609 = vld [vmem:[%s1 + $0x900] sm:$0xff]
        %v610 = vld [vmem:[%s1 + $0x908] sm:$0xff]
        %v611 = vld [vmem:[%s1 + $0x910] sm:$0xff]
        %v612 = vld [vmem:[%s1 + $0x918] sm:$0xff]
        %v613 = vld [vmem:[%s1 + $0x920] sm:$0xff]
        %v614 = vld [vmem:[%s1 + $0x928] sm:$0xff]
        %v615 = vld [vmem:[%s1 + $0x930] sm:$0xff]
        %v616 = vld [vmem:[%s1 + $0x938] sm:$0xff]
        %v617 = vld [vmem:[%s1 + $0x940] sm:$0xff]
        %v618 = vld [vmem:[%s1 + $0x948] sm:$0xff]
        %v619 = vld [vmem:[%s1 + $0x950] sm:$0xff]
        %v620 = vld [vmem:[%s1 + $0x958] sm:$0xff]
        %v621 = vld [vmem:[%s1 + $0x960] sm:$0xff]
        %v622 = vld [vmem:[%s1 + $0x968] sm:$0xff]
        %v623 = vld [vmem:[%s1 + $0x970] sm:$0xff]
        %v624 = vld [vmem:[%s1 + $0x978] sm:$0xff]
        %v625 = vld [vmem:[%s1 + $0x980] sm:$0xff]
        %v626 = vld [vmem:[%s1 + $0x988] sm:$0xff]
        %v627 = vld [vmem:[%s1 + $0x990] sm:$0xff]
        %v628 = vld [vmem:[%s1 + $0x998] sm:$0xff]
        %v629 = vld [vmem:[%s1 + $0x9a0] sm:$0xff]
        %v630 = vld [vmem:[%s1 + $0x9a8] sm:$0xff]
        %v631 = vld [vmem:[%s1 + $0x9b0] sm:$0xff]
        %v632 = vld [vmem:[%s1 + $0x9b8] sm:$0xff]
        %v633 = vld [vmem:[%s1 + $0x9c0] sm:$0xff]
        %v634 = vld [vmem:[%s1 + $0x9c8] sm:$0xff]
        %v635 = vld [vmem:[%s1 + $0x9d0] sm:$0xff]
        %v636 = vld [vmem:[%s1 + $0x9d8] sm:$0xff]
        %v637 = vld [vmem:[%s1 + $0x9e0] sm:$0xff]
        %v638 = vld [vmem:[%s1 + $0x9e8] sm:$0xff]
        %v639 = vld [vmem:[%s1 + $0x9f0] sm:$0xff]
        %v640 = vld [vmem:[%s1 + $0x9f8] sm:$0xff]
        %v641 = vld [vmem:[%s1 + $0xa00] sm:$0xff]
        %v642 = vld [vmem:[%s1 + $0xa08] sm:$0xff]
        %v643 = vld [vmem:[%s1 + $0xa10] sm:$0xff]
        %v644 = vld [vmem:[%s1 + $0xa18] sm:$0xff]
        %v645 = vld [vmem:[%s1 + $0xa20] sm:$0xff]
        %v646 = vld [vmem:[%s1 + $0xa28] sm:$0xff]
        %v647 = vld [vmem:[%s1 + $0xa30] sm:$0xff]
        %v648 = vld [vmem:[%s1 + $0xa38] sm:$0xff]
        %v649 = vld [vmem:[%s1 + $0xa40] sm:$0xff]
        %v650 = vld [vmem:[%s1 + $0xa48] sm:$0xff]
        %v651 = vld [vmem:[%s1 + $0xa50] sm:$0xff]
        %v652 = vld [vmem:[%s1 + $0xa58] sm:$0xff]
        %v653 = vld [vmem:[%s1 + $0xa60] sm:$0xff]
        %v654 = vld [vmem:[%s1 + $0xa68] sm:$0xff]
        %v655 = vld [vmem:[%s1 + $0xa70] sm:$0xff]
        %v656 = vld [vmem:[%s1 + $0xa78] sm:$0xff]
        %v657 = vld [vmem:[%s1 + $0xa80] sm:$0xff]
        %v658 = vld [vmem:[%s1 + $0xa88] sm:$0xff]
        %v659 = vld [vmem:[%s1 + $0xa90] sm:$0xff]
        %v660 = vld [vmem:[%s1 + $0xa98] sm:$0xff]
        %v661 = vld [vmem:[%s1 + $0xaa0] sm:$0xff]
        %v662 = vld [vmem:[%s1 + $0xaa8] sm:$0xff]
        %v663 = vld [vmem:[%s1 + $0xab0] sm:$0xff]
        %v664 = vld [vmem:[%s1 + $0xab8] sm:$0xff]
        %v665 = vld [vmem:[%s1 + $0xac0] sm:$0xff]
        %v666 = vld [vmem:[%s1 + $0xac8] sm:$0xff]
        %v667 = vld [vmem:[%s1 + $0xad0] sm:$0xff]
        %v668 = vld [vmem:[%s1 + $0xad8] sm:$0xff]
        %v669 = vld [vmem:[%s1 + $0xae0] sm:$0xff]
        %v670 = vld [vmem:[%s1 + $0xae8] sm:$0xff]
        %v671 = vld [vmem:[%s1 + $0xaf0] sm:$0xff]
        %v672 = vld [vmem:[%s1 + $0xaf8] sm:$0xff]
        %v673 = vld [vmem:[%s1 + $0xb00] sm:$0xff]
        %v674 = vld [vmem:[%s1 + $0xb08] sm:$0xff]
        %v675 = vld [vmem:[%s1 + $0xb10] sm:$0xff]
        %v676 = vld [vmem:[%s1 + $0xb18] sm:$0xff]
        %v677 = vld [vmem:[%s1 + $0xb20] sm:$0xff]
        %v678 = vld [vmem:[%s1 + $0xb28] sm:$0xff]
        %v679 = vld [vmem:[%s1 + $0xb30] sm:$0xff]
        %v680 = vld [vmem:[%s1 + $0xb38] sm:$0xff]
        %v681 = vld [vmem:[%s1 + $0xb40] sm:$0xff]
        %v682 = vld [vmem:[%s1 + $0xb48] sm:$0xff]
        %v683 = vld [vmem:[%s1 + $0xb50] sm:$0xff]
        %v684 = vld [vmem:[%s1 + $0xb58] sm:$0xff]
        %v685 = vld [vmem:[%s1 + $0xb60] sm:$0xff]
        %v686 = vld [vmem:[%s1 + $0xb68] sm:$0xff]
        %v687 = vld [vmem:[%s1 + $0xb70] sm:$0xff]
        %v688 = vld [vmem:[%s1 + $0xb78] sm:$0xff]
        %v689 = vld [vmem:[%s1 + $0xb80] sm:$0xff]
        %v690 = vld [vmem:[%s1 + $0xb88] sm:$0xff]
        %v691 = vld [vmem:[%s1 + $0xb90] sm:$0xff]
        %v692 = vld [vmem:[%s1 + $0xb98] sm:$0xff]
        %v693 = vld [vmem:[%s1 + $0xba0] sm:$0xff]
        %v694 = vld [vmem:[%s1 + $0xba8] sm:$0xff]
        %v695 = vld [vmem:[%s1 + $0xbb0] sm:$0xff]
        %v696 = vld [vmem:[%s1 + $0xbb8] sm:$0xff]
        %v697 = vld [vmem:[%s1 + $0xbc0] sm:$0xff]
        %v698 = vld [vmem:[%s1 + $0xbc8] sm:$0xff]
        %v699 = vld [vmem:[%s1 + $0xbd0] sm:$0xff]
        %v700 = vld [vmem:[%s1 + $0xbd8] sm:$0xff]
        %v701 = vld [vmem:[%s1 + $0xbe0] sm:$0xff]
        %v702 = vld [vmem:[%s1 + $0xbe8] sm:$0xff]
        %v703 = vld [vmem:[%s1 + $0xbf0] sm:$0xff]
        %v704 = vld [vmem:[%s1 + $0xbf8] sm:$0xff]
        %v721 = vunpack.c.l.b16 %v305
        %v722 = vunpack.c.h.b16 %v305
        %v723 = vunpack.c.l.b16 %v306
        %v724 = vunpack.c.h.b16 %v306
        %v725 = vunpack.c.l.b16 %v307
        %v726 = vunpack.c.h.b16 %v307
        %v727 = vunpack.c.l.b16 %v308
        %v728 = vunpack.c.h.b16 %v308
        %v729 = vunpack.c.l.b16 %v309
        %v730 = vunpack.c.h.b16 %v309
        %v731 = vunpack.c.l.b16 %v310
        %v732 = vunpack.c.h.b16 %v310
        %v733 = vunpack.c.l.b16 %v311
        %v734 = vunpack.c.h.b16 %v311
        %v735 = vunpack.c.l.b16 %v312
        %v736 = vunpack.c.h.b16 %v312
        %v737 = vunpack.c.l.b16 %v313
        %v738 = vunpack.c.h.b16 %v313
        %v739 = vunpack.c.l.b16 %v314
        %v740 = vunpack.c.h.b16 %v314
        %v741 = vunpack.c.l.b16 %v315
        %v742 = vunpack.c.h.b16 %v315
        %v743 = vunpack.c.l.b16 %v316
        %v744 = vunpack.c.h.b16 %v316
        %v745 = vunpack.c.l.b16 %v317
        %v746 = vunpack.c.h.b16 %v317
        %v747 = vunpack.c.l.b16 %v318
        %v748 = vunpack.c.h.b16 %v318
        %v749 = vunpack.c.l.b16 %v319
        %v750 = vunpack.c.h.b16 %v319
        %v751 = vunpack.c.l.b16 %v320
        %v752 = vunpack.c.h.b16 %v320
        %v753 = vpack.c.b16 %v725, %v721
        %v754 = vpack.c.b16 %v726, %v722
        %v755 = vpack.c.b16 %v727, %v723
        %v756 = vpack.c.b16 %v728, %v724
        %v757 = vpack.c.b16 %v733, %v729
        %v758 = vpack.c.b16 %v734, %v730
        %v759 = vpack.c.b16 %v735, %v731
        %v760 = vpack.c.b16 %v736, %v732
        %v761 = vpack.c.b16 %v741, %v737
        %v762 = vpack.c.b16 %v742, %v738
        %v763 = vpack.c.b16 %v743, %v739
        %v764 = vpack.c.b16 %v744, %v740
        %v765 = vpack.c.b16 %v749, %v745
        %v766 = vpack.c.b16 %v750, %v746
        %v767 = vpack.c.b16 %v751, %v747
        %v768 = vpack.c.b16 %v752, %v748
        %v1169 = vunpack.c.l.b16 %v321
        %v1170 = vunpack.c.h.b16 %v321
        %v1171 = vunpack.c.l.b16 %v322
        %v1172 = vunpack.c.h.b16 %v322
        %v1173 = vunpack.c.l.b16 %v323
        %v1174 = vunpack.c.h.b16 %v323
        %v1175 = vunpack.c.l.b16 %v324
        %v1176 = vunpack.c.h.b16 %v324
        %v1177 = vunpack.c.l.b16 %v325
        %v1178 = vunpack.c.h.b16 %v325
        %v1179 = vunpack.c.l.b16 %v326
        %v1180 = vunpack.c.h.b16 %v326
        %v1181 = vunpack.c.l.b16 %v327
        %v1182 = vunpack.c.h.b16 %v327
        %v1183 = vunpack.c.l.b16 %v328
        %v1184 = vunpack.c.h.b16 %v328
        %v1185 = vunpack.c.l.b16 %v329
        %v1186 = vunpack.c.h.b16 %v329
        %v1187 = vunpack.c.l.b16 %v330
        %v1188 = vunpack.c.h.b16 %v330
        %v1189 = vunpack.c.l.b16 %v331
        %v1190 = vunpack.c.h.b16 %v331
        %v1191 = vunpack.c.l.b16 %v332
        %v1192 = vunpack.c.h.b16 %v332
        %v1193 = vunpack.c.l.b16 %v333
        %v1194 = vunpack.c.h.b16 %v333
        %v1195 = vunpack.c.l.b16 %v334
        %v1196 = vunpack.c.h.b16 %v334
        %v1197 = vunpack.c.l.b16 %v335
        %v1198 = vunpack.c.h.b16 %v335
        %v1199 = vunpack.c.l.b16 %v336
        %v1200 = vunpack.c.h.b16 %v336
        %v1201 = vunpack.c.l.b16 %v337
        %v1202 = vunpack.c.h.b16 %v337
        %v1203 = vunpack.c.l.b16 %v338
        %v1204 = vunpack.c.h.b16 %v338
        %v1205 = vunpack.c.l.b16 %v339
        %v1206 = vunpack.c.h.b16 %v339
        %v1207 = vunpack.c.l.b16 %v340
        %v1208 = vunpack.c.h.b16 %v340
        %v1209 = vunpack.c.l.b16 %v341
        %v1210 = vunpack.c.h.b16 %v341
        %v1211 = vunpack.c.l.b16 %v342
        %v1212 = vunpack.c.h.b16 %v342
        %v1213 = vunpack.c.l.b16 %v343
        %v1214 = vunpack.c.h.b16 %v343
        %v1215 = vunpack.c.l.b16 %v344
        %v1216 = vunpack.c.h.b16 %v344
        %v1217 = vunpack.c.l.b16 %v345
        %v1218 = vunpack.c.h.b16 %v345
        %v1219 = vunpack.c.l.b16 %v346
        %v1220 = vunpack.c.h.b16 %v346
        %v1221 = vunpack.c.l.b16 %v347
        %v1222 = vunpack.c.h.b16 %v347
        %v1223 = vunpack.c.l.b16 %v348
        %v1224 = vunpack.c.h.b16 %v348
        %v1225 = vunpack.c.l.b16 %v349
        %v1226 = vunpack.c.h.b16 %v349
        %v1227 = vunpack.c.l.b16 %v350
        %v1228 = vunpack.c.h.b16 %v350
        %v1229 = vunpack.c.l.b16 %v351
        %v1230 = vunpack.c.h.b16 %v351
        %v1231 = vunpack.c.l.b16 %v352
        %v1232 = vunpack.c.h.b16 %v352
        %v1233 = vunpack.c.l.b16 %v353
        %v1234 = vunpack.c.h.b16 %v353
        %v1235 = vunpack.c.l.b16 %v354
        %v1236 = vunpack.c.h.b16 %v354
        %v1237 = vunpack.c.l.b16 %v355
        %v1238 = vunpack.c.h.b16 %v355
        %v1239 = vunpack.c.l.b16 %v356
        %v1240 = vunpack.c.h.b16 %v356
        %v1241 = vunpack.c.l.b16 %v357
        %v1242 = vunpack.c.h.b16 %v357
        %v1243 = vunpack.c.l.b16 %v358
        %v1244 = vunpack.c.h.b16 %v358
        %v1245 = vunpack.c.l.b16 %v359
        %v1246 = vunpack.c.h.b16 %v359
        %v1247 = vunpack.c.l.b16 %v360
        %v1248 = vunpack.c.h.b16 %v360
        %v1249 = vunpack.c.l.b16 %v361
        %v1250 = vunpack.c.h.b16 %v361
        %v1251 = vunpack.c.l.b16 %v362
        %v1252 = vunpack.c.h.b16 %v362
        %v1253 = vunpack.c.l.b16 %v363
        %v1254 = vunpack.c.h.b16 %v363
        %v1255 = vunpack.c.l.b16 %v364
        %v1256 = vunpack.c.h.b16 %v364
        %v1257 = vunpack.c.l.b16 %v365
        %v1258 = vunpack.c.h.b16 %v365
        %v1259 = vunpack.c.l.b16 %v366
        %v1260 = vunpack.c.h.b16 %v366
        %v1261 = vunpack.c.l.b16 %v367
        %v1262 = vunpack.c.h.b16 %v367
        %v1263 = vunpack.c.l.b16 %v368
        %v1264 = vunpack.c.h.b16 %v368
        %v1265 = vunpack.c.l.b16 %v369
        %v1266 = vunpack.c.h.b16 %v369
        %v1267 = vunpack.c.l.b16 %v370
        %v1268 = vunpack.c.h.b16 %v370
        %v1269 = vunpack.c.l.b16 %v371
        %v1270 = vunpack.c.h.b16 %v371
        %v1271 = vunpack.c.l.b16 %v372
        %v1272 = vunpack.c.h.b16 %v372
        %v1273 = vunpack.c.l.b16 %v373
        %v1274 = vunpack.c.h.b16 %v373
        %v1275 = vunpack.c.l.b16 %v374
        %v1276 = vunpack.c.h.b16 %v374
        %v1277 = vunpack.c.l.b16 %v375
        %v1278 = vunpack.c.h.b16 %v375
        %v1279 = vunpack.c.l.b16 %v376
        %v1280 = vunpack.c.h.b16 %v376
        %v1281 = vunpack.c.l.b16 %v377
        %v1282 = vunpack.c.h.b16 %v377
        %v1283 = vunpack.c.l.b16 %v378
        %v1284 = vunpack.c.h.b16 %v378
        %v1285 = vunpack.c.l.b16 %v379
        %v1286 = vunpack.c.h.b16 %v379
        %v1287 = vunpack.c.l.b16 %v380
        %v1288 = vunpack.c.h.b16 %v380
        %v1289 = vunpack.c.l.b16 %v381
        %v1290 = vunpack.c.h.b16 %v381
        %v1291 = vunpack.c.l.b16 %v382
        %v1292 = vunpack.c.h.b16 %v382
        %v1293 = vunpack.c.l.b16 %v383
        %v1294 = vunpack.c.h.b16 %v383
        %v1295 = vunpack.c.l.b16 %v384
        %v1296 = vunpack.c.h.b16 %v384
        %v1297 = vunpack.c.l.b16 %v385
        %v1298 = vunpack.c.h.b16 %v385
        %v1299 = vunpack.c.l.b16 %v386
        %v1300 = vunpack.c.h.b16 %v386
        %v1301 = vunpack.c.l.b16 %v387
        %v1302 = vunpack.c.h.b16 %v387
        %v1303 = vunpack.c.l.b16 %v388
        %v1304 = vunpack.c.h.b16 %v388
        %v1305 = vunpack.c.l.b16 %v389
        %v1306 = vunpack.c.h.b16 %v389
        %v1307 = vunpack.c.l.b16 %v390
        %v1308 = vunpack.c.h.b16 %v390
        %v1309 = vunpack.c.l.b16 %v391
        %v1310 = vunpack.c.h.b16 %v391
        %v1311 = vunpack.c.l.b16 %v392
        %v1312 = vunpack.c.h.b16 %v392
        %v1313 = vunpack.c.l.b16 %v393
        %v1314 = vunpack.c.h.b16 %v393
        %v1315 = vunpack.c.l.b16 %v394
        %v1316 = vunpack.c.h.b16 %v394
        %v1317 = vunpack.c.l.b16 %v395
        %v1318 = vunpack.c.h.b16 %v395
        %v1319 = vunpack.c.l.b16 %v396
        %v1320 = vunpack.c.h.b16 %v396
        %v1321 = vunpack.c.l.b16 %v397
        %v1322 = vunpack.c.h.b16 %v397
        %v1323 = vunpack.c.l.b16 %v398
        %v1324 = vunpack.c.h.b16 %v398
        %v1325 = vunpack.c.l.b16 %v399
        %v1326 = vunpack.c.h.b16 %v399
        %v1327 = vunpack.c.l.b16 %v400
        %v1328 = vunpack.c.h.b16 %v400
        %v1329 = vunpack.c.l.b16 %v401
        %v1330 = vunpack.c.h.b16 %v401
        %v1331 = vunpack.c.l.b16 %v402
        %v1332 = vunpack.c.h.b16 %v402
        %v1333 = vunpack.c.l.b16 %v403
        %v1334 = vunpack.c.h.b16 %v403
        %v1335 = vunpack.c.l.b16 %v404
        %v1336 = vunpack.c.h.b16 %v404
        %v1337 = vunpack.c.l.b16 %v405
        %v1338 = vunpack.c.h.b16 %v405
        %v1339 = vunpack.c.l.b16 %v406
        %v1340 = vunpack.c.h.b16 %v406
        %v1341 = vunpack.c.l.b16 %v407
        %v1342 = vunpack.c.h.b16 %v407
        %v1343 = vunpack.c.l.b16 %v408
        %v1344 = vunpack.c.h.b16 %v408
        %v1345 = vunpack.c.l.b16 %v409
        %v1346 = vunpack.c.h.b16 %v409
        %v1347 = vunpack.c.l.b16 %v410
        %v1348 = vunpack.c.h.b16 %v410
        %v1349 = vunpack.c.l.b16 %v411
        %v1350 = vunpack.c.h.b16 %v411
        %v1351 = vunpack.c.l.b16 %v412
        %v1352 = vunpack.c.h.b16 %v412
        %v1353 = vunpack.c.l.b16 %v413
        %v1354 = vunpack.c.h.b16 %v413
        %v1355 = vunpack.c.l.b16 %v414
        %v1356 = vunpack.c.h.b16 %v414
        %v1357 = vunpack.c.l.b16 %v415
        %v1358 = vunpack.c.h.b16 %v415
        %v1359 = vunpack.c.l.b16 %v416
        %v1360 = vunpack.c.h.b16 %v416
        %v1361 = vunpack.c.l.b16 %v417
        %v1362 = vunpack.c.h.b16 %v417
        %v1363 = vunpack.c.l.b16 %v418
        %v1364 = vunpack.c.h.b16 %v418
        %v1365 = vunpack.c.l.b16 %v419
        %v1366 = vunpack.c.h.b16 %v419
        %v1367 = vunpack.c.l.b16 %v420
        %v1368 = vunpack.c.h.b16 %v420
        %v1369 = vunpack.c.l.b16 %v421
        %v1370 = vunpack.c.h.b16 %v421
        %v1371 = vunpack.c.l.b16 %v422
        %v1372 = vunpack.c.h.b16 %v422
        %v1373 = vunpack.c.l.b16 %v423
        %v1374 = vunpack.c.h.b16 %v423
        %v1375 = vunpack.c.l.b16 %v424
        %v1376 = vunpack.c.h.b16 %v424
        %v1377 = vunpack.c.l.b16 %v425
        %v1378 = vunpack.c.h.b16 %v425
        %v1379 = vunpack.c.l.b16 %v426
        %v1380 = vunpack.c.h.b16 %v426
        %v1381 = vunpack.c.l.b16 %v427
        %v1382 = vunpack.c.h.b16 %v427
        %v1383 = vunpack.c.l.b16 %v428
        %v1384 = vunpack.c.h.b16 %v428
        %v1385 = vunpack.c.l.b16 %v429
        %v1386 = vunpack.c.h.b16 %v429
        %v1387 = vunpack.c.l.b16 %v430
        %v1388 = vunpack.c.h.b16 %v430
        %v1389 = vunpack.c.l.b16 %v431
        %v1390 = vunpack.c.h.b16 %v431
        %v1391 = vunpack.c.l.b16 %v432
        %v1392 = vunpack.c.h.b16 %v432
        %v1393 = vunpack.c.l.b16 %v433
        %v1394 = vunpack.c.h.b16 %v433
        %v1395 = vunpack.c.l.b16 %v434
        %v1396 = vunpack.c.h.b16 %v434
        %v1397 = vunpack.c.l.b16 %v435
        %v1398 = vunpack.c.h.b16 %v435
        %v1399 = vunpack.c.l.b16 %v436
        %v1400 = vunpack.c.h.b16 %v436
        %v1401 = vunpack.c.l.b16 %v437
        %v1402 = vunpack.c.h.b16 %v437
        %v1403 = vunpack.c.l.b16 %v438
        %v1404 = vunpack.c.h.b16 %v438
        %v1405 = vunpack.c.l.b16 %v439
        %v1406 = vunpack.c.h.b16 %v439
        %v1407 = vunpack.c.l.b16 %v440
        %v1408 = vunpack.c.h.b16 %v440
        %v1409 = vunpack.c.l.b16 %v441
        %v1410 = vunpack.c.h.b16 %v441
        %v1411 = vunpack.c.l.b16 %v442
        %v1412 = vunpack.c.h.b16 %v442
        %v1413 = vunpack.c.l.b16 %v443
        %v1414 = vunpack.c.h.b16 %v443
        %v1415 = vunpack.c.l.b16 %v444
        %v1416 = vunpack.c.h.b16 %v444
        %v1417 = vunpack.c.l.b16 %v445
        %v1418 = vunpack.c.h.b16 %v445
        %v1419 = vunpack.c.l.b16 %v446
        %v1420 = vunpack.c.h.b16 %v446
        %v1421 = vunpack.c.l.b16 %v447
        %v1422 = vunpack.c.h.b16 %v447
        %v1423 = vunpack.c.l.b16 %v448
        %v1424 = vunpack.c.h.b16 %v448
        %v1425 = vunpack.c.l.b16 %v449
        %v1426 = vunpack.c.h.b16 %v449
        %v1427 = vunpack.c.l.b16 %v450
        %v1428 = vunpack.c.h.b16 %v450
        %v1429 = vunpack.c.l.b16 %v451
        %v1430 = vunpack.c.h.b16 %v451
        %v1431 = vunpack.c.l.b16 %v452
        %v1432 = vunpack.c.h.b16 %v452
        %v1433 = vunpack.c.l.b16 %v453
        %v1434 = vunpack.c.h.b16 %v453
        %v1435 = vunpack.c.l.b16 %v454
        %v1436 = vunpack.c.h.b16 %v454
        %v1437 = vunpack.c.l.b16 %v455
        %v1438 = vunpack.c.h.b16 %v455
        %v1439 = vunpack.c.l.b16 %v456
        %v1440 = vunpack.c.h.b16 %v456
        %v1441 = vunpack.c.l.b16 %v457
        %v1442 = vunpack.c.h.b16 %v457
        %v1443 = vunpack.c.l.b16 %v458
        %v1444 = vunpack.c.h.b16 %v458
        %v1445 = vunpack.c.l.b16 %v459
        %v1446 = vunpack.c.h.b16 %v459
        %v1447 = vunpack.c.l.b16 %v460
        %v1448 = vunpack.c.h.b16 %v460
        %v1449 = vunpack.c.l.b16 %v461
        %v1450 = vunpack.c.h.b16 %v461
        %v1451 = vunpack.c.l.b16 %v462
        %v1452 = vunpack.c.h.b16 %v462
        %v1453 = vunpack.c.l.b16 %v463
        %v1454 = vunpack.c.h.b16 %v463
        %v1455 = vunpack.c.l.b16 %v464
        %v1456 = vunpack.c.h.b16 %v464
        %v1457 = vunpack.c.l.b16 %v465
        %v1458 = vunpack.c.h.b16 %v465
        %v1459 = vunpack.c.l.b16 %v466
        %v1460 = vunpack.c.h.b16 %v466
        %v1461 = vunpack.c.l.b16 %v467
        %v1462 = vunpack.c.h.b16 %v467
        %v1463 = vunpack.c.l.b16 %v468
        %v1464 = vunpack.c.h.b16 %v468
        %v1465 = vunpack.c.l.b16 %v469
        %v1466 = vunpack.c.h.b16 %v469
        %v1467 = vunpack.c.l.b16 %v470
        %v1468 = vunpack.c.h.b16 %v470
        %v1469 = vunpack.c.l.b16 %v471
        %v1470 = vunpack.c.h.b16 %v471
        %v1471 = vunpack.c.l.b16 %v472
        %v1472 = vunpack.c.h.b16 %v472
        %v1473 = vunpack.c.l.b16 %v473
        %v1474 = vunpack.c.h.b16 %v473
        %v1475 = vunpack.c.l.b16 %v474
        %v1476 = vunpack.c.h.b16 %v474
        %v1477 = vunpack.c.l.b16 %v475
        %v1478 = vunpack.c.h.b16 %v475
        %v1479 = vunpack.c.l.b16 %v476
        %v1480 = vunpack.c.h.b16 %v476
        %v1481 = vunpack.c.l.b16 %v477
        %v1482 = vunpack.c.h.b16 %v477
        %v1483 = vunpack.c.l.b16 %v478
        %v1484 = vunpack.c.h.b16 %v478
        %v1485 = vunpack.c.l.b16 %v479
        %v1486 = vunpack.c.h.b16 %v479
        %v1487 = vunpack.c.l.b16 %v480
        %v1488 = vunpack.c.h.b16 %v480
        %v1489 = vunpack.c.l.b16 %v481
        %v1490 = vunpack.c.h.b16 %v481
        %v1491 = vunpack.c.l.b16 %v482
        %v1492 = vunpack.c.h.b16 %v482
        %v1493 = vunpack.c.l.b16 %v483
        %v1494 = vunpack.c.h.b16 %v483
        %v1495 = vunpack.c.l.b16 %v484
        %v1496 = vunpack.c.h.b16 %v484
        %v1497 = vunpack.c.l.b16 %v485
        %v1498 = vunpack.c.h.b16 %v485
        %v1499 = vunpack.c.l.b16 %v486
        %v1500 = vunpack.c.h.b16 %v486
        %v1501 = vunpack.c.l.b16 %v487
        %v1502 = vunpack.c.h.b16 %v487
        %v1503 = vunpack.c.l.b16 %v488
        %v1504 = vunpack.c.h.b16 %v488
        %v1505 = vunpack.c.l.b16 %v489
        %v1506 = vunpack.c.h.b16 %v489
        %v1507 = vunpack.c.l.b16 %v490
        %v1508 = vunpack.c.h.b16 %v490
        %v1509 = vunpack.c.l.b16 %v491
        %v1510 = vunpack.c.h.b16 %v491
        %v1511 = vunpack.c.l.b16 %v492
        %v1512 = vunpack.c.h.b16 %v492
        %v1513 = vunpack.c.l.b16 %v493
        %v1514 = vunpack.c.h.b16 %v493
        %v1515 = vunpack.c.l.b16 %v494
        %v1516 = vunpack.c.h.b16 %v494
        %v1517 = vunpack.c.l.b16 %v495
        %v1518 = vunpack.c.h.b16 %v495
        %v1519 = vunpack.c.l.b16 %v496
        %v1520 = vunpack.c.h.b16 %v496
        %v1521 = vunpack.c.l.b16 %v497
        %v1522 = vunpack.c.h.b16 %v497
        %v1523 = vunpack.c.l.b16 %v498
        %v1524 = vunpack.c.h.b16 %v498
        %v1525 = vunpack.c.l.b16 %v499
        %v1526 = vunpack.c.h.b16 %v499
        %v1527 = vunpack.c.l.b16 %v500
        %v1528 = vunpack.c.h.b16 %v500
        %v1529 = vunpack.c.l.b16 %v501
        %v1530 = vunpack.c.h.b16 %v501
        %v1531 = vunpack.c.l.b16 %v502
        %v1532 = vunpack.c.h.b16 %v502
        %v1533 = vunpack.c.l.b16 %v503
        %v1534 = vunpack.c.h.b16 %v503
        %v1535 = vunpack.c.l.b16 %v504
        %v1536 = vunpack.c.h.b16 %v504
        %v1537 = vunpack.c.l.b16 %v505
        %v1538 = vunpack.c.h.b16 %v505
        %v1539 = vunpack.c.l.b16 %v506
        %v1540 = vunpack.c.h.b16 %v506
        %v1541 = vunpack.c.l.b16 %v507
        %v1542 = vunpack.c.h.b16 %v507
        %v1543 = vunpack.c.l.b16 %v508
        %v1544 = vunpack.c.h.b16 %v508
        %v1545 = vunpack.c.l.b16 %v509
        %v1546 = vunpack.c.h.b16 %v509
        %v1547 = vunpack.c.l.b16 %v510
        %v1548 = vunpack.c.h.b16 %v510
        %v1549 = vunpack.c.l.b16 %v511
        %v1550 = vunpack.c.h.b16 %v511
        %v1551 = vunpack.c.l.b16 %v512
        %v1552 = vunpack.c.h.b16 %v512
        %v1553 = vunpack.c.l.b16 %v513
        %v1554 = vunpack.c.h.b16 %v513
        %v1555 = vunpack.c.l.b16 %v514
        %v1556 = vunpack.c.h.b16 %v514
        %v1557 = vunpack.c.l.b16 %v515
        %v1558 = vunpack.c.h.b16 %v515
        %v1559 = vunpack.c.l.b16 %v516
        %v1560 = vunpack.c.h.b16 %v516
        %v1561 = vunpack.c.l.b16 %v517
        %v1562 = vunpack.c.h.b16 %v517
        %v1563 = vunpack.c.l.b16 %v518
        %v1564 = vunpack.c.h.b16 %v518
        %v1565 = vunpack.c.l.b16 %v519
        %v1566 = vunpack.c.h.b16 %v519
        %v1567 = vunpack.c.l.b16 %v520
        %v1568 = vunpack.c.h.b16 %v520
        %v1569 = vunpack.c.l.b16 %v521
        %v1570 = vunpack.c.h.b16 %v521
        %v1571 = vunpack.c.l.b16 %v522
        %v1572 = vunpack.c.h.b16 %v522
        %v1573 = vunpack.c.l.b16 %v523
        %v1574 = vunpack.c.h.b16 %v523
        %v1575 = vunpack.c.l.b16 %v524
        %v1576 = vunpack.c.h.b16 %v524
        %v1577 = vunpack.c.l.b16 %v525
        %v1578 = vunpack.c.h.b16 %v525
        %v1579 = vunpack.c.l.b16 %v526
        %v1580 = vunpack.c.h.b16 %v526
        %v1581 = vunpack.c.l.b16 %v527
        %v1582 = vunpack.c.h.b16 %v527
        %v1583 = vunpack.c.l.b16 %v528
        %v1584 = vunpack.c.h.b16 %v528
        %v1585 = vunpack.c.l.b16 %v529
        %v1586 = vunpack.c.h.b16 %v529
        %v1587 = vunpack.c.l.b16 %v530
        %v1588 = vunpack.c.h.b16 %v530
        %v1589 = vunpack.c.l.b16 %v531
        %v1590 = vunpack.c.h.b16 %v531
        %v1591 = vunpack.c.l.b16 %v532
        %v1592 = vunpack.c.h.b16 %v532
        %v1593 = vunpack.c.l.b16 %v533
        %v1594 = vunpack.c.h.b16 %v533
        %v1595 = vunpack.c.l.b16 %v534
        %v1596 = vunpack.c.h.b16 %v534
        %v1597 = vunpack.c.l.b16 %v535
        %v1598 = vunpack.c.h.b16 %v535
        %v1599 = vunpack.c.l.b16 %v536
        %v1600 = vunpack.c.h.b16 %v536
        %v1601 = vunpack.c.l.b16 %v537
        %v1602 = vunpack.c.h.b16 %v537
        %v1603 = vunpack.c.l.b16 %v538
        %v1604 = vunpack.c.h.b16 %v538
        %v1605 = vunpack.c.l.b16 %v539
        %v1606 = vunpack.c.h.b16 %v539
        %v1607 = vunpack.c.l.b16 %v540
        %v1608 = vunpack.c.h.b16 %v540
        %v1609 = vunpack.c.l.b16 %v541
        %v1610 = vunpack.c.h.b16 %v541
        %v1611 = vunpack.c.l.b16 %v542
        %v1612 = vunpack.c.h.b16 %v542
        %v1613 = vunpack.c.l.b16 %v543
        %v1614 = vunpack.c.h.b16 %v543
        %v1615 = vunpack.c.l.b16 %v544
        %v1616 = vunpack.c.h.b16 %v544
        %v1617 = vunpack.c.l.b16 %v545
        %v1618 = vunpack.c.h.b16 %v545
        %v1619 = vunpack.c.l.b16 %v546
        %v1620 = vunpack.c.h.b16 %v546
        %v1621 = vunpack.c.l.b16 %v547
        %v1622 = vunpack.c.h.b16 %v547
        %v1623 = vunpack.c.l.b16 %v548
        %v1624 = vunpack.c.h.b16 %v548
        %v1625 = vunpack.c.l.b16 %v549
        %v1626 = vunpack.c.h.b16 %v549
        %v1627 = vunpack.c.l.b16 %v550
        %v1628 = vunpack.c.h.b16 %v550
        %v1629 = vunpack.c.l.b16 %v551
        %v1630 = vunpack.c.h.b16 %v551
        %v1631 = vunpack.c.l.b16 %v552
        %v1632 = vunpack.c.h.b16 %v552
        %v1633 = vunpack.c.l.b16 %v553
        %v1634 = vunpack.c.h.b16 %v553
        %v1635 = vunpack.c.l.b16 %v554
        %v1636 = vunpack.c.h.b16 %v554
        %v1637 = vunpack.c.l.b16 %v555
        %v1638 = vunpack.c.h.b16 %v555
        %v1639 = vunpack.c.l.b16 %v556
        %v1640 = vunpack.c.h.b16 %v556
        %v1641 = vunpack.c.l.b16 %v557
        %v1642 = vunpack.c.h.b16 %v557
        %v1643 = vunpack.c.l.b16 %v558
        %v1644 = vunpack.c.h.b16 %v558
        %v1645 = vunpack.c.l.b16 %v559
        %v1646 = vunpack.c.h.b16 %v559
        %v1647 = vunpack.c.l.b16 %v560
        %v1648 = vunpack.c.h.b16 %v560
        %v1649 = vunpack.c.l.b16 %v561
        %v1650 = vunpack.c.h.b16 %v561
        %v1651 = vunpack.c.l.b16 %v562
        %v1652 = vunpack.c.h.b16 %v562
        %v1653 = vunpack.c.l.b16 %v563
        %v1654 = vunpack.c.h.b16 %v563
        %v1655 = vunpack.c.l.b16 %v564
        %v1656 = vunpack.c.h.b16 %v564
        %v1657 = vunpack.c.l.b16 %v565
        %v1658 = vunpack.c.h.b16 %v565
        %v1659 = vunpack.c.l.b16 %v566
        %v1660 = vunpack.c.h.b16 %v566
        %v1661 = vunpack.c.l.b16 %v567
        %v1662 = vunpack.c.h.b16 %v567
        %v1663 = vunpack.c.l.b16 %v568
        %v1664 = vunpack.c.h.b16 %v568
        %v1665 = vunpack.c.l.b16 %v569
        %v1666 = vunpack.c.h.b16 %v569
        %v1667 = vunpack.c.l.b16 %v570
        %v1668 = vunpack.c.h.b16 %v570
        %v1669 = vunpack.c.l.b16 %v571
        %v1670 = vunpack.c.h.b16 %v571
        %v1671 = vunpack.c.l.b16 %v572
        %v1672 = vunpack.c.h.b16 %v572
        %v1673 = vunpack.c.l.b16 %v573
        %v1674 = vunpack.c.h.b16 %v573
        %v1675 = vunpack.c.l.b16 %v574
        %v1676 = vunpack.c.h.b16 %v574
        %v1677 = vunpack.c.l.b16 %v575
        %v1678 = vunpack.c.h.b16 %v575
        %v1679 = vunpack.c.l.b16 %v576
        %v1680 = vunpack.c.h.b16 %v576
        %v1681 = vunpack.c.l.b16 %v577
        %v1682 = vunpack.c.h.b16 %v577
        %v1683 = vunpack.c.l.b16 %v578
        %v1684 = vunpack.c.h.b16 %v578
        %v1685 = vunpack.c.l.b16 %v579
        %v1686 = vunpack.c.h.b16 %v579
        %v1687 = vunpack.c.l.b16 %v580
        %v1688 = vunpack.c.h.b16 %v580
        %v1689 = vunpack.c.l.b16 %v581
        %v1690 = vunpack.c.h.b16 %v581
        %v1691 = vunpack.c.l.b16 %v582
        %v1692 = vunpack.c.h.b16 %v582
        %v1693 = vunpack.c.l.b16 %v583
        %v1694 = vunpack.c.h.b16 %v583
        %v1695 = vunpack.c.l.b16 %v584
        %v1696 = vunpack.c.h.b16 %v584
        %v1697 = vunpack.c.l.b16 %v585
        %v1698 = vunpack.c.h.b16 %v585
        %v1699 = vunpack.c.l.b16 %v586
        %v1700 = vunpack.c.h.b16 %v586
        %v1701 = vunpack.c.l.b16 %v587
        %v1702 = vunpack.c.h.b16 %v587
        %v1703 = vunpack.c.l.b16 %v588
        %v1704 = vunpack.c.h.b16 %v588
        %v1705 = vunpack.c.l.b16 %v589
        %v1706 = vunpack.c.h.b16 %v589
        %v1707 = vunpack.c.l.b16 %v590
        %v1708 = vunpack.c.h.b16 %v590
        %v1709 = vunpack.c.l.b16 %v591
        %v1710 = vunpack.c.h.b16 %v591
        %v1711 = vunpack.c.l.b16 %v592
        %v1712 = vunpack.c.h.b16 %v592
        %v1713 = vunpack.c.l.b16 %v593
        %v1714 = vunpack.c.h.b16 %v593
        %v1715 = vunpack.c.l.b16 %v594
        %v1716 = vunpack.c.h.b16 %v594
        %v1717 = vunpack.c.l.b16 %v595
        %v1718 = vunpack.c.h.b16 %v595
        %v1719 = vunpack.c.l.b16 %v596
        %v1720 = vunpack.c.h.b16 %v596
        %v1721 = vunpack.c.l.b16 %v597
        %v1722 = vunpack.c.h.b16 %v597
        %v1723 = vunpack.c.l.b16 %v598
        %v1724 = vunpack.c.h.b16 %v598
        %v1725 = vunpack.c.l.b16 %v599
        %v1726 = vunpack.c.h.b16 %v599
        %v1727 = vunpack.c.l.b16 %v600
        %v1728 = vunpack.c.h.b16 %v600
        %v1729 = vunpack.c.l.b16 %v601
        %v1730 = vunpack.c.h.b16 %v601
        %v1731 = vunpack.c.l.b16 %v602
        %v1732 = vunpack.c.h.b16 %v602
        %v1733 = vunpack.c.l.b16 %v603
        %v1734 = vunpack.c.h.b16 %v603
        %v1735 = vunpack.c.l.b16 %v604
        %v1736 = vunpack.c.h.b16 %v604
        %v1737 = vunpack.c.l.b16 %v605
        %v1738 = vunpack.c.h.b16 %v605
        %v1739 = vunpack.c.l.b16 %v606
        %v1740 = vunpack.c.h.b16 %v606
        %v1741 = vunpack.c.l.b16 %v607
        %v1742 = vunpack.c.h.b16 %v607
        %v1743 = vunpack.c.l.b16 %v608
        %v1744 = vunpack.c.h.b16 %v608
        %v1745 = vunpack.c.l.b16 %v609
        %v1746 = vunpack.c.h.b16 %v609
        %v1747 = vunpack.c.l.b16 %v610
        %v1748 = vunpack.c.h.b16 %v610
        %v1749 = vunpack.c.l.b16 %v611
        %v1750 = vunpack.c.h.b16 %v611
        %v1751 = vunpack.c.l.b16 %v612
        %v1752 = vunpack.c.h.b16 %v612
        %v1753 = vunpack.c.l.b16 %v613
        %v1754 = vunpack.c.h.b16 %v613
        %v1755 = vunpack.c.l.b16 %v614
        %v1756 = vunpack.c.h.b16 %v614
        %v1757 = vunpack.c.l.b16 %v615
        %v1758 = vunpack.c.h.b16 %v615
        %v1759 = vunpack.c.l.b16 %v616
        %v1760 = vunpack.c.h.b16 %v616
        %v1761 = vunpack.c.l.b16 %v617
        %v1762 = vunpack.c.h.b16 %v617
        %v1763 = vunpack.c.l.b16 %v618
        %v1764 = vunpack.c.h.b16 %v618
        %v1765 = vunpack.c.l.b16 %v619
        %v1766 = vunpack.c.h.b16 %v619
        %v1767 = vunpack.c.l.b16 %v620
        %v1768 = vunpack.c.h.b16 %v620
        %v1769 = vunpack.c.l.b16 %v621
        %v1770 = vunpack.c.h.b16 %v621
        %v1771 = vunpack.c.l.b16 %v622
        %v1772 = vunpack.c.h.b16 %v622
        %v1773 = vunpack.c.l.b16 %v623
        %v1774 = vunpack.c.h.b16 %v623
        %v1775 = vunpack.c.l.b16 %v624
        %v1776 = vunpack.c.h.b16 %v624
        %v1777 = vunpack.c.l.b16 %v625
        %v1778 = vunpack.c.h.b16 %v625
        %v1779 = vunpack.c.l.b16 %v626
        %v1780 = vunpack.c.h.b16 %v626
        %v1781 = vunpack.c.l.b16 %v627
        %v1782 = vunpack.c.h.b16 %v627
        %v1783 = vunpack.c.l.b16 %v628
        %v1784 = vunpack.c.h.b16 %v628
        %v1785 = vunpack.c.l.b16 %v629
        %v1786 = vunpack.c.h.b16 %v629
        %v1787 = vunpack.c.l.b16 %v630
        %v1788 = vunpack.c.h.b16 %v630
        %v1789 = vunpack.c.l.b16 %v631
        %v1790 = vunpack.c.h.b16 %v631
        %v1791 = vunpack.c.l.b16 %v632
        %v1792 = vunpack.c.h.b16 %v632
        %v1793 = vunpack.c.l.b16 %v633
        %v1794 = vunpack.c.h.b16 %v633
        %v1795 = vunpack.c.l.b16 %v634
        %v1796 = vunpack.c.h.b16 %v634
        %v1797 = vunpack.c.l.b16 %v635
        %v1798 = vunpack.c.h.b16 %v635
        %v1799 = vunpack.c.l.b16 %v636
        %v1800 = vunpack.c.h.b16 %v636
        %v1801 = vunpack.c.l.b16 %v637
        %v1802 = vunpack.c.h.b16 %v637
        %v1803 = vunpack.c.l.b16 %v638
        %v1804 = vunpack.c.h.b16 %v638
        %v1805 = vunpack.c.l.b16 %v639
        %v1806 = vunpack.c.h.b16 %v639
        %v1807 = vunpack.c.l.b16 %v640
        %v1808 = vunpack.c.h.b16 %v640
        %v1809 = vunpack.c.l.b16 %v641
        %v1810 = vunpack.c.h.b16 %v641
        %v1811 = vunpack.c.l.b16 %v642
        %v1812 = vunpack.c.h.b16 %v642
        %v1813 = vunpack.c.l.b16 %v643
        %v1814 = vunpack.c.h.b16 %v643
        %v1815 = vunpack.c.l.b16 %v644
        %v1816 = vunpack.c.h.b16 %v644
        %v1817 = vunpack.c.l.b16 %v645
        %v1818 = vunpack.c.h.b16 %v645
        %v1819 = vunpack.c.l.b16 %v646
        %v1820 = vunpack.c.h.b16 %v646
        %v1821 = vunpack.c.l.b16 %v647
        %v1822 = vunpack.c.h.b16 %v647
        %v1823 = vunpack.c.l.b16 %v648
        %v1824 = vunpack.c.h.b16 %v648
        %v1825 = vunpack.c.l.b16 %v649
        %v1826 = vunpack.c.h.b16 %v649
        %v1827 = vunpack.c.l.b16 %v650
        %v1828 = vunpack.c.h.b16 %v650
        %v1829 = vunpack.c.l.b16 %v651
        %v1830 = vunpack.c.h.b16 %v651
        %v1831 = vunpack.c.l.b16 %v652
        %v1832 = vunpack.c.h.b16 %v652
        %v1833 = vunpack.c.l.b16 %v653
        %v1834 = vunpack.c.h.b16 %v653
        %v1835 = vunpack.c.l.b16 %v654
        %v1836 = vunpack.c.h.b16 %v654
        %v1837 = vunpack.c.l.b16 %v655
        %v1838 = vunpack.c.h.b16 %v655
        %v1839 = vunpack.c.l.b16 %v656
        %v1840 = vunpack.c.h.b16 %v656
        %v1841 = vunpack.c.l.b16 %v657
        %v1842 = vunpack.c.h.b16 %v657
        %v1843 = vunpack.c.l.b16 %v658
        %v1844 = vunpack.c.h.b16 %v658
        %v1845 = vunpack.c.l.b16 %v659
        %v1846 = vunpack.c.h.b16 %v659
        %v1847 = vunpack.c.l.b16 %v660
        %v1848 = vunpack.c.h.b16 %v660
        %v1849 = vunpack.c.l.b16 %v661
        %v1850 = vunpack.c.h.b16 %v661
        %v1851 = vunpack.c.l.b16 %v662
        %v1852 = vunpack.c.h.b16 %v662
        %v1853 = vunpack.c.l.b16 %v663
        %v1854 = vunpack.c.h.b16 %v663
        %v1855 = vunpack.c.l.b16 %v664
        %v1856 = vunpack.c.h.b16 %v664
        %v1857 = vunpack.c.l.b16 %v665
        %v1858 = vunpack.c.h.b16 %v665
        %v1859 = vunpack.c.l.b16 %v666
        %v1860 = vunpack.c.h.b16 %v666
        %v1861 = vunpack.c.l.b16 %v667
        %v1862 = vunpack.c.h.b16 %v667
        %v1863 = vunpack.c.l.b16 %v668
        %v1864 = vunpack.c.h.b16 %v668
        %v1865 = vunpack.c.l.b16 %v669
        %v1866 = vunpack.c.h.b16 %v669
        %v1867 = vunpack.c.l.b16 %v670
        %v1868 = vunpack.c.h.b16 %v670
        %v1869 = vunpack.c.l.b16 %v671
        %v1870 = vunpack.c.h.b16 %v671
        %v1871 = vunpack.c.l.b16 %v672
        %v1872 = vunpack.c.h.b16 %v672
        %v1873 = vunpack.c.l.b16 %v673
        %v1874 = vunpack.c.h.b16 %v673
        %v1875 = vunpack.c.l.b16 %v674
        %v1876 = vunpack.c.h.b16 %v674
        %v1877 = vunpack.c.l.b16 %v675
        %v1878 = vunpack.c.h.b16 %v675
        %v1879 = vunpack.c.l.b16 %v676
        %v1880 = vunpack.c.h.b16 %v676
        %v1881 = vunpack.c.l.b16 %v677
        %v1882 = vunpack.c.h.b16 %v677
        %v1883 = vunpack.c.l.b16 %v678
        %v1884 = vunpack.c.h.b16 %v678
        %v1885 = vunpack.c.l.b16 %v679
        %v1886 = vunpack.c.h.b16 %v679
        %v1887 = vunpack.c.l.b16 %v680
        %v1888 = vunpack.c.h.b16 %v680
        %v1889 = vunpack.c.l.b16 %v681
        %v1890 = vunpack.c.h.b16 %v681
        %v1891 = vunpack.c.l.b16 %v682
        %v1892 = vunpack.c.h.b16 %v682
        %v1893 = vunpack.c.l.b16 %v683
        %v1894 = vunpack.c.h.b16 %v683
        %v1895 = vunpack.c.l.b16 %v684
        %v1896 = vunpack.c.h.b16 %v684
        %v1897 = vunpack.c.l.b16 %v685
        %v1898 = vunpack.c.h.b16 %v685
        %v1899 = vunpack.c.l.b16 %v686
        %v1900 = vunpack.c.h.b16 %v686
        %v1901 = vunpack.c.l.b16 %v687
        %v1902 = vunpack.c.h.b16 %v687
        %v1903 = vunpack.c.l.b16 %v688
        %v1904 = vunpack.c.h.b16 %v688
        %v1905 = vunpack.c.l.b16 %v689
        %v1906 = vunpack.c.h.b16 %v689
        %v1907 = vunpack.c.l.b16 %v690
        %v1908 = vunpack.c.h.b16 %v690
        %v1909 = vunpack.c.l.b16 %v691
        %v1910 = vunpack.c.h.b16 %v691
        %v1911 = vunpack.c.l.b16 %v692
        %v1912 = vunpack.c.h.b16 %v692
        %v1913 = vunpack.c.l.b16 %v693
        %v1914 = vunpack.c.h.b16 %v693
        %v1915 = vunpack.c.l.b16 %v694
        %v1916 = vunpack.c.h.b16 %v694
        %v1917 = vunpack.c.l.b16 %v695
        %v1918 = vunpack.c.h.b16 %v695
        %v1919 = vunpack.c.l.b16 %v696
        %v1920 = vunpack.c.h.b16 %v696
        %v1921 = vunpack.c.l.b16 %v697
        %v1922 = vunpack.c.h.b16 %v697
        %v1923 = vunpack.c.l.b16 %v698
        %v1924 = vunpack.c.h.b16 %v698
        %v1925 = vunpack.c.l.b16 %v699
        %v1926 = vunpack.c.h.b16 %v699
        %v1927 = vunpack.c.l.b16 %v700
        %v1928 = vunpack.c.h.b16 %v700
        %v1929 = vunpack.c.l.b16 %v701
        %v1930 = vunpack.c.h.b16 %v701
        %v1931 = vunpack.c.l.b16 %v702
        %v1932 = vunpack.c.h.b16 %v702
        %v1933 = vunpack.c.l.b16 %v703
        %v1934 = vunpack.c.h.b16 %v703
        %v1935 = vunpack.c.l.b16 %v704
        %v1936 = vunpack.c.h.b16 %v704
        %v1937 = vpack.c.b16 %v1181, %v1169
        %v1938 = vpack.c.b16 %v1182, %v1170
        %v1939 = vpack.c.b16 %v1183, %v1171
        %v1940 = vpack.c.b16 %v1184, %v1172
        %v1941 = vpack.c.b16 %v1185, %v1173
        %v1942 = vpack.c.b16 %v1186, %v1174
        %v1943 = vpack.c.b16 %v1187, %v1175
        %v1944 = vpack.c.b16 %v1188, %v1176
        %v1945 = vpack.c.b16 %v1189, %v1177
        %v1946 = vpack.c.b16 %v1190, %v1178
        %v1947 = vpack.c.b16 %v1191, %v1179
        %v1948 = vpack.c.b16 %v1192, %v1180
        %v1949 = vpack.c.b16 %v1205, %v1193
        %v1950 = vpack.c.b16 %v1206, %v1194
        %v1951 = vpack.c.b16 %v1207, %v1195
        %v1952 = vpack.c.b16 %v1208, %v1196
        %v1953 = vpack.c.b16 %v1209, %v1197
        %v1954 = vpack.c.b16 %v1210, %v1198
        %v1955 = vpack.c.b16 %v1211, %v1199
        %v1956 = vpack.c.b16 %v1212, %v1200
        %v1957 = vpack.c.b16 %v1213, %v1201
        %v1958 = vpack.c.b16 %v1214, %v1202
        %v1959 = vpack.c.b16 %v1215, %v1203
        %v1960 = vpack.c.b16 %v1216, %v1204
        %v1961 = vpack.c.b16 %v1229, %v1217
        %v1962 = vpack.c.b16 %v1230, %v1218
        %v1963 = vpack.c.b16 %v1231, %v1219
        %v1964 = vpack.c.b16 %v1232, %v1220
        %v1965 = vpack.c.b16 %v1233, %v1221
        %v1966 = vpack.c.b16 %v1234, %v1222
        %v1967 = vpack.c.b16 %v1235, %v1223
        %v1968 = vpack.c.b16 %v1236, %v1224
        %v1969 = vpack.c.b16 %v1237, %v1225
        %v1970 = vpack.c.b16 %v1238, %v1226
        %v1971 = vpack.c.b16 %v1239, %v1227
        %v1972 = vpack.c.b16 %v1240, %v1228
        %v1973 = vpack.c.b16 %v1253, %v1241
        %v1974 = vpack.c.b16 %v1254, %v1242
        %v1975 = vpack.c.b16 %v1255, %v1243
        %v1976 = vpack.c.b16 %v1256, %v1244
        %v1977 = vpack.c.b16 %v1257, %v1245
        %v1978 = vpack.c.b16 %v1258, %v1246
        %v1979 = vpack.c.b16 %v1259, %v1247
        %v1980 = vpack.c.b16 %v1260, %v1248
        %v1981 = vpack.c.b16 %v1261, %v1249
        %v1982 = vpack.c.b16 %v1262, %v1250
        %v1983 = vpack.c.b16 %v1263, %v1251
        %v1984 = vpack.c.b16 %v1264, %v1252
        %v1985 = vpack.c.b16 %v1277, %v1265
        %v1986 = vpack.c.b16 %v1278, %v1266
        %v1987 = vpack.c.b16 %v1279, %v1267
        %v1988 = vpack.c.b16 %v1280, %v1268
        %v1989 = vpack.c.b16 %v1281, %v1269
        %v1990 = vpack.c.b16 %v1282, %v1270
        %v1991 = vpack.c.b16 %v1283, %v1271
        %v1992 = vpack.c.b16 %v1284, %v1272
        %v1993 = vpack.c.b16 %v1285, %v1273
        %v1994 = vpack.c.b16 %v1286, %v1274
        %v1995 = vpack.c.b16 %v1287, %v1275
        %v1996 = vpack.c.b16 %v1288, %v1276
        %v1997 = vpack.c.b16 %v1301, %v1289
        %v1998 = vpack.c.b16 %v1302, %v1290
        %v1999 = vpack.c.b16 %v1303, %v1291
        %v2000 = vpack.c.b16 %v1304, %v1292
        %v2001 = vpack.c.b16 %v1305, %v1293
        %v2002 = vpack.c.b16 %v1306, %v1294
        %v2003 = vpack.c.b16 %v1307, %v1295
        %v2004 = vpack.c.b16 %v1308, %v1296
        %v2005 = vpack.c.b16 %v1309, %v1297
        %v2006 = vpack.c.b16 %v1310, %v1298
        %v2007 = vpack.c.b16 %v1311, %v1299
        %v2008 = vpack.c.b16 %v1312, %v1300
        %v2009 = vpack.c.b16 %v1325, %v1313
        %v2010 = vpack.c.b16 %v1326, %v1314
        %v2011 = vpack.c.b16 %v1327, %v1315
        %v2012 = vpack.c.b16 %v1328, %v1316
        %v2013 = vpack.c.b16 %v1329, %v1317
        %v2014 = vpack.c.b16 %v1330, %v1318
        %v2015 = vpack.c.b16 %v1331, %v1319
        %v2016 = vpack.c.b16 %v1332, %v1320
        %v2017 = vpack.c.b16 %v1333, %v1321
        %v2018 = vpack.c.b16 %v1334, %v1322
        %v2019 = vpack.c.b16 %v1335, %v1323
        %v2020 = vpack.c.b16 %v1336, %v1324
        %v2021 = vpack.c.b16 %v1349, %v1337
        %v2022 = vpack.c.b16 %v1350, %v1338
        %v2023 = vpack.c.b16 %v1351, %v1339
        %v2024 = vpack.c.b16 %v1352, %v1340
        %v2025 = vpack.c.b16 %v1353, %v1341
        %v2026 = vpack.c.b16 %v1354, %v1342
        %v2027 = vpack.c.b16 %v1355, %v1343
        %v2028 = vpack.c.b16 %v1356, %v1344
        %v2029 = vpack.c.b16 %v1357, %v1345
        %v2030 = vpack.c.b16 %v1358, %v1346
        %v2031 = vpack.c.b16 %v1359, %v1347
        %v2032 = vpack.c.b16 %v1360, %v1348
        %v2033 = vpack.c.b16 %v1373, %v1361
        %v2034 = vpack.c.b16 %v1374, %v1362
        %v2035 = vpack.c.b16 %v1375, %v1363
        %v2036 = vpack.c.b16 %v1376, %v1364
        %v2037 = vpack.c.b16 %v1377, %v1365
        %v2038 = vpack.c.b16 %v1378, %v1366
        %v2039 = vpack.c.b16 %v1379, %v1367
        %v2040 = vpack.c.b16 %v1380, %v1368
        %v2041 = vpack.c.b16 %v1381, %v1369
        %v2042 = vpack.c.b16 %v1382, %v1370
        %v2043 = vpack.c.b16 %v1383, %v1371
        %v2044 = vpack.c.b16 %v1384, %v1372
        %v2045 = vpack.c.b16 %v1397, %v1385
        %v2046 = vpack.c.b16 %v1398, %v1386
        %v2047 = vpack.c.b16 %v1399, %v1387
        %v2048 = vpack.c.b16 %v1400, %v1388
        %v2049 = vpack.c.b16 %v1401, %v1389
        %v2050 = vpack.c.b16 %v1402, %v1390
        %v2051 = vpack.c.b16 %v1403, %v1391
        %v2052 = vpack.c.b16 %v1404, %v1392
        %v2053 = vpack.c.b16 %v1405, %v1393
        %v2054 = vpack.c.b16 %v1406, %v1394
        %v2055 = vpack.c.b16 %v1407, %v1395
        %v2056 = vpack.c.b16 %v1408, %v1396
        %v2057 = vpack.c.b16 %v1421, %v1409
        %v2058 = vpack.c.b16 %v1422, %v1410
        %v2059 = vpack.c.b16 %v1423, %v1411
        %v2060 = vpack.c.b16 %v1424, %v1412
        %v2061 = vpack.c.b16 %v1425, %v1413
        %v2062 = vpack.c.b16 %v1426, %v1414
        %v2063 = vpack.c.b16 %v1427, %v1415
        %v2064 = vpack.c.b16 %v1428, %v1416
        %v2065 = vpack.c.b16 %v1429, %v1417
        %v2066 = vpack.c.b16 %v1430, %v1418
        %v2067 = vpack.c.b16 %v1431, %v1419
        %v2068 = vpack.c.b16 %v1432, %v1420
        %v2069 = vpack.c.b16 %v1445, %v1433
        %v2070 = vpack.c.b16 %v1446, %v1434
        %v2071 = vpack.c.b16 %v1447, %v1435
        %v2072 = vpack.c.b16 %v1448, %v1436
        %v2073 = vpack.c.b16 %v1449, %v1437
        %v2074 = vpack.c.b16 %v1450, %v1438
        %v2075 = vpack.c.b16 %v1451, %v1439
        %v2076 = vpack.c.b16 %v1452, %v1440
        %v2077 = vpack.c.b16 %v1453, %v1441
        %v2078 = vpack.c.b16 %v1454, %v1442
        %v2079 = vpack.c.b16 %v1455, %v1443
        %v2080 = vpack.c.b16 %v1456, %v1444
        %v2081 = vpack.c.b16 %v1469, %v1457
        %v2082 = vpack.c.b16 %v1470, %v1458
        %v2083 = vpack.c.b16 %v1471, %v1459
        %v2084 = vpack.c.b16 %v1472, %v1460
        %v2085 = vpack.c.b16 %v1473, %v1461
        %v2086 = vpack.c.b16 %v1474, %v1462
        %v2087 = vpack.c.b16 %v1475, %v1463
        %v2088 = vpack.c.b16 %v1476, %v1464
        %v2089 = vpack.c.b16 %v1477, %v1465
        %v2090 = vpack.c.b16 %v1478, %v1466
        %v2091 = vpack.c.b16 %v1479, %v1467
        %v2092 = vpack.c.b16 %v1480, %v1468
        %v2093 = vpack.c.b16 %v1493, %v1481
        %v2094 = vpack.c.b16 %v1494, %v1482
        %v2095 = vpack.c.b16 %v1495, %v1483
        %v2096 = vpack.c.b16 %v1496, %v1484
        %v2097 = vpack.c.b16 %v1497, %v1485
        %v2098 = vpack.c.b16 %v1498, %v1486
        %v2099 = vpack.c.b16 %v1499, %v1487
        %v2100 = vpack.c.b16 %v1500, %v1488
        %v2101 = vpack.c.b16 %v1501, %v1489
        %v2102 = vpack.c.b16 %v1502, %v1490
        %v2103 = vpack.c.b16 %v1503, %v1491
        %v2104 = vpack.c.b16 %v1504, %v1492
        %v2105 = vpack.c.b16 %v1517, %v1505
        %v2106 = vpack.c.b16 %v1518, %v1506
        %v2107 = vpack.c.b16 %v1519, %v1507
        %v2108 = vpack.c.b16 %v1520, %v1508
        %v2109 = vpack.c.b16 %v1521, %v1509
        %v2110 = vpack.c.b16 %v1522, %v1510
        %v2111 = vpack.c.b16 %v1523, %v1511
        %v2112 = vpack.c.b16 %v1524, %v1512
        %v2113 = vpack.c.b16 %v1525, %v1513
        %v2114 = vpack.c.b16 %v1526, %v1514
        %v2115 = vpack.c.b16 %v1527, %v1515
        %v2116 = vpack.c.b16 %v1528, %v1516
        %v2117 = vpack.c.b16 %v1541, %v1529
        %v2118 = vpack.c.b16 %v1542, %v1530
        %v2119 = vpack.c.b16 %v1543, %v1531
        %v2120 = vpack.c.b16 %v1544, %v1532
        %v2121 = vpack.c.b16 %v1545, %v1533
        %v2122 = vpack.c.b16 %v1546, %v1534
        %v2123 = vpack.c.b16 %v1547, %v1535
        %v2124 = vpack.c.b16 %v1548, %v1536
        %v2125 = vpack.c.b16 %v1549, %v1537
        %v2126 = vpack.c.b16 %v1550, %v1538
        %v2127 = vpack.c.b16 %v1551, %v1539
        %v2128 = vpack.c.b16 %v1552, %v1540
        %v2129 = vpack.c.b16 %v1565, %v1553
        %v2130 = vpack.c.b16 %v1566, %v1554
        %v2131 = vpack.c.b16 %v1567, %v1555
        %v2132 = vpack.c.b16 %v1568, %v1556
        %v2133 = vpack.c.b16 %v1569, %v1557
        %v2134 = vpack.c.b16 %v1570, %v1558
        %v2135 = vpack.c.b16 %v1571, %v1559
        %v2136 = vpack.c.b16 %v1572, %v1560
        %v2137 = vpack.c.b16 %v1573, %v1561
        %v2138 = vpack.c.b16 %v1574, %v1562
        %v2139 = vpack.c.b16 %v1575, %v1563
        %v2140 = vpack.c.b16 %v1576, %v1564
        %v2141 = vpack.c.b16 %v1589, %v1577
        %v2142 = vpack.c.b16 %v1590, %v1578
        %v2143 = vpack.c.b16 %v1591, %v1579
        %v2144 = vpack.c.b16 %v1592, %v1580
        %v2145 = vpack.c.b16 %v1593, %v1581
        %v2146 = vpack.c.b16 %v1594, %v1582
        %v2147 = vpack.c.b16 %v1595, %v1583
        %v2148 = vpack.c.b16 %v1596, %v1584
        %v2149 = vpack.c.b16 %v1597, %v1585
        %v2150 = vpack.c.b16 %v1598, %v1586
        %v2151 = vpack.c.b16 %v1599, %v1587
        %v2152 = vpack.c.b16 %v1600, %v1588
        %v2153 = vpack.c.b16 %v1613, %v1601
        %v2154 = vpack.c.b16 %v1614, %v1602
        %v2155 = vpack.c.b16 %v1615, %v1603
        %v2156 = vpack.c.b16 %v1616, %v1604
        %v2157 = vpack.c.b16 %v1617, %v1605
        %v2158 = vpack.c.b16 %v1618, %v1606
        %v2159 = vpack.c.b16 %v1619, %v1607
        %v2160 = vpack.c.b16 %v1620, %v1608
        %v2161 = vpack.c.b16 %v1621, %v1609
        %v2162 = vpack.c.b16 %v1622, %v1610
        %v2163 = vpack.c.b16 %v1623, %v1611
        %v2164 = vpack.c.b16 %v1624, %v1612
        %v2165 = vpack.c.b16 %v1637, %v1625
        %v2166 = vpack.c.b16 %v1638, %v1626
        %v2167 = vpack.c.b16 %v1639, %v1627
        %v2168 = vpack.c.b16 %v1640, %v1628
        %v2169 = vpack.c.b16 %v1641, %v1629
        %v2170 = vpack.c.b16 %v1642, %v1630
        %v2171 = vpack.c.b16 %v1643, %v1631
        %v2172 = vpack.c.b16 %v1644, %v1632
        %v2173 = vpack.c.b16 %v1645, %v1633
        %v2174 = vpack.c.b16 %v1646, %v1634
        %v2175 = vpack.c.b16 %v1647, %v1635
        %v2176 = vpack.c.b16 %v1648, %v1636
        %v2177 = vpack.c.b16 %v1661, %v1649
        %v2178 = vpack.c.b16 %v1662, %v1650
        %v2179 = vpack.c.b16 %v1663, %v1651
        %v2180 = vpack.c.b16 %v1664, %v1652
        %v2181 = vpack.c.b16 %v1665, %v1653
        %v2182 = vpack.c.b16 %v1666, %v1654
        %v2183 = vpack.c.b16 %v1667, %v1655
        %v2184 = vpack.c.b16 %v1668, %v1656
        %v2185 = vpack.c.b16 %v1669, %v1657
        %v2186 = vpack.c.b16 %v1670, %v1658
        %v2187 = vpack.c.b16 %v1671, %v1659
        %v2188 = vpack.c.b16 %v1672, %v1660
        %v2189 = vpack.c.b16 %v1685, %v1673
        %v2190 = vpack.c.b16 %v1686, %v1674
        %v2191 = vpack.c.b16 %v1687, %v1675
        %v2192 = vpack.c.b16 %v1688, %v1676
        %v2193 = vpack.c.b16 %v1689, %v1677
        %v2194 = vpack.c.b16 %v1690, %v1678
        %v2195 = vpack.c.b16 %v1691, %v1679
        %v2196 = vpack.c.b16 %v1692, %v1680
        %v2197 = vpack.c.b16 %v1693, %v1681
        %v2198 = vpack.c.b16 %v1694, %v1682
        %v2199 = vpack.c.b16 %v1695, %v1683
        %v2200 = vpack.c.b16 %v1696, %v1684
        %v2201 = vpack.c.b16 %v1709, %v1697
        %v2202 = vpack.c.b16 %v1710, %v1698
        %v2203 = vpack.c.b16 %v1711, %v1699
        %v2204 = vpack.c.b16 %v1712, %v1700
        %v2205 = vpack.c.b16 %v1713, %v1701
        %v2206 = vpack.c.b16 %v1714, %v1702
        %v2207 = vpack.c.b16 %v1715, %v1703
        %v2208 = vpack.c.b16 %v1716, %v1704
        %v2209 = vpack.c.b16 %v1717, %v1705
        %v2210 = vpack.c.b16 %v1718, %v1706
        %v2211 = vpack.c.b16 %v1719, %v1707
        %v2212 = vpack.c.b16 %v1720, %v1708
        %v2213 = vpack.c.b16 %v1733, %v1721
        %v2214 = vpack.c.b16 %v1734, %v1722
        %v2215 = vpack.c.b16 %v1735, %v1723
        %v2216 = vpack.c.b16 %v1736, %v1724
        %v2217 = vpack.c.b16 %v1737, %v1725
        %v2218 = vpack.c.b16 %v1738, %v1726
        %v2219 = vpack.c.b16 %v1739, %v1727
        %v2220 = vpack.c.b16 %v1740, %v1728
        %v2221 = vpack.c.b16 %v1741, %v1729
        %v2222 = vpack.c.b16 %v1742, %v1730
        %v2223 = vpack.c.b16 %v1743, %v1731
        %v2224 = vpack.c.b16 %v1744, %v1732
        %v2225 = vpack.c.b16 %v1757, %v1745
        %v2226 = vpack.c.b16 %v1758, %v1746
        %v2227 = vpack.c.b16 %v1759, %v1747
        %v2228 = vpack.c.b16 %v1760, %v1748
        %v2229 = vpack.c.b16 %v1761, %v1749
        %v2230 = vpack.c.b16 %v1762, %v1750
        %v2231 = vpack.c.b16 %v1763, %v1751
        %v2232 = vpack.c.b16 %v1764, %v1752
        %v2233 = vpack.c.b16 %v1765, %v1753
        %v2234 = vpack.c.b16 %v1766, %v1754
        %v2235 = vpack.c.b16 %v1767, %v1755
        %v2236 = vpack.c.b16 %v1768, %v1756
        %v2237 = vpack.c.b16 %v1781, %v1769
        %v2238 = vpack.c.b16 %v1782, %v1770
        %v2239 = vpack.c.b16 %v1783, %v1771
        %v2240 = vpack.c.b16 %v1784, %v1772
        %v2241 = vpack.c.b16 %v1785, %v1773
        %v2242 = vpack.c.b16 %v1786, %v1774
        %v2243 = vpack.c.b16 %v1787, %v1775
        %v2244 = vpack.c.b16 %v1788, %v1776
        %v2245 = vpack.c.b16 %v1789, %v1777
        %v2246 = vpack.c.b16 %v1790, %v1778
        %v2247 = vpack.c.b16 %v1791, %v1779
        %v2248 = vpack.c.b16 %v1792, %v1780
        %v2249 = vpack.c.b16 %v1805, %v1793
        %v2250 = vpack.c.b16 %v1806, %v1794
        %v2251 = vpack.c.b16 %v1807, %v1795
        %v2252 = vpack.c.b16 %v1808, %v1796
        %v2253 = vpack.c.b16 %v1809, %v1797
        %v2254 = vpack.c.b16 %v1810, %v1798
        %v2255 = vpack.c.b16 %v1811, %v1799
        %v2256 = vpack.c.b16 %v1812, %v1800
        %v2257 = vpack.c.b16 %v1813, %v1801
        %v2258 = vpack.c.b16 %v1814, %v1802
        %v2259 = vpack.c.b16 %v1815, %v1803
        %v2260 = vpack.c.b16 %v1816, %v1804
        %v2261 = vpack.c.b16 %v1829, %v1817
        %v2262 = vpack.c.b16 %v1830, %v1818
        %v2263 = vpack.c.b16 %v1831, %v1819
        %v2264 = vpack.c.b16 %v1832, %v1820
        %v2265 = vpack.c.b16 %v1833, %v1821
        %v2266 = vpack.c.b16 %v1834, %v1822
        %v2267 = vpack.c.b16 %v1835, %v1823
        %v2268 = vpack.c.b16 %v1836, %v1824
        %v2269 = vpack.c.b16 %v1837, %v1825
        %v2270 = vpack.c.b16 %v1838, %v1826
        %v2271 = vpack.c.b16 %v1839, %v1827
        %v2272 = vpack.c.b16 %v1840, %v1828
        %v2273 = vpack.c.b16 %v1853, %v1841
        %v2274 = vpack.c.b16 %v1854, %v1842
        %v2275 = vpack.c.b16 %v1855, %v1843
        %v2276 = vpack.c.b16 %v1856, %v1844
        %v2277 = vpack.c.b16 %v1857, %v1845
        %v2278 = vpack.c.b16 %v1858, %v1846
        %v2279 = vpack.c.b16 %v1859, %v1847
        %v2280 = vpack.c.b16 %v1860, %v1848
        %v2281 = vpack.c.b16 %v1861, %v1849
        %v2282 = vpack.c.b16 %v1862, %v1850
        %v2283 = vpack.c.b16 %v1863, %v1851
        %v2284 = vpack.c.b16 %v1864, %v1852
        %v2285 = vpack.c.b16 %v1877, %v1865
        %v2286 = vpack.c.b16 %v1878, %v1866
        %v2287 = vpack.c.b16 %v1879, %v1867
        %v2288 = vpack.c.b16 %v1880, %v1868
        %v2289 = vpack.c.b16 %v1881, %v1869
        %v2290 = vpack.c.b16 %v1882, %v1870
        %v2291 = vpack.c.b16 %v1883, %v1871
        %v2292 = vpack.c.b16 %v1884, %v1872
        %v2293 = vpack.c.b16 %v1885, %v1873
        %v2294 = vpack.c.b16 %v1886, %v1874
        %v2295 = vpack.c.b16 %v1887, %v1875
        %v2296 = vpack.c.b16 %v1888, %v1876
        %v2297 = vpack.c.b16 %v1901, %v1889
        %v2298 = vpack.c.b16 %v1902, %v1890
        %v2299 = vpack.c.b16 %v1903, %v1891
        %v2300 = vpack.c.b16 %v1904, %v1892
        %v2301 = vpack.c.b16 %v1905, %v1893
        %v2302 = vpack.c.b16 %v1906, %v1894
        %v2303 = vpack.c.b16 %v1907, %v1895
        %v2304 = vpack.c.b16 %v1908, %v1896
        %v2305 = vpack.c.b16 %v1909, %v1897
        %v2306 = vpack.c.b16 %v1910, %v1898
        %v2307 = vpack.c.b16 %v1911, %v1899
        %v2308 = vpack.c.b16 %v1912, %v1900
        %v2309 = vpack.c.b16 %v1925, %v1913
        %v2310 = vpack.c.b16 %v1926, %v1914
        %v2311 = vpack.c.b16 %v1927, %v1915
        %v2312 = vpack.c.b16 %v1928, %v1916
        %v2313 = vpack.c.b16 %v1929, %v1917
        %v2314 = vpack.c.b16 %v1930, %v1918
        %v2315 = vpack.c.b16 %v1931, %v1919
        %v2316 = vpack.c.b16 %v1932, %v1920
        %v2317 = vpack.c.b16 %v1933, %v1921
        %v2318 = vpack.c.b16 %v1934, %v1922
        %v2319 = vpack.c.b16 %v1935, %v1923
        %v2320 = vpack.c.b16 %v1936, %v1924
        %2705 = vmatprep.subr.bf16.mxu0 %v1938
        %2706 = vmatpush1.bf16.msra.mxu0 %v1937
        %2707 = vmatprep.subr.bf16.mxu0 %v1950
        %2708 = vmatpush1.bf16.msra.mxu0 %v1949
        %2709 = vmatprep.subr.bf16.mxu0 %v1962
        %2710 = vmatpush1.bf16.msra.mxu0 %v1961
        %2711 = vmatprep.subr.bf16.mxu0 %v1974
        %2712 = vmatpush1.bf16.msra.mxu0 %v1973
        %2713 = vmatprep.subr.bf16.mxu0 %v1986
        %2714 = vmatpush1.bf16.msra.mxu0 %v1985
        %2715 = vmatprep.subr.bf16.mxu0 %v1998
        %2716 = vmatpush1.bf16.msra.mxu0 %v1997
        %2717 = vmatprep.subr.bf16.mxu0 %v2010
        %2718 = vmatpush1.bf16.msra.mxu0 %v2009
        %2719 = vmatprep.subr.bf16.mxu0 %v2022
        %2720 = vmatpush1.bf16.msra.mxu0 %v2021
        %2721 = vmatprep.subr.bf16.mxu0 %v2034
        %2722 = vmatpush1.bf16.msra.mxu0 %v2033
        %2723 = vmatprep.subr.bf16.mxu0 %v2046
        %2724 = vmatpush1.bf16.msra.mxu0 %v2045
        %2725 = vmatprep.subr.bf16.mxu0 %v2058
        %2726 = vmatpush1.bf16.msra.mxu0 %v2057
        %2727 = vmatprep.subr.bf16.mxu0 %v2070
        %2728 = vmatpush1.bf16.msra.mxu0 %v2069
        %2729 = vmatprep.subr.bf16.mxu0 %v2082
        %2730 = vmatpush1.bf16.msra.mxu0 %v2081
        %2731 = vmatprep.subr.bf16.mxu0 %v2094
        %2732 = vmatpush1.bf16.msra.mxu0 %v2093
        %2733 = vmatprep.subr.bf16.mxu0 %v2106
        %2734 = vmatpush1.bf16.msra.mxu0 %v2105
        %2735 = vmatprep.subr.bf16.mxu0 %v2118
        %2736 = vmatpush1.bf16.msra.mxu0 %v2117
        %2737 = vmatprep.mubr.bf16.mxu0 %v754
        %2738 = vmatmul.mubr.bf16.gmra.mrb[0].mxu0 %v753
        %v2739 = vpop.f32.mrb[0].mxu0
        %v2740 = vadd.f32 0.0, %v2739
        %v2741 = vpop.f32.mrb[0].mxu0
        %v2742 = vadd.f32 0.0, %v2741
        %v2743 = vpop.f32.mrb[0].mxu0
        %v2744 = vadd.f32 0.0, %v2743
        %v2745 = vpop.f32.mrb[0].mxu0
        %v2746 = vadd.f32 0.0, %v2745
        %2747 = vmatprep.mubr.bf16.mxu0 %v758
        %2748 = vmatmul.mubr.bf16.gmra.mrb[0].mxu0 %v757
        %v2749 = vpop.f32.mrb[0].mxu0
        %v2750 = vadd.f32 0.0, %v2749
        %v2751 = vpop.f32.mrb[0].mxu0
        %v2752 = vadd.f32 0.0, %v2751
        %v2753 = vpop.f32.mrb[0].mxu0
        %v2754 = vadd.f32 0.0, %v2753
        %v2755 = vpop.f32.mrb[0].mxu0
        %v2756 = vadd.f32 0.0, %v2755
        %2757 = vmatprep.mubr.bf16.mxu0 %v762
        %2758 = vmatmul.mubr.bf16.gmra.mrb[0].mxu0 %v761
        %v2759 = vpop.f32.mrb[0].mxu0
        %v2760 = vadd.f32 0.0, %v2759
        %v2761 = vpop.f32.mrb[0].mxu0
        %v2762 = vadd.f32 0.0, %v2761
        %v2763 = vpop.f32.mrb[0].mxu0
        %v2764 = vadd.f32 0.0, %v2763
        %v2765 = vpop.f32.mrb[0].mxu0
        %v2766 = vadd.f32 0.0, %v2765
        %2767 = vmatprep.mubr.bf16.mxu0 %v766
        %2768 = vmatmul.mubr.bf16.gmra.mrb[0].mxu0 %v765
        %v2769 = vpop.f32.mrb[0].mxu0
        %v2770 = vadd.f32 0.0, %v2769
        %v2771 = vpop.f32.mrb[0].mxu0
        %v2772 = vadd.f32 0.0, %v2771
        %v2773 = vpop.f32.mrb[0].mxu0
        %v2774 = vadd.f32 0.0, %v2773
        %v2775 = vpop.f32.mrb[0].mxu0
        %v2776 = vadd.f32 0.0, %v2775
        %2777 = vdwg.mxu0
        %2778 = vmatprep.subr.bf16.mxu0 %v2130
        %2779 = vmatpush1.bf16.msra.mxu0 %v2129
        %2780 = vmatprep.subr.bf16.mxu0 %v2142
        %2781 = vmatpush1.bf16.msra.mxu0 %v2141
        %2782 = vmatprep.subr.bf16.mxu0 %v2154
        %2783 = vmatpush1.bf16.msra.mxu0 %v2153
        %2784 = vmatprep.subr.bf16.mxu0 %v2166
        %2785 = vmatpush1.bf16.msra.mxu0 %v2165
        %2786 = vmatprep.subr.bf16.mxu0 %v2178
        %2787 = vmatpush1.bf16.msra.mxu0 %v2177
        %2788 = vmatprep.subr.bf16.mxu0 %v2190
        %2789 = vmatpush1.bf16.msra.mxu0 %v2189
        %2790 = vmatprep.subr.bf16.mxu0 %v2202
        %2791 = vmatpush1.bf16.msra.mxu0 %v2201
        %2792 = vmatprep.subr.bf16.mxu0 %v2214
        %2793 = vmatpush1.bf16.msra.mxu0 %v2213
        %2794 = vmatprep.subr.bf16.mxu0 %v2226
        %2795 = vmatpush1.bf16.msra.mxu0 %v2225
        %2796 = vmatprep.subr.bf16.mxu0 %v2238
        %2797 = vmatpush1.bf16.msra.mxu0 %v2237
        %2798 = vmatprep.subr.bf16.mxu0 %v2250
        %2799 = vmatpush1.bf16.msra.mxu0 %v2249
        %2800 = vmatprep.subr.bf16.mxu0 %v2262
        %2801 = vmatpush1.bf16.msra.mxu0 %v2261
        %2802 = vmatprep.subr.bf16.mxu0 %v2274
        %2803 = vmatpush1.bf16.msra.mxu0 %v2273
        %2804 = vmatprep.subr.bf16.mxu0 %v2286
        %2805 = vmatpush1.bf16.msra.mxu0 %v2285
        %2806 = vmatprep.subr.bf16.mxu0 %v2298
        %2807 = vmatpush1.bf16.msra.mxu0 %v2297
        %2808 = vmatprep.subr.bf16.mxu0 %v2310
        %2809 = vmatpush1.bf16.msra.mxu0 %v2309
        %2810 = vmatprep.mubr.bf16.mxu0 %v756
        %2811 = vmatmul.mubr.bf16.gmra.mrb[0].mxu0 %v755
        %v2812 = vpop.f32.mrb[0].mxu0
        %v2813 = vadd.f32 %v2740, %v2812
        %v2814 = vpop.f32.mrb[0].mxu0
        %v2815 = vadd.f32 %v2742, %v2814
        %v2816 = vpop.f32.mrb[0].mxu0
        %v2817 = vadd.f32 %v2744, %v2816
        %v2818 = vpop.f32.mrb[0].mxu0
        %v2819 = vadd.f32 %v2746, %v2818
        %2820 = vmatprep.mubr.bf16.mxu0 %v760
        %2821 = vmatmul.mubr.bf16.gmra.mrb[0].mxu0 %v759
        %v2822 = vpop.f32.mrb[0].mxu0
        %v2823 = vadd.f32 %v2750, %v2822
        %v2824 = vpop.f32.mrb[0].mxu0
        %v2825 = vadd.f32 %v2752, %v2824
        %v2826 = vpop.f32.mrb[0].mxu0
        %v2827 = vadd.f32 %v2754, %v2826
        %v2828 = vpop.f32.mrb[0].mxu0
        %v2829 = vadd.f32 %v2756, %v2828
        %2830 = vmatprep.mubr.bf16.mxu0 %v764
        %2831 = vmatmul.mubr.bf16.gmra.mrb[0].mxu0 %v763
        %v2832 = vpop.f32.mrb[0].mxu0
        %v2833 = vadd.f32 %v2760, %v2832
        %v2834 = vpop.f32.mrb[0].mxu0
        %v2835 = vadd.f32 %v2762, %v2834
        %v2836 = vpop.f32.mrb[0].mxu0
        %v2837 = vadd.f32 %v2764, %v2836
        %v2838 = vpop.f32.mrb[0].mxu0
        %v2839 = vadd.f32 %v2766, %v2838
        %2840 = vmatprep.mubr.bf16.mxu0 %v768
        %2841 = vmatmul.mubr.bf16.gmra.mrb[0].mxu0 %v767
        %v2842 = vpop.f32.mrb[0].mxu0
        %v2843 = vadd.f32 %v2770, %v2842
        %v2844 = vpop.f32.mrb[0].mxu0
        %v2845 = vadd.f32 %v2772, %v2844
        %v2846 = vpop.f32.mrb[0].mxu0
        %v2847 = vadd.f32 %v2774, %v2846
        %v2848 = vpop.f32.mrb[0].mxu0
        %v2849 = vadd.f32 %v2776, %v2848
        %2850 = vdwg.mxu0
        %2851 = vmatprep.subr.bf16.mxu0 %v1940
        %2852 = vmatpush1.bf16.msra.mxu0 %v1939
        %2853 = vmatprep.subr.bf16.mxu0 %v1952
        %2854 = vmatpush1.bf16.msra.mxu0 %v1951
        %2855 = vmatprep.subr.bf16.mxu0 %v1964
        %2856 = vmatpush1.bf16.msra.mxu0 %v1963
        %2857 = vmatprep.subr.bf16.mxu0 %v1976
        %2858 = vmatpush1.bf16.msra.mxu0 %v1975
        %2859 = vmatprep.subr.bf16.mxu0 %v1988
        %2860 = vmatpush1.bf16.msra.mxu0 %v1987
        %2861 = vmatprep.subr.bf16.mxu0 %v2000
        %2862 = vmatpush1.bf16.msra.mxu0 %v1999
        %2863 = vmatprep.subr.bf16.mxu0 %v2012
        %2864 = vmatpush1.bf16.msra.mxu0 %v2011
        %2865 = vmatprep.subr.bf16.mxu0 %v2024
        %2866 = vmatpush1.bf16.msra.mxu0 %v2023
        %2867 = vmatprep.subr.bf16.mxu0 %v2036
        %2868 = vmatpush1.bf16.msra.mxu0 %v2035
        %2869 = vmatprep.subr.bf16.mxu0 %v2048
        %2870 = vmatpush1.bf16.msra.mxu0 %v2047
        %2871 = vmatprep.subr.bf16.mxu0 %v2060
        %2872 = vmatpush1.bf16.msra.mxu0 %v2059
        %2873 = vmatprep.subr.bf16.mxu0 %v2072
        %2874 = vmatpush1.bf16.msra.mxu0 %v2071
        %2875 = vmatprep.subr.bf16.mxu0 %v2084
        %2876 = vmatpush1.bf16.msra.mxu0 %v2083
        %2877 = vmatprep.subr.bf16.mxu0 %v2096
        %2878 = vmatpush1.bf16.msra.mxu0 %v2095
        %2879 = vmatprep.subr.bf16.mxu0 %v2108
        %2880 = vmatpush1.bf16.msra.mxu0 %v2107
        %2881 = vmatprep.subr.bf16.mxu0 %v2120
        %2882 = vmatpush1.bf16.msra.mxu0 %v2119
        %2883 = vmatprep.mubr.bf16.mxu0 %v754
        %2884 = vmatmul.mubr.bf16.gmra.mrb[0].mxu0 %v753
        %v2885 = vpop.f32.mrb[0].mxu0
        %v2886 = vadd.f32 0.0, %v2885
        %v2887 = vpop.f32.mrb[0].mxu0
        %v2888 = vadd.f32 0.0, %v2887
        %v2889 = vpop.f32.mrb[0].mxu0
        %v2890 = vadd.f32 0.0, %v2889
        %v2891 = vpop.f32.mrb[0].mxu0
        %v2892 = vadd.f32 0.0, %v2891
        %2893 = vmatprep.mubr.bf16.mxu0 %v758
        %2894 = vmatmul.mubr.bf16.gmra.mrb[0].mxu0 %v757
        %v2895 = vpop.f32.mrb[0].mxu0
        %v2896 = vadd.f32 0.0, %v2895
        %v2897 = vpop.f32.mrb[0].mxu0
        %v2898 = vadd.f32 0.0, %v2897
        %v2899 = vpop.f32.mrb[0].mxu0
        %v2900 = vadd.f32 0.0, %v2899
        %v2901 = vpop.f32.mrb[0].mxu0
        %v2902 = vadd.f32 0.0, %v2901
        %2903 = vmatprep.mubr.bf16.mxu0 %v762
        %2904 = vmatmul.mubr.bf16.gmra.mrb[0].mxu0 %v761
        %v2905 = vpop.f32.mrb[0].mxu0
        %v2906 = vadd.f32 0.0, %v2905
        %v2907 = vpop.f32.mrb[0].mxu0
        %v2908 = vadd.f32 0.0, %v2907
        %v2909 = vpop.f32.mrb[0].mxu0
        %v2910 = vadd.f32 0.0, %v2909
        %v2911 = vpop.f32.mrb[0].mxu0
        %v2912 = vadd.f32 0.0, %v2911
        %2913 = vmatprep.mubr.bf16.mxu0 %v766
        %2914 = vmatmul.mubr.bf16.gmra.mrb[0].mxu0 %v765
        %v2915 = vpop.f32.mrb[0].mxu0
        %v2916 = vadd.f32 0.0, %v2915
        %v2917 = vpop.f32.mrb[0].mxu0
        %v2918 = vadd.f32 0.0, %v2917
        %v2919 = vpop.f32.mrb[0].mxu0
        %v2920 = vadd.f32 0.0, %v2919
        %v2921 = vpop.f32.mrb[0].mxu0
        %v2922 = vadd.f32 0.0, %v2921
        %2923 = vdwg.mxu0
        %2924 = vmatprep.subr.bf16.mxu0 %v2132
        %2925 = vmatpush1.bf16.msra.mxu0 %v2131
        %2926 = vmatprep.subr.bf16.mxu0 %v2144
        %2927 = vmatpush1.bf16.msra.mxu0 %v2143
        %2928 = vmatprep.subr.bf16.mxu0 %v2156
        %2929 = vmatpush1.bf16.msra.mxu0 %v2155
        %2930 = vmatprep.subr.bf16.mxu0 %v2168
        %2931 = vmatpush1.bf16.msra.mxu0 %v2167
        %2932 = vmatprep.subr.bf16.mxu0 %v2180
        %2933 = vmatpush1.bf16.msra.mxu0 %v2179
        %2934 = vmatprep.subr.bf16.mxu0 %v2192
        %2935 = vmatpush1.bf16.msra.mxu0 %v2191
        %2936 = vmatprep.subr.bf16.mxu0 %v2204
        %2937 = vmatpush1.bf16.msra.mxu0 %v2203
        %2938 = vmatprep.subr.bf16.mxu0 %v2216
        %2939 = vmatpush1.bf16.msra.mxu0 %v2215
        %2940 = vmatprep.subr.bf16.mxu0 %v2228
        %2941 = vmatpush1.bf16.msra.mxu0 %v2227
        %2942 = vmatprep.subr.bf16.mxu0 %v2240
        %2943 = vmatpush1.bf16.msra.mxu0 %v2239
        %2944 = vmatprep.subr.bf16.mxu0 %v2252
        %2945 = vmatpush1.bf16.msra.mxu0 %v2251
        %2946 = vmatprep.subr.bf16.mxu0 %v2264
        %2947 = vmatpush1.bf16.msra.mxu0 %v2263
        %2948 = vmatprep.subr.bf16.mxu0 %v2276
        %2949 = vmatpush1.bf16.msra.mxu0 %v2275
        %2950 = vmatprep.subr.bf16.mxu0 %v2288
        %2951 = vmatpush1.bf16.msra.mxu0 %v2287
        %2952 = vmatprep.subr.bf16.mxu0 %v2300
        %2953 = vmatpush1.bf16.msra.mxu0 %v2299
        %2954 = vmatprep.subr.bf16.mxu0 %v2312
        %2955 = vmatpush1.bf16.msra.mxu0 %v2311
        %2956 = vmatprep.mubr.bf16.mxu0 %v756
        %2957 = vmatmul.mubr.bf16.gmra.mrb[0].mxu0 %v755
        %v2958 = vpop.f32.mrb[0].mxu0
        %v2959 = vadd.f32 %v2886, %v2958
        %v2960 = vpop.f32.mrb[0].mxu0
        %v2961 = vadd.f32 %v2888, %v2960
        %v2962 = vpop.f32.mrb[0].mxu0
        %v2963 = vadd.f32 %v2890, %v2962
        %v2964 = vpop.f32.mrb[0].mxu0
        %v2965 = vadd.f32 %v2892, %v2964
        %2966 = vmatprep.mubr.bf16.mxu0 %v760
        %2967 = vmatmul.mubr.bf16.gmra.mrb[0].mxu0 %v759
        %v2968 = vpop.f32.mrb[0].mxu0
        %v2969 = vadd.f32 %v2896, %v2968
        %v2970 = vpop.f32.mrb[0].mxu0
        %v2971 = vadd.f32 %v2898, %v2970
        %v2972 = vpop.f32.mrb[0].mxu0
        %v2973 = vadd.f32 %v2900, %v2972
        %v2974 = vpop.f32.mrb[0].mxu0
        %v2975 = vadd.f32 %v2902, %v2974
        %2976 = vmatprep.mubr.bf16.mxu0 %v764
        %2977 = vmatmul.mubr.bf16.gmra.mrb[0].mxu0 %v763
        %v2978 = vpop.f32.mrb[0].mxu0
        %v2979 = vadd.f32 %v2906, %v2978
        %v2980 = vpop.f32.mrb[0].mxu0
        %v2981 = vadd.f32 %v2908, %v2980
        %v2982 = vpop.f32.mrb[0].mxu0
        %v2983 = vadd.f32 %v2910, %v2982
        %v2984 = vpop.f32.mrb[0].mxu0
        %v2985 = vadd.f32 %v2912, %v2984
        %2986 = vmatprep.mubr.bf16.mxu0 %v768
        %2987 = vmatmul.mubr.bf16.gmra.mrb[0].mxu0 %v767
        %v2988 = vpop.f32.mrb[0].mxu0
        %v2989 = vadd.f32 %v2916, %v2988
        %v2990 = vpop.f32.mrb[0].mxu0
        %v2991 = vadd.f32 %v2918, %v2990
        %v2992 = vpop.f32.mrb[0].mxu0
        %v2993 = vadd.f32 %v2920, %v2992
        %v2994 = vpop.f32.mrb[0].mxu0
        %v2995 = vadd.f32 %v2922, %v2994
        %2996 = vdwg.mxu0
        %2997 = vmatprep.subr.bf16.mxu0 %v1942
        %2998 = vmatpush1.bf16.msra.mxu0 %v1941
        %2999 = vmatprep.subr.bf16.mxu0 %v1954
        %3000 = vmatpush1.bf16.msra.mxu0 %v1953
        %3001 = vmatprep.subr.bf16.mxu0 %v1966
        %3002 = vmatpush1.bf16.msra.mxu0 %v1965
        %3003 = vmatprep.subr.bf16.mxu0 %v1978
        %3004 = vmatpush1.bf16.msra.mxu0 %v1977
        %3005 = vmatprep.subr.bf16.mxu0 %v1990
        %3006 = vmatpush1.bf16.msra.mxu0 %v1989
        %3007 = vmatprep.subr.bf16.mxu0 %v2002
        %3008 = vmatpush1.bf16.msra.mxu0 %v2001
        %3009 = vmatprep.subr.bf16.mxu0 %v2014
        %3010 = vmatpush1.bf16.msra.mxu0 %v2013
        %3011 = vmatprep.subr.bf16.mxu0 %v2026
        %3012 = vmatpush1.bf16.msra.mxu0 %v2025
        %3013 = vmatprep.subr.bf16.mxu0 %v2038
        %3014 = vmatpush1.bf16.msra.mxu0 %v2037
        %3015 = vmatprep.subr.bf16.mxu0 %v2050
        %3016 = vmatpush1.bf16.msra.mxu0 %v2049
        %3017 = vmatprep.subr.bf16.mxu0 %v2062
        %3018 = vmatpush1.bf16.msra.mxu0 %v2061
        %3019 = vmatprep.subr.bf16.mxu0 %v2074
        %3020 = vmatpush1.bf16.msra.mxu0 %v2073
        %3021 = vmatprep.subr.bf16.mxu0 %v2086
        %3022 = vmatpush1.bf16.msra.mxu0 %v2085
        %3023 = vmatprep.subr.bf16.mxu0 %v2098
        %3024 = vmatpush1.bf16.msra.mxu0 %v2097
        %3025 = vmatprep.subr.bf16.mxu0 %v2110
        %3026 = vmatpush1.bf16.msra.mxu0 %v2109
        %3027 = vmatprep.subr.bf16.mxu0 %v2122
        %3028 = vmatpush1.bf16.msra.mxu0 %v2121
        %3029 = vmatprep.mubr.bf16.mxu0 %v754
        %3030 = vmatmul.mubr.bf16.gmra.mrb[0].mxu0 %v753
        %v3031 = vpop.f32.mrb[0].mxu0
        %v3032 = vadd.f32 0.0, %v3031
        %v3033 = vpop.f32.mrb[0].mxu0
        %v3034 = vadd.f32 0.0, %v3033
        %v3035 = vpop.f32.mrb[0].mxu0
        %v3036 = vadd.f32 0.0, %v3035
        %v3037 = vpop.f32.mrb[0].mxu0
        %v3038 = vadd.f32 0.0, %v3037
        %3039 = vmatprep.mubr.bf16.mxu0 %v758
        %3040 = vmatmul.mubr.bf16.gmra.mrb[0].mxu0 %v757
        %v3041 = vpop.f32.mrb[0].mxu0
        %v3042 = vadd.f32 0.0, %v3041
        %v3043 = vpop.f32.mrb[0].mxu0
        %v3044 = vadd.f32 0.0, %v3043
        %v3045 = vpop.f32.mrb[0].mxu0
        %v3046 = vadd.f32 0.0, %v3045
        %v3047 = vpop.f32.mrb[0].mxu0
        %v3048 = vadd.f32 0.0, %v3047
        %3049 = vmatprep.mubr.bf16.mxu0 %v762
        %3050 = vmatmul.mubr.bf16.gmra.mrb[0].mxu0 %v761
        %v3051 = vpop.f32.mrb[0].mxu0
        %v3052 = vadd.f32 0.0, %v3051
        %v3053 = vpop.f32.mrb[0].mxu0
        %v3054 = vadd.f32 0.0, %v3053
        %v3055 = vpop.f32.mrb[0].mxu0
        %v3056 = vadd.f32 0.0, %v3055
        %v3057 = vpop.f32.mrb[0].mxu0
        %v3058 = vadd.f32 0.0, %v3057
        %3059 = vmatprep.mubr.bf16.mxu0 %v766
        %3060 = vmatmul.mubr.bf16.gmra.mrb[0].mxu0 %v765
        %v3061 = vpop.f32.mrb[0].mxu0
        %v3062 = vadd.f32 0.0, %v3061
        %v3063 = vpop.f32.mrb[0].mxu0
        %v3064 = vadd.f32 0.0, %v3063
        %v3065 = vpop.f32.mrb[0].mxu0
        %v3066 = vadd.f32 0.0, %v3065
        %v3067 = vpop.f32.mrb[0].mxu0
        %v3068 = vadd.f32 0.0, %v3067
        %3069 = vdwg.mxu0
        %3070 = vmatprep.subr.bf16.mxu0 %v2134
        %3071 = vmatpush1.bf16.msra.mxu0 %v2133
        %3072 = vmatprep.subr.bf16.mxu0 %v2146
        %3073 = vmatpush1.bf16.msra.mxu0 %v2145
        %3074 = vmatprep.subr.bf16.mxu0 %v2158
        %3075 = vmatpush1.bf16.msra.mxu0 %v2157
        %3076 = vmatprep.subr.bf16.mxu0 %v2170
        %3077 = vmatpush1.bf16.msra.mxu0 %v2169
        %3078 = vmatprep.subr.bf16.mxu0 %v2182
        %3079 = vmatpush1.bf16.msra.mxu0 %v2181
        %3080 = vmatprep.subr.bf16.mxu0 %v2194
        %3081 = vmatpush1.bf16.msra.mxu0 %v2193
        %3082 = vmatprep.subr.bf16.mxu0 %v2206
        %3083 = vmatpush1.bf16.msra.mxu0 %v2205
        %3084 = vmatprep.subr.bf16.mxu0 %v2218
        %3085 = vmatpush1.bf16.msra.mxu0 %v2217
        %3086 = vmatprep.subr.bf16.mxu0 %v2230
        %3087 = vmatpush1.bf16.msra.mxu0 %v2229
        %3088 = vmatprep.subr.bf16.mxu0 %v2242
        %3089 = vmatpush1.bf16.msra.mxu0 %v2241
        %3090 = vmatprep.subr.bf16.mxu0 %v2254
        %3091 = vmatpush1.bf16.msra.mxu0 %v2253
        %3092 = vmatprep.subr.bf16.mxu0 %v2266
        %3093 = vmatpush1.bf16.msra.mxu0 %v2265
        %3094 = vmatprep.subr.bf16.mxu0 %v2278
        %3095 = vmatpush1.bf16.msra.mxu0 %v2277
        %3096 = vmatprep.subr.bf16.mxu0 %v2290
        %3097 = vmatpush1.bf16.msra.mxu0 %v2289
        %3098 = vmatprep.subr.bf16.mxu0 %v2302
        %3099 = vmatpush1.bf16.msra.mxu0 %v2301
        %3100 = vmatprep.subr.bf16.mxu0 %v2314
        %3101 = vmatpush1.bf16.msra.mxu0 %v2313
        %3102 = vmatprep.mubr.bf16.mxu0 %v756
        %3103 = vmatmul.mubr.bf16.gmra.mrb[0].mxu0 %v755
        %v3104 = vpop.f32.mrb[0].mxu0
        %v3105 = vadd.f32 %v3032, %v3104
        %v3106 = vpop.f32.mrb[0].mxu0
        %v3107 = vadd.f32 %v3034, %v3106
        %v3108 = vpop.f32.mrb[0].mxu0
        %v3109 = vadd.f32 %v3036, %v3108
        %v3110 = vpop.f32.mrb[0].mxu0
        %v3111 = vadd.f32 %v3038, %v3110
        %3112 = vmatprep.mubr.bf16.mxu0 %v760
        %3113 = vmatmul.mubr.bf16.gmra.mrb[0].mxu0 %v759
        %v3114 = vpop.f32.mrb[0].mxu0
        %v3115 = vadd.f32 %v3042, %v3114
        %v3116 = vpop.f32.mrb[0].mxu0
        %v3117 = vadd.f32 %v3044, %v3116
        %v3118 = vpop.f32.mrb[0].mxu0
        %v3119 = vadd.f32 %v3046, %v3118
        %v3120 = vpop.f32.mrb[0].mxu0
        %v3121 = vadd.f32 %v3048, %v3120
        %3122 = vmatprep.mubr.bf16.mxu0 %v764
        %3123 = vmatmul.mubr.bf16.gmra.mrb[0].mxu0 %v763
        %v3124 = vpop.f32.mrb[0].mxu0
        %v3125 = vadd.f32 %v3052, %v3124
        %v3126 = vpop.f32.mrb[0].mxu0
        %v3127 = vadd.f32 %v3054, %v3126
        %v3128 = vpop.f32.mrb[0].mxu0
        %v3129 = vadd.f32 %v3056, %v3128
        %v3130 = vpop.f32.mrb[0].mxu0
        %v3131 = vadd.f32 %v3058, %v3130
        %3132 = vmatprep.mubr.bf16.mxu0 %v768
        %3133 = vmatmul.mubr.bf16.gmra.mrb[0].mxu0 %v767
        %v3134 = vpop.f32.mrb[0].mxu0
        %v3135 = vadd.f32 %v3062, %v3134
        %v3136 = vpop.f32.mrb[0].mxu0
        %v3137 = vadd.f32 %v3064, %v3136
        %v3138 = vpop.f32.mrb[0].mxu0
        %v3139 = vadd.f32 %v3066, %v3138
        %v3140 = vpop.f32.mrb[0].mxu0
        %v3141 = vadd.f32 %v3068, %v3140
        %3142 = vdwg.mxu0
        %3143 = vmatprep.subr.bf16.mxu0 %v1944
        %3144 = vmatpush1.bf16.msra.mxu0 %v1943
        %3145 = vmatprep.subr.bf16.mxu0 %v1956
        %3146 = vmatpush1.bf16.msra.mxu0 %v1955
        %3147 = vmatprep.subr.bf16.mxu0 %v1968
        %3148 = vmatpush1.bf16.msra.mxu0 %v1967
        %3149 = vmatprep.subr.bf16.mxu0 %v1980
        %3150 = vmatpush1.bf16.msra.mxu0 %v1979
        %3151 = vmatprep.subr.bf16.mxu0 %v1992
        %3152 = vmatpush1.bf16.msra.mxu0 %v1991
        %3153 = vmatprep.subr.bf16.mxu0 %v2004
        %3154 = vmatpush1.bf16.msra.mxu0 %v2003
        %3155 = vmatprep.subr.bf16.mxu0 %v2016
        %3156 = vmatpush1.bf16.msra.mxu0 %v2015
        %3157 = vmatprep.subr.bf16.mxu0 %v2028
        %3158 = vmatpush1.bf16.msra.mxu0 %v2027
        %3159 = vmatprep.subr.bf16.mxu0 %v2040
        %3160 = vmatpush1.bf16.msra.mxu0 %v2039
        %3161 = vmatprep.subr.bf16.mxu0 %v2052
        %3162 = vmatpush1.bf16.msra.mxu0 %v2051
        %3163 = vmatprep.subr.bf16.mxu0 %v2064
        %3164 = vmatpush1.bf16.msra.mxu0 %v2063
        %3165 = vmatprep.subr.bf16.mxu0 %v2076
        %3166 = vmatpush1.bf16.msra.mxu0 %v2075
        %3167 = vmatprep.subr.bf16.mxu0 %v2088
        %3168 = vmatpush1.bf16.msra.mxu0 %v2087
        %3169 = vmatprep.subr.bf16.mxu0 %v2100
        %3170 = vmatpush1.bf16.msra.mxu0 %v2099
        %3171 = vmatprep.subr.bf16.mxu0 %v2112
        %3172 = vmatpush1.bf16.msra.mxu0 %v2111
        %3173 = vmatprep.subr.bf16.mxu0 %v2124
        %3174 = vmatpush1.bf16.msra.mxu0 %v2123
        %3175 = vmatprep.mubr.bf16.mxu0 %v754
        %3176 = vmatmul.mubr.bf16.gmra.mrb[0].mxu0 %v753
        %v3177 = vpop.f32.mrb[0].mxu0
        %v3178 = vadd.f32 0.0, %v3177
        %v3179 = vpop.f32.mrb[0].mxu0
        %v3180 = vadd.f32 0.0, %v3179
        %v3181 = vpop.f32.mrb[0].mxu0
        %v3182 = vadd.f32 0.0, %v3181
        %v3183 = vpop.f32.mrb[0].mxu0
        %v3184 = vadd.f32 0.0, %v3183
        %3185 = vmatprep.mubr.bf16.mxu0 %v758
        %3186 = vmatmul.mubr.bf16.gmra.mrb[0].mxu0 %v757
        %v3187 = vpop.f32.mrb[0].mxu0
        %v3188 = vadd.f32 0.0, %v3187
        %v3189 = vpop.f32.mrb[0].mxu0
        %v3190 = vadd.f32 0.0, %v3189
        %v3191 = vpop.f32.mrb[0].mxu0
        %v3192 = vadd.f32 0.0, %v3191
        %v3193 = vpop.f32.mrb[0].mxu0
        %v3194 = vadd.f32 0.0, %v3193
        %3195 = vmatprep.mubr.bf16.mxu0 %v762
        %3196 = vmatmul.mubr.bf16.gmra.mrb[0].mxu0 %v761
        %v3197 = vpop.f32.mrb[0].mxu0
        %v3198 = vadd.f32 0.0, %v3197
        %v3199 = vpop.f32.mrb[0].mxu0
        %v3200 = vadd.f32 0.0, %v3199
        %v3201 = vpop.f32.mrb[0].mxu0
        %v3202 = vadd.f32 0.0, %v3201
        %v3203 = vpop.f32.mrb[0].mxu0
        %v3204 = vadd.f32 0.0, %v3203
        %3205 = vmatprep.mubr.bf16.mxu0 %v766
        %3206 = vmatmul.mubr.bf16.gmra.mrb[0].mxu0 %v765
        %v3207 = vpop.f32.mrb[0].mxu0
        %v3208 = vadd.f32 0.0, %v3207
        %v3209 = vpop.f32.mrb[0].mxu0
        %v3210 = vadd.f32 0.0, %v3209
        %v3211 = vpop.f32.mrb[0].mxu0
        %v3212 = vadd.f32 0.0, %v3211
        %v3213 = vpop.f32.mrb[0].mxu0
        %v3214 = vadd.f32 0.0, %v3213
        %3215 = vdwg.mxu0
        %3216 = vmatprep.subr.bf16.mxu0 %v2136
        %3217 = vmatpush1.bf16.msra.mxu0 %v2135
        %3218 = vmatprep.subr.bf16.mxu0 %v2148
        %3219 = vmatpush1.bf16.msra.mxu0 %v2147
        %3220 = vmatprep.subr.bf16.mxu0 %v2160
        %3221 = vmatpush1.bf16.msra.mxu0 %v2159
        %3222 = vmatprep.subr.bf16.mxu0 %v2172
        %3223 = vmatpush1.bf16.msra.mxu0 %v2171
        %3224 = vmatprep.subr.bf16.mxu0 %v2184
        %3225 = vmatpush1.bf16.msra.mxu0 %v2183
        %3226 = vmatprep.subr.bf16.mxu0 %v2196
        %3227 = vmatpush1.bf16.msra.mxu0 %v2195
        %3228 = vmatprep.subr.bf16.mxu0 %v2208
        %3229 = vmatpush1.bf16.msra.mxu0 %v2207
        %3230 = vmatprep.subr.bf16.mxu0 %v2220
        %3231 = vmatpush1.bf16.msra.mxu0 %v2219
        %3232 = vmatprep.subr.bf16.mxu0 %v2232
        %3233 = vmatpush1.bf16.msra.mxu0 %v2231
        %3234 = vmatprep.subr.bf16.mxu0 %v2244
        %3235 = vmatpush1.bf16.msra.mxu0 %v2243
        %3236 = vmatprep.subr.bf16.mxu0 %v2256
        %3237 = vmatpush1.bf16.msra.mxu0 %v2255
        %3238 = vmatprep.subr.bf16.mxu0 %v2268
        %3239 = vmatpush1.bf16.msra.mxu0 %v2267
        %3240 = vmatprep.subr.bf16.mxu0 %v2280
        %3241 = vmatpush1.bf16.msra.mxu0 %v2279
        %3242 = vmatprep.subr.bf16.mxu0 %v2292
        %3243 = vmatpush1.bf16.msra.mxu0 %v2291
        %3244 = vmatprep.subr.bf16.mxu0 %v2304
        %3245 = vmatpush1.bf16.msra.mxu0 %v2303
        %3246 = vmatprep.subr.bf16.mxu0 %v2316
        %3247 = vmatpush1.bf16.msra.mxu0 %v2315
        %3248 = vmatprep.mubr.bf16.mxu0 %v756
        %3249 = vmatmul.mubr.bf16.gmra.mrb[0].mxu0 %v755
        %v3250 = vpop.f32.mrb[0].mxu0
        %v3251 = vadd.f32 %v3178, %v3250
        %v3252 = vpop.f32.mrb[0].mxu0
        %v3253 = vadd.f32 %v3180, %v3252
        %v3254 = vpop.f32.mrb[0].mxu0
        %v3255 = vadd.f32 %v3182, %v3254
        %v3256 = vpop.f32.mrb[0].mxu0
        %v3257 = vadd.f32 %v3184, %v3256
        %3258 = vmatprep.mubr.bf16.mxu0 %v760
        %3259 = vmatmul.mubr.bf16.gmra.mrb[0].mxu0 %v759
        %v3260 = vpop.f32.mrb[0].mxu0
        %v3261 = vadd.f32 %v3188, %v3260
        %v3262 = vpop.f32.mrb[0].mxu0
        %v3263 = vadd.f32 %v3190, %v3262
        %v3264 = vpop.f32.mrb[0].mxu0
        %v3265 = vadd.f32 %v3192, %v3264
        %v3266 = vpop.f32.mrb[0].mxu0
        %v3267 = vadd.f32 %v3194, %v3266
        %3268 = vmatprep.mubr.bf16.mxu0 %v764
        %3269 = vmatmul.mubr.bf16.gmra.mrb[0].mxu0 %v763
        %v3270 = vpop.f32.mrb[0].mxu0
        %v3271 = vadd.f32 %v3198, %v3270
        %v3272 = vpop.f32.mrb[0].mxu0
        %v3273 = vadd.f32 %v3200, %v3272
        %v3274 = vpop.f32.mrb[0].mxu0
        %v3275 = vadd.f32 %v3202, %v3274
        %v3276 = vpop.f32.mrb[0].mxu0
        %v3277 = vadd.f32 %v3204, %v3276
        %3278 = vmatprep.mubr.bf16.mxu0 %v768
        %3279 = vmatmul.mubr.bf16.gmra.mrb[0].mxu0 %v767
        %v3280 = vpop.f32.mrb[0].mxu0
        %v3281 = vadd.f32 %v3208, %v3280
        %v3282 = vpop.f32.mrb[0].mxu0
        %v3283 = vadd.f32 %v3210, %v3282
        %v3284 = vpop.f32.mrb[0].mxu0
        %v3285 = vadd.f32 %v3212, %v3284
        %v3286 = vpop.f32.mrb[0].mxu0
        %v3287 = vadd.f32 %v3214, %v3286
        %3288 = vdwg.mxu0
        %3289 = vmatprep.subr.bf16.mxu0 %v1946
        %3290 = vmatpush1.bf16.msra.mxu0 %v1945
        %3291 = vmatprep.subr.bf16.mxu0 %v1958
        %3292 = vmatpush1.bf16.msra.mxu0 %v1957
        %3293 = vmatprep.subr.bf16.mxu0 %v1970
        %3294 = vmatpush1.bf16.msra.mxu0 %v1969
        %3295 = vmatprep.subr.bf16.mxu0 %v1982
        %3296 = vmatpush1.bf16.msra.mxu0 %v1981
        %3297 = vmatprep.subr.bf16.mxu0 %v1994
        %3298 = vmatpush1.bf16.msra.mxu0 %v1993
        %3299 = vmatprep.subr.bf16.mxu0 %v2006
        %3300 = vmatpush1.bf16.msra.mxu0 %v2005
        %3301 = vmatprep.subr.bf16.mxu0 %v2018
        %3302 = vmatpush1.bf16.msra.mxu0 %v2017
        %3303 = vmatprep.subr.bf16.mxu0 %v2030
        %3304 = vmatpush1.bf16.msra.mxu0 %v2029
        %3305 = vmatprep.subr.bf16.mxu0 %v2042
        %3306 = vmatpush1.bf16.msra.mxu0 %v2041
        %3307 = vmatprep.subr.bf16.mxu0 %v2054
        %3308 = vmatpush1.bf16.msra.mxu0 %v2053
        %3309 = vmatprep.subr.bf16.mxu0 %v2066
        %3310 = vmatpush1.bf16.msra.mxu0 %v2065
        %3311 = vmatprep.subr.bf16.mxu0 %v2078
        %3312 = vmatpush1.bf16.msra.mxu0 %v2077
        %3313 = vmatprep.subr.bf16.mxu0 %v2090
        %3314 = vmatpush1.bf16.msra.mxu0 %v2089
        %3315 = vmatprep.subr.bf16.mxu0 %v2102
        %3316 = vmatpush1.bf16.msra.mxu0 %v2101
        %3317 = vmatprep.subr.bf16.mxu0 %v2114
        %3318 = vmatpush1.bf16.msra.mxu0 %v2113
        %3319 = vmatprep.subr.bf16.mxu0 %v2126
        %3320 = vmatpush1.bf16.msra.mxu0 %v2125
        %3321 = vmatprep.mubr.bf16.mxu0 %v754
        %3322 = vmatmul.mubr.bf16.gmra.mrb[0].mxu0 %v753
        %v3323 = vpop.f32.mrb[0].mxu0
        %v3324 = vadd.f32 0.0, %v3323
        %v3325 = vpop.f32.mrb[0].mxu0
        %v3326 = vadd.f32 0.0, %v3325
        %v3327 = vpop.f32.mrb[0].mxu0
        %v3328 = vadd.f32 0.0, %v3327
        %v3329 = vpop.f32.mrb[0].mxu0
        %v3330 = vadd.f32 0.0, %v3329
        %3331 = vmatprep.mubr.bf16.mxu0 %v758
        %3332 = vmatmul.mubr.bf16.gmra.mrb[0].mxu0 %v757
        %v3333 = vpop.f32.mrb[0].mxu0
        %v3334 = vadd.f32 0.0, %v3333
        %v3335 = vpop.f32.mrb[0].mxu0
        %v3336 = vadd.f32 0.0, %v3335
        %v3337 = vpop.f32.mrb[0].mxu0
        %v3338 = vadd.f32 0.0, %v3337
        %v3339 = vpop.f32.mrb[0].mxu0
        %v3340 = vadd.f32 0.0, %v3339
        %3341 = vmatprep.mubr.bf16.mxu0 %v762
        %3342 = vmatmul.mubr.bf16.gmra.mrb[0].mxu0 %v761
        %v3343 = vpop.f32.mrb[0].mxu0
        %v3344 = vadd.f32 0.0, %v3343
        %v3345 = vpop.f32.mrb[0].mxu0
        %v3346 = vadd.f32 0.0, %v3345
        %v3347 = vpop.f32.mrb[0].mxu0
        %v3348 = vadd.f32 0.0, %v3347
        %v3349 = vpop.f32.mrb[0].mxu0
        %v3350 = vadd.f32 0.0, %v3349
        %3351 = vmatprep.mubr.bf16.mxu0 %v766
        %3352 = vmatmul.mubr.bf16.gmra.mrb[0].mxu0 %v765
        %v3353 = vpop.f32.mrb[0].mxu0
        %v3354 = vadd.f32 0.0, %v3353
        %v3355 = vpop.f32.mrb[0].mxu0
        %v3356 = vadd.f32 0.0, %v3355
        %v3357 = vpop.f32.mrb[0].mxu0
        %v3358 = vadd.f32 0.0, %v3357
        %v3359 = vpop.f32.mrb[0].mxu0
        %v3360 = vadd.f32 0.0, %v3359
        %3361 = vdwg.mxu0
        %3362 = vmatprep.subr.bf16.mxu0 %v2138
        %3363 = vmatpush1.bf16.msra.mxu0 %v2137
        %3364 = vmatprep.subr.bf16.mxu0 %v2150
        %3365 = vmatpush1.bf16.msra.mxu0 %v2149
        %3366 = vmatprep.subr.bf16.mxu0 %v2162
        %3367 = vmatpush1.bf16.msra.mxu0 %v2161
        %3368 = vmatprep.subr.bf16.mxu0 %v2174
        %3369 = vmatpush1.bf16.msra.mxu0 %v2173
        %3370 = vmatprep.subr.bf16.mxu0 %v2186
        %3371 = vmatpush1.bf16.msra.mxu0 %v2185
        %3372 = vmatprep.subr.bf16.mxu0 %v2198
        %3373 = vmatpush1.bf16.msra.mxu0 %v2197
        %3374 = vmatprep.subr.bf16.mxu0 %v2210
        %3375 = vmatpush1.bf16.msra.mxu0 %v2209
        %3376 = vmatprep.subr.bf16.mxu0 %v2222
        %3377 = vmatpush1.bf16.msra.mxu0 %v2221
        %3378 = vmatprep.subr.bf16.mxu0 %v2234
        %3379 = vmatpush1.bf16.msra.mxu0 %v2233
        %3380 = vmatprep.subr.bf16.mxu0 %v2246
        %3381 = vmatpush1.bf16.msra.mxu0 %v2245
        %3382 = vmatprep.subr.bf16.mxu0 %v2258
        %3383 = vmatpush1.bf16.msra.mxu0 %v2257
        %3384 = vmatprep.subr.bf16.mxu0 %v2270
        %3385 = vmatpush1.bf16.msra.mxu0 %v2269
        %3386 = vmatprep.subr.bf16.mxu0 %v2282
        %3387 = vmatpush1.bf16.msra.mxu0 %v2281
        %3388 = vmatprep.subr.bf16.mxu0 %v2294
        %3389 = vmatpush1.bf16.msra.mxu0 %v2293
        %3390 = vmatprep.subr.bf16.mxu0 %v2306
        %3391 = vmatpush1.bf16.msra.mxu0 %v2305
        %3392 = vmatprep.subr.bf16.mxu0 %v2318
        %3393 = vmatpush1.bf16.msra.mxu0 %v2317
        %3394 = vmatprep.mubr.bf16.mxu0 %v756
        %3395 = vmatmul.mubr.bf16.gmra.mrb[0].mxu0 %v755
        %v3396 = vpop.f32.mrb[0].mxu0
        %v3397 = vadd.f32 %v3324, %v3396
        %v3398 = vpop.f32.mrb[0].mxu0
        %v3399 = vadd.f32 %v3326, %v3398
        %v3400 = vpop.f32.mrb[0].mxu0
        %v3401 = vadd.f32 %v3328, %v3400
        %v3402 = vpop.f32.mrb[0].mxu0
        %v3403 = vadd.f32 %v3330, %v3402
        %3404 = vmatprep.mubr.bf16.mxu0 %v760
        %3405 = vmatmul.mubr.bf16.gmra.mrb[0].mxu0 %v759
        %v3406 = vpop.f32.mrb[0].mxu0
        %v3407 = vadd.f32 %v3334, %v3406
        %v3408 = vpop.f32.mrb[0].mxu0
        %v3409 = vadd.f32 %v3336, %v3408
        %v3410 = vpop.f32.mrb[0].mxu0
        %v3411 = vadd.f32 %v3338, %v3410
        %v3412 = vpop.f32.mrb[0].mxu0
        %v3413 = vadd.f32 %v3340, %v3412
        %3414 = vmatprep.mubr.bf16.mxu0 %v764
        %3415 = vmatmul.mubr.bf16.gmra.mrb[0].mxu0 %v763
        %v3416 = vpop.f32.mrb[0].mxu0
        %v3417 = vadd.f32 %v3344, %v3416
        %v3418 = vpop.f32.mrb[0].mxu0
        %v3419 = vadd.f32 %v3346, %v3418
        %v3420 = vpop.f32.mrb[0].mxu0
        %v3421 = vadd.f32 %v3348, %v3420
        %v3422 = vpop.f32.mrb[0].mxu0
        %v3423 = vadd.f32 %v3350, %v3422
        %3424 = vmatprep.mubr.bf16.mxu0 %v768
        %3425 = vmatmul.mubr.bf16.gmra.mrb[0].mxu0 %v767
        %v3426 = vpop.f32.mrb[0].mxu0
        %v3427 = vadd.f32 %v3354, %v3426
        %v3428 = vpop.f32.mrb[0].mxu0
        %v3429 = vadd.f32 %v3356, %v3428
        %v3430 = vpop.f32.mrb[0].mxu0
        %v3431 = vadd.f32 %v3358, %v3430
        %v3432 = vpop.f32.mrb[0].mxu0
        %v3433 = vadd.f32 %v3360, %v3432
        %3434 = vdwg.mxu0
        %3435 = vmatprep.subr.bf16.mxu0 %v1948
        %3436 = vmatpush1.bf16.msra.mxu0 %v1947
        %3437 = vmatprep.subr.bf16.mxu0 %v1960
        %3438 = vmatpush1.bf16.msra.mxu0 %v1959
        %3439 = vmatprep.subr.bf16.mxu0 %v1972
        %3440 = vmatpush1.bf16.msra.mxu0 %v1971
        %3441 = vmatprep.subr.bf16.mxu0 %v1984
        %3442 = vmatpush1.bf16.msra.mxu0 %v1983
        %3443 = vmatprep.subr.bf16.mxu0 %v1996
        %3444 = vmatpush1.bf16.msra.mxu0 %v1995
        %3445 = vmatprep.subr.bf16.mxu0 %v2008
        %3446 = vmatpush1.bf16.msra.mxu0 %v2007
        %3447 = vmatprep.subr.bf16.mxu0 %v2020
        %3448 = vmatpush1.bf16.msra.mxu0 %v2019
        %3449 = vmatprep.subr.bf16.mxu0 %v2032
        %3450 = vmatpush1.bf16.msra.mxu0 %v2031
        %3451 = vmatprep.subr.bf16.mxu0 %v2044
        %3452 = vmatpush1.bf16.msra.mxu0 %v2043
        %3453 = vmatprep.subr.bf16.mxu0 %v2056
        %3454 = vmatpush1.bf16.msra.mxu0 %v2055
        %3455 = vmatprep.subr.bf16.mxu0 %v2068
        %3456 = vmatpush1.bf16.msra.mxu0 %v2067
        %3457 = vmatprep.subr.bf16.mxu0 %v2080
        %3458 = vmatpush1.bf16.msra.mxu0 %v2079
        %3459 = vmatprep.subr.bf16.mxu0 %v2092
        %3460 = vmatpush1.bf16.msra.mxu0 %v2091
        %3461 = vmatprep.subr.bf16.mxu0 %v2104
        %3462 = vmatpush1.bf16.msra.mxu0 %v2103
        %3463 = vmatprep.subr.bf16.mxu0 %v2116
        %3464 = vmatpush1.bf16.msra.mxu0 %v2115
        %3465 = vmatprep.subr.bf16.mxu0 %v2128
        %3466 = vmatpush1.bf16.msra.mxu0 %v2127
        %3467 = vmatprep.mubr.bf16.mxu0 %v754
        %3468 = vmatmul.mubr.bf16.gmra.mrb[0].mxu0 %v753
        %v3469 = vpop.f32.mrb[0].mxu0
        %v3470 = vadd.f32 0.0, %v3469
        %v3471 = vpop.f32.mrb[0].mxu0
        %v3472 = vadd.f32 0.0, %v3471
        %v3473 = vpop.f32.mrb[0].mxu0
        %v3474 = vadd.f32 0.0, %v3473
        %v3475 = vpop.f32.mrb[0].mxu0
        %v3476 = vadd.f32 0.0, %v3475
        %3477 = vmatprep.mubr.bf16.mxu0 %v758
        %3478 = vmatmul.mubr.bf16.gmra.mrb[0].mxu0 %v757
        %v3479 = vpop.f32.mrb[0].mxu0
        %v3480 = vadd.f32 0.0, %v3479
        %v3481 = vpop.f32.mrb[0].mxu0
        %v3482 = vadd.f32 0.0, %v3481
        %v3483 = vpop.f32.mrb[0].mxu0
        %v3484 = vadd.f32 0.0, %v3483
        %v3485 = vpop.f32.mrb[0].mxu0
        %v3486 = vadd.f32 0.0, %v3485
        %3487 = vmatprep.mubr.bf16.mxu0 %v762
        %3488 = vmatmul.mubr.bf16.gmra.mrb[0].mxu0 %v761
        %v3489 = vpop.f32.mrb[0].mxu0
        %v3490 = vadd.f32 0.0, %v3489
        %v3491 = vpop.f32.mrb[0].mxu0
        %v3492 = vadd.f32 0.0, %v3491
        %v3493 = vpop.f32.mrb[0].mxu0
        %v3494 = vadd.f32 0.0, %v3493
        %v3495 = vpop.f32.mrb[0].mxu0
        %v3496 = vadd.f32 0.0, %v3495
        %3497 = vmatprep.mubr.bf16.mxu0 %v766
        %3498 = vmatmul.mubr.bf16.gmra.mrb[0].mxu0 %v765
        %v3499 = vpop.f32.mrb[0].mxu0
        %v3500 = vadd.f32 0.0, %v3499
        %v3501 = vpop.f32.mrb[0].mxu0
        %v3502 = vadd.f32 0.0, %v3501
        %v3503 = vpop.f32.mrb[0].mxu0
        %v3504 = vadd.f32 0.0, %v3503
        %v3505 = vpop.f32.mrb[0].mxu0
        %v3506 = vadd.f32 0.0, %v3505
        %3507 = vdwg.mxu0
        %3508 = vmatprep.subr.bf16.mxu0 %v2140
        %3509 = vmatpush1.bf16.msra.mxu0 %v2139
        %3510 = vmatprep.subr.bf16.mxu0 %v2152
        %3511 = vmatpush1.bf16.msra.mxu0 %v2151
        %3512 = vmatprep.subr.bf16.mxu0 %v2164
        %3513 = vmatpush1.bf16.msra.mxu0 %v2163
        %3514 = vmatprep.subr.bf16.mxu0 %v2176
        %3515 = vmatpush1.bf16.msra.mxu0 %v2175
        %3516 = vmatprep.subr.bf16.mxu0 %v2188
        %3517 = vmatpush1.bf16.msra.mxu0 %v2187
        %3518 = vmatprep.subr.bf16.mxu0 %v2200
        %3519 = vmatpush1.bf16.msra.mxu0 %v2199
        %3520 = vmatprep.subr.bf16.mxu0 %v2212
        %3521 = vmatpush1.bf16.msra.mxu0 %v2211
        %3522 = vmatprep.subr.bf16.mxu0 %v2224
        %3523 = vmatpush1.bf16.msra.mxu0 %v2223
        %3524 = vmatprep.subr.bf16.mxu0 %v2236
        %3525 = vmatpush1.bf16.msra.mxu0 %v2235
        %3526 = vmatprep.subr.bf16.mxu0 %v2248
        %3527 = vmatpush1.bf16.msra.mxu0 %v2247
        %3528 = vmatprep.subr.bf16.mxu0 %v2260
        %3529 = vmatpush1.bf16.msra.mxu0 %v2259
        %3530 = vmatprep.subr.bf16.mxu0 %v2272
        %3531 = vmatpush1.bf16.msra.mxu0 %v2271
        %3532 = vmatprep.subr.bf16.mxu0 %v2284
        %3533 = vmatpush1.bf16.msra.mxu0 %v2283
        %3534 = vmatprep.subr.bf16.mxu0 %v2296
        %3535 = vmatpush1.bf16.msra.mxu0 %v2295
        %3536 = vmatprep.subr.bf16.mxu0 %v2308
        %3537 = vmatpush1.bf16.msra.mxu0 %v2307
        %3538 = vmatprep.subr.bf16.mxu0 %v2320
        %3539 = vmatpush1.bf16.msra.mxu0 %v2319
        %3540 = vmatprep.mubr.bf16.mxu0 %v756
        %3541 = vmatmul.mubr.bf16.gmra.mrb[0].mxu0 %v755
        %v3542 = vpop.f32.mrb[0].mxu0
        %v3543 = vadd.f32 %v3470, %v3542
        %v3544 = vpop.f32.mrb[0].mxu0
        %v3545 = vadd.f32 %v3472, %v3544
        %v3546 = vpop.f32.mrb[0].mxu0
        %v3547 = vadd.f32 %v3474, %v3546
        %v3548 = vpop.f32.mrb[0].mxu0
        %v3549 = vadd.f32 %v3476, %v3548
        %3550 = vmatprep.mubr.bf16.mxu0 %v760
        %3551 = vmatmul.mubr.bf16.gmra.mrb[0].mxu0 %v759
        %v3552 = vpop.f32.mrb[0].mxu0
        %v3553 = vadd.f32 %v3480, %v3552
        %v3554 = vpop.f32.mrb[0].mxu0
        %v3555 = vadd.f32 %v3482, %v3554
        %v3556 = vpop.f32.mrb[0].mxu0
        %v3557 = vadd.f32 %v3484, %v3556
        %v3558 = vpop.f32.mrb[0].mxu0
        %v3559 = vadd.f32 %v3486, %v3558
        %3560 = vmatprep.mubr.bf16.mxu0 %v764
        %3561 = vmatmul.mubr.bf16.gmra.mrb[0].mxu0 %v763
        %v3562 = vpop.f32.mrb[0].mxu0
        %v3563 = vadd.f32 %v3490, %v3562
        %v3564 = vpop.f32.mrb[0].mxu0
        %v3565 = vadd.f32 %v3492, %v3564
        %v3566 = vpop.f32.mrb[0].mxu0
        %v3567 = vadd.f32 %v3494, %v3566
        %v3568 = vpop.f32.mrb[0].mxu0
        %v3569 = vadd.f32 %v3496, %v3568
        %3570 = vmatprep.mubr.bf16.mxu0 %v768
        %3571 = vmatmul.mubr.bf16.gmra.mrb[0].mxu0 %v767
        %v3572 = vpop.f32.mrb[0].mxu0
        %v3573 = vadd.f32 %v3500, %v3572
        %v3574 = vpop.f32.mrb[0].mxu0
        %v3575 = vadd.f32 %v3502, %v3574
        %v3576 = vpop.f32.mrb[0].mxu0
        %v3577 = vadd.f32 %v3504, %v3576
        %v3578 = vpop.f32.mrb[0].mxu0
        %v3579 = vadd.f32 %v3506, %v3578
        %3580 = vdwg.mxu0
        %v3581 = vld [vmem:[%s2] sm:$0xff]
        %v3582 = vld [vmem:[%s2 + $0x8] sm:$0xff]
        %v3583 = vld [vmem:[%s2 + $0x10] sm:$0xff]
        %v3584 = vld [vmem:[%s2 + $0x18] sm:$0xff]
        %v3585 = vld [vmem:[%s2 + $0x20] sm:$0xff]
        %v3586 = vld [vmem:[%s2 + $0x28] sm:$0xff]
        %v3587 = vld [vmem:[%s2 + $0x30] sm:$0xff]
        %v3588 = vld [vmem:[%s2 + $0x38] sm:$0xff]
        %v3589 = vadd.f32 %v3105, %v3581
        %v3590 = vadd.f32 %v3109, %v3582
        %v3591 = vadd.f32 %v3115, %v3583
        %v3592 = vadd.f32 %v3119, %v3584
        %v3593 = vadd.f32 %v3125, %v3585
        %v3594 = vadd.f32 %v3129, %v3586
        %v3595 = vadd.f32 %v3135, %v3587
        %v3596 = vadd.f32 %v3139, %v3588
        %v3597 = vadd.f32 %v3107, %v3581
        %v3598 = vadd.f32 %v3111, %v3582
        %v3599 = vadd.f32 %v3117, %v3583
        %v3600 = vadd.f32 %v3121, %v3584
        %v3601 = vadd.f32 %v3127, %v3585
        %v3602 = vadd.f32 %v3131, %v3586
        %v3603 = vadd.f32 %v3137, %v3587
        %v3604 = vadd.f32 %v3141, %v3588
        %v3605 = vadd.f32 %v3251, %v3581
        %v3606 = vadd.f32 %v3255, %v3582
        %v3607 = vadd.f32 %v3261, %v3583
        %v3608 = vadd.f32 %v3265, %v3584
        %v3609 = vadd.f32 %v3271, %v3585
        %v3610 = vadd.f32 %v3275, %v3586
        %v3611 = vadd.f32 %v3281, %v3587
        %v3612 = vadd.f32 %v3285, %v3588
        %v3613 = vadd.f32 %v3253, %v3581
        %v3614 = vadd.f32 %v3257, %v3582
        %v3615 = vadd.f32 %v3263, %v3583
        %v3616 = vadd.f32 %v3267, %v3584
        %v3617 = vadd.f32 %v3273, %v3585
        %v3618 = vadd.f32 %v3277, %v3586
        %v3619 = vadd.f32 %v3283, %v3587
        %v3620 = vadd.f32 %v3287, %v3588
        %v3621 = vpack.c.bf16 %v3590, %v3589
        %v3622 = vpack.c.bf16 %v3592, %v3591
        %v3623 = vpack.c.bf16 %v3594, %v3593
        %v3624 = vpack.c.bf16 %v3596, %v3595
        %v3625 = vpack.c.bf16 %v3598, %v3597
        %v3626 = vpack.c.bf16 %v3600, %v3599
        %v3627 = vpack.c.bf16 %v3602, %v3601
        %v3628 = vpack.c.bf16 %v3604, %v3603
        %v3629 = vpack.c.bf16 %v3606, %v3605
        %v3630 = vpack.c.bf16 %v3608, %v3607
        %v3631 = vpack.c.bf16 %v3610, %v3609
        %v3632 = vpack.c.bf16 %v3612, %v3611
        %v3633 = vpack.c.bf16 %v3614, %v3613
        %v3634 = vpack.c.bf16 %v3616, %v3615
        %v3635 = vpack.c.bf16 %v3618, %v3617
        %v3636 = vpack.c.bf16 %v3620, %v3619
        %v3637 = vpack.c.bf16 %v2817, %v2813
        %v3638 = vpack.c.bf16 %v2827, %v2823
        %v3639 = vpack.c.bf16 %v2837, %v2833
        %v3640 = vpack.c.bf16 %v2847, %v2843
        %v3641 = vpack.c.bf16 %v2819, %v2815
        %v3642 = vpack.c.bf16 %v2829, %v2825
        %v3643 = vpack.c.bf16 %v2839, %v2835
        %v3644 = vpack.c.bf16 %v2849, %v2845
        %v3645 = vpack.c.bf16 %v2963, %v2959
        %v3646 = vpack.c.bf16 %v2973, %v2969
        %v3647 = vpack.c.bf16 %v2983, %v2979
        %v3648 = vpack.c.bf16 %v2993, %v2989
        %v3649 = vpack.c.bf16 %v2965, %v2961
        %v3650 = vpack.c.bf16 %v2975, %v2971
        %v3651 = vpack.c.bf16 %v2985, %v2981
        %v3652 = vpack.c.bf16 %v2995, %v2991
        %3653 = vmatprep.subr.bf16.mxu0 0
        %3654 = vmatpush1.bf16.xpose.msra.mxu0 %v3621
        %3655 = vmatprep.subr.bf16.mxu0 0
        %3656 = vmatpush1.bf16.xpose.msra.mxu0 %v3622
        %3657 = vmatprep.subr.bf16.mxu0 0
        %3658 = vmatpush1.bf16.xpose.msra.mxu0 %v3623
        %3659 = vmatprep.subr.bf16.mxu0 0
        %3660 = vmatpush1.bf16.xpose.msra.mxu0 %v3624
        %3661 = vmatprep.subr.bf16.mxu0 0
        %3662 = vmatpush1.bf16.xpose.msra.mxu0 0
        %3663 = vmatprep.subr.bf16.mxu0 0
        %3664 = vmatpush1.bf16.xpose.msra.mxu0 0
        %3665 = vmatprep.subr.bf16.mxu0 0
        %3666 = vmatpush1.bf16.xpose.msra.mxu0 0
        %3667 = vmatprep.subr.bf16.mxu0 0
        %3668 = vmatpush1.bf16.xpose.msra.mxu0 0
        %3669 = vmatprep.subr.bf16.mxu0 0
        %3670 = vmatpush1.bf16.xpose.msra.mxu0 0
        %3671 = vmatprep.subr.bf16.mxu0 0
        %3672 = vmatpush1.bf16.xpose.msra.mxu0 0
        %3673 = vmatprep.subr.bf16.mxu0 0
        %3674 = vmatpush1.bf16.xpose.msra.mxu0 0
        %3675 = vmatprep.subr.bf16.mxu0 0
        %3676 = vmatpush1.bf16.xpose.msra.mxu0 0
        %3677 = vmatprep.subr.bf16.mxu0 0
        %3678 = vmatpush1.bf16.xpose.msra.mxu0 0
        %3679 = vmatprep.subr.bf16.mxu0 0
        %3680 = vmatpush1.bf16.xpose.msra.mxu0 0
        %3681 = vmatprep.subr.bf16.mxu0 0
        %3682 = vmatpush1.bf16.xpose.msra.mxu0 0
        %3683 = vmatprep.subr.bf16.mxu0 0
        %3684 = vmatpush1.bf16.xpose.msra.mxu0 0
        %3685 = vmatprep.mubr.bf16.mxu0 0
        %3686 = vmatmul.mubr.bf16.gmra.mrb[0].mxu0 %v3637
        %v3687 = vpop.f32.mrb[0].mxu0
        %v3688 = vadd.f32 0.0, %v3687
        %v3689 = vpop.f32.mrb[0].mxu0
        %v3690 = vpop.f32.mrb[0].mxu0
        %v3691 = vadd.f32 0.0, %v3690
        %v3692 = vpop.f32.mrb[0].mxu0
        %3693 = vmatprep.mubr.bf16.mxu0 0
        %3694 = vmatmul.mubr.bf16.gmra.mrb[0].mxu0 %v3638
        %v3695 = vpop.f32.mrb[0].mxu0
        %v3696 = vadd.f32 0.0, %v3695
        %v3697 = vpop.f32.mrb[0].mxu0
        %v3698 = vpop.f32.mrb[0].mxu0
        %v3699 = vadd.f32 0.0, %v3698
        %v3700 = vpop.f32.mrb[0].mxu0
        %3701 = vmatprep.mubr.bf16.mxu0 0
        %3702 = vmatmul.mubr.bf16.gmra.mrb[0].mxu0 %v3639
        %v3703 = vpop.f32.mrb[0].mxu0
        %v3704 = vadd.f32 0.0, %v3703
        %v3705 = vpop.f32.mrb[0].mxu0
        %v3706 = vpop.f32.mrb[0].mxu0
        %v3707 = vadd.f32 0.0, %v3706
        %v3708 = vpop.f32.mrb[0].mxu0
        %3709 = vmatprep.mubr.bf16.mxu0 0
        %3710 = vmatmul.mubr.bf16.gmra.mrb[0].mxu0 %v3640
        %v3711 = vpop.f32.mrb[0].mxu0
        %v3712 = vadd.f32 0.0, %v3711
        %v3713 = vpop.f32.mrb[0].mxu0
        %v3714 = vpop.f32.mrb[0].mxu0
        %v3715 = vadd.f32 0.0, %v3714
        %v3716 = vpop.f32.mrb[0].mxu0
        %3717 = vdwg.mxu0
        %3718 = vmatprep.subr.bf16.mxu0 0
        %3719 = vmatpush1.bf16.xpose.msra.mxu0 %v3625
        %3720 = vmatprep.subr.bf16.mxu0 0
        %3721 = vmatpush1.bf16.xpose.msra.mxu0 %v3626
        %3722 = vmatprep.subr.bf16.mxu0 0
        %3723 = vmatpush1.bf16.xpose.msra.mxu0 %v3627
        %3724 = vmatprep.subr.bf16.mxu0 0
        %3725 = vmatpush1.bf16.xpose.msra.mxu0 %v3628
        %3726 = vmatprep.subr.bf16.mxu0 0
        %3727 = vmatpush1.bf16.xpose.msra.mxu0 0
        %3728 = vmatprep.subr.bf16.mxu0 0
        %3729 = vmatpush1.bf16.xpose.msra.mxu0 0
        %3730 = vmatprep.subr.bf16.mxu0 0
        %3731 = vmatpush1.bf16.xpose.msra.mxu0 0
        %3732 = vmatprep.subr.bf16.mxu0 0
        %3733 = vmatpush1.bf16.xpose.msra.mxu0 0
        %3734 = vmatprep.subr.bf16.mxu0 0
        %3735 = vmatpush1.bf16.xpose.msra.mxu0 0
        %3736 = vmatprep.subr.bf16.mxu0 0
        %3737 = vmatpush1.bf16.xpose.msra.mxu0 0
        %3738 = vmatprep.subr.bf16.mxu0 0
        %3739 = vmatpush1.bf16.xpose.msra.mxu0 0
        %3740 = vmatprep.subr.bf16.mxu0 0
        %3741 = vmatpush1.bf16.xpose.msra.mxu0 0
        %3742 = vmatprep.subr.bf16.mxu0 0
        %3743 = vmatpush1.bf16.xpose.msra.mxu0 0
        %3744 = vmatprep.subr.bf16.mxu0 0
        %3745 = vmatpush1.bf16.xpose.msra.mxu0 0
        %3746 = vmatprep.subr.bf16.mxu0 0
        %3747 = vmatpush1.bf16.xpose.msra.mxu0 0
        %3748 = vmatprep.subr.bf16.mxu0 0
        %3749 = vmatpush1.bf16.xpose.msra.mxu0 0
        %3750 = vmatprep.mubr.bf16.mxu0 0
        %3751 = vmatmul.mubr.bf16.gmra.mrb[0].mxu0 %v3641
        %v3752 = vpop.f32.mrb[0].mxu0
        %v3753 = vadd.f32 0.0, %v3752
        %v3754 = vpop.f32.mrb[0].mxu0
        %v3755 = vpop.f32.mrb[0].mxu0
        %v3756 = vadd.f32 0.0, %v3755
        %v3757 = vpop.f32.mrb[0].mxu0
        %3758 = vmatprep.mubr.bf16.mxu0 0
        %3759 = vmatmul.mubr.bf16.gmra.mrb[0].mxu0 %v3642
        %v3760 = vpop.f32.mrb[0].mxu0
        %v3761 = vadd.f32 0.0, %v3760
        %v3762 = vpop.f32.mrb[0].mxu0
        %v3763 = vpop.f32.mrb[0].mxu0
        %v3764 = vadd.f32 0.0, %v3763
        %v3765 = vpop.f32.mrb[0].mxu0
        %3766 = vmatprep.mubr.bf16.mxu0 0
        %3767 = vmatmul.mubr.bf16.gmra.mrb[0].mxu0 %v3643
        %v3768 = vpop.f32.mrb[0].mxu0
        %v3769 = vadd.f32 0.0, %v3768
        %v3770 = vpop.f32.mrb[0].mxu0
        %v3771 = vpop.f32.mrb[0].mxu0
        %v3772 = vadd.f32 0.0, %v3771
        %v3773 = vpop.f32.mrb[0].mxu0
        %3774 = vmatprep.mubr.bf16.mxu0 0
        %3775 = vmatmul.mubr.bf16.gmra.mrb[0].mxu0 %v3644
        %v3776 = vpop.f32.mrb[0].mxu0
        %v3777 = vadd.f32 0.0, %v3776
        %v3778 = vpop.f32.mrb[0].mxu0
        %v3779 = vpop.f32.mrb[0].mxu0
        %v3780 = vadd.f32 0.0, %v3779
        %v3781 = vpop.f32.mrb[0].mxu0
        %3782 = vdwg.mxu0
        %3783 = vmatprep.subr.bf16.mxu0 0
        %3784 = vmatpush1.bf16.xpose.msra.mxu0 %v3629
        %3785 = vmatprep.subr.bf16.mxu0 0
        %3786 = vmatpush1.bf16.xpose.msra.mxu0 %v3630
        %3787 = vmatprep.subr.bf16.mxu0 0
        %3788 = vmatpush1.bf16.xpose.msra.mxu0 %v3631
        %3789 = vmatprep.subr.bf16.mxu0 0
        %3790 = vmatpush1.bf16.xpose.msra.mxu0 %v3632
        %3791 = vmatprep.subr.bf16.mxu0 0
        %3792 = vmatpush1.bf16.xpose.msra.mxu0 0
        %3793 = vmatprep.subr.bf16.mxu0 0
        %3794 = vmatpush1.bf16.xpose.msra.mxu0 0
        %3795 = vmatprep.subr.bf16.mxu0 0
        %3796 = vmatpush1.bf16.xpose.msra.mxu0 0
        %3797 = vmatprep.subr.bf16.mxu0 0
        %3798 = vmatpush1.bf16.xpose.msra.mxu0 0
        %3799 = vmatprep.subr.bf16.mxu0 0
        %3800 = vmatpush1.bf16.xpose.msra.mxu0 0
        %3801 = vmatprep.subr.bf16.mxu0 0
        %3802 = vmatpush1.bf16.xpose.msra.mxu0 0
        %3803 = vmatprep.subr.bf16.mxu0 0
        %3804 = vmatpush1.bf16.xpose.msra.mxu0 0
        %3805 = vmatprep.subr.bf16.mxu0 0
        %3806 = vmatpush1.bf16.xpose.msra.mxu0 0
        %3807 = vmatprep.subr.bf16.mxu0 0
        %3808 = vmatpush1.bf16.xpose.msra.mxu0 0
        %3809 = vmatprep.subr.bf16.mxu0 0
        %3810 = vmatpush1.bf16.xpose.msra.mxu0 0
        %3811 = vmatprep.subr.bf16.mxu0 0
        %3812 = vmatpush1.bf16.xpose.msra.mxu0 0
        %3813 = vmatprep.subr.bf16.mxu0 0
        %3814 = vmatpush1.bf16.xpose.msra.mxu0 0
        %3815 = vmatprep.mubr.bf16.mxu0 0
        %3816 = vmatmul.mubr.bf16.gmra.mrb[0].mxu0 %v3645
        %v3817 = vpop.f32.mrb[0].mxu0
        %v3818 = vadd.f32 0.0, %v3817
        %v3819 = vpop.f32.mrb[0].mxu0
        %v3820 = vpop.f32.mrb[0].mxu0
        %v3821 = vadd.f32 0.0, %v3820
        %v3822 = vpop.f32.mrb[0].mxu0
        %3823 = vmatprep.mubr.bf16.mxu0 0
        %3824 = vmatmul.mubr.bf16.gmra.mrb[0].mxu0 %v3646
        %v3825 = vpop.f32.mrb[0].mxu0
        %v3826 = vadd.f32 0.0, %v3825
        %v3827 = vpop.f32.mrb[0].mxu0
        %v3828 = vpop.f32.mrb[0].mxu0
        %v3829 = vadd.f32 0.0, %v3828
        %v3830 = vpop.f32.mrb[0].mxu0
        %3831 = vmatprep.mubr.bf16.mxu0 0
        %3832 = vmatmul.mubr.bf16.gmra.mrb[0].mxu0 %v3647
        %v3833 = vpop.f32.mrb[0].mxu0
        %v3834 = vadd.f32 0.0, %v3833
        %v3835 = vpop.f32.mrb[0].mxu0
        %v3836 = vpop.f32.mrb[0].mxu0
        %v3837 = vadd.f32 0.0, %v3836
        %v3838 = vpop.f32.mrb[0].mxu0
        %3839 = vmatprep.mubr.bf16.mxu0 0
        %3840 = vmatmul.mubr.bf16.gmra.mrb[0].mxu0 %v3648
        %v3841 = vpop.f32.mrb[0].mxu0
        %v3842 = vadd.f32 0.0, %v3841
        %v3843 = vpop.f32.mrb[0].mxu0
        %v3844 = vpop.f32.mrb[0].mxu0
        %v3845 = vadd.f32 0.0, %v3844
        %v3846 = vpop.f32.mrb[0].mxu0
        %3847 = vdwg.mxu0
        %3848 = vmatprep.subr.bf16.mxu0 0
        %3849 = vmatpush1.bf16.xpose.msra.mxu0 %v3633
        %3850 = vmatprep.subr.bf16.mxu0 0
        %3851 = vmatpush1.bf16.xpose.msra.mxu0 %v3634
        %3852 = vmatprep.subr.bf16.mxu0 0
        %3853 = vmatpush1.bf16.xpose.msra.mxu0 %v3635
        %3854 = vmatprep.subr.bf16.mxu0 0
        %3855 = vmatpush1.bf16.xpose.msra.mxu0 %v3636
        %3856 = vmatprep.subr.bf16.mxu0 0
        %3857 = vmatpush1.bf16.xpose.msra.mxu0 0
        %3858 = vmatprep.subr.bf16.mxu0 0
        %3859 = vmatpush1.bf16.xpose.msra.mxu0 0
        %3860 = vmatprep.subr.bf16.mxu0 0
        %3861 = vmatpush1.bf16.xpose.msra.mxu0 0
        %3862 = vmatprep.subr.bf16.mxu0 0
        %3863 = vmatpush1.bf16.xpose.msra.mxu0 0
        %3864 = vmatprep.subr.bf16.mxu0 0
        %3865 = vmatpush1.bf16.xpose.msra.mxu0 0
        %3866 = vmatprep.subr.bf16.mxu0 0
        %3867 = vmatpush1.bf16.xpose.msra.mxu0 0
        %3868 = vmatprep.subr.bf16.mxu0 0
        %3869 = vmatpush1.bf16.xpose.msra.mxu0 0
        %3870 = vmatprep.subr.bf16.mxu0 0
        %3871 = vmatpush1.bf16.xpose.msra.mxu0 0
        %3872 = vmatprep.subr.bf16.mxu0 0
        %3873 = vmatpush1.bf16.xpose.msra.mxu0 0
        %3874 = vmatprep.subr.bf16.mxu0 0
        %3875 = vmatpush1.bf16.xpose.msra.mxu0 0
        %3876 = vmatprep.subr.bf16.mxu0 0
        %3877 = vmatpush1.bf16.xpose.msra.mxu0 0
        %3878 = vmatprep.subr.bf16.mxu0 0
        %3879 = vmatpush1.bf16.xpose.msra.mxu0 0
        %3880 = vmatprep.mubr.bf16.mxu0 0
        %3881 = vmatmul.mubr.bf16.gmra.mrb[0].mxu0 %v3649
        %v3882 = vpop.f32.mrb[0].mxu0
        %v3883 = vadd.f32 0.0, %v3882
        %v3884 = vpop.f32.mrb[0].mxu0
        %v3885 = vpop.f32.mrb[0].mxu0
        %v3886 = vadd.f32 0.0, %v3885
        %v3887 = vpop.f32.mrb[0].mxu0
        %3888 = vmatprep.mubr.bf16.mxu0 0
        %3889 = vmatmul.mubr.bf16.gmra.mrb[0].mxu0 %v3650
        %v3890 = vpop.f32.mrb[0].mxu0
        %v3891 = vadd.f32 0.0, %v3890
        %v3892 = vpop.f32.mrb[0].mxu0
        %v3893 = vpop.f32.mrb[0].mxu0
        %v3894 = vadd.f32 0.0, %v3893
        %v3895 = vpop.f32.mrb[0].mxu0
        %3896 = vmatprep.mubr.bf16.mxu0 0
        %3897 = vmatmul.mubr.bf16.gmra.mrb[0].mxu0 %v3651
        %v3898 = vpop.f32.mrb[0].mxu0
        %v3899 = vadd.f32 0.0, %v3898
        %v3900 = vpop.f32.mrb[0].mxu0
        %v3901 = vpop.f32.mrb[0].mxu0
        %v3902 = vadd.f32 0.0, %v3901
        %v3903 = vpop.f32.mrb[0].mxu0
        %3904 = vmatprep.mubr.bf16.mxu0 0
        %3905 = vmatmul.mubr.bf16.gmra.mrb[0].mxu0 %v3652
        %v3906 = vpop.f32.mrb[0].mxu0
        %v3907 = vadd.f32 0.0, %v3906
        %v3908 = vpop.f32.mrb[0].mxu0
        %v3909 = vpop.f32.mrb[0].mxu0
        %v3910 = vadd.f32 0.0, %v3909
        %v3911 = vpop.f32.mrb[0].mxu0
        %3912 = vdwg.mxu0
        %vm3913 = vcmask 523264
        %v3914 = vsel %vm3913, %v3688, -inf
        %3915 = vmax.xlane.f32.xlu0 %v3914
        %v3916 = vpop.xlane.xlu0 %3915
        %v3917 = vsel %vm3913, %v3691, -inf
        %3918 = vmax.xlane.f32.xlu0 %v3917
        %v3919 = vpop.xlane.xlu0 %3918
        %v3920 = vsel %vm3913, %v3696, -inf
        %3921 = vmax.xlane.f32.xlu0 %v3920
        %v3922 = vpop.xlane.xlu0 %3921
        %v3923 = vsel %vm3913, %v3699, -inf
        %3924 = vmax.xlane.f32.xlu0 %v3923
        %v3925 = vpop.xlane.xlu0 %3924
        %v3926 = vsel %vm3913, %v3704, -inf
        %3927 = vmax.xlane.f32.xlu0 %v3926
        %v3928 = vpop.xlane.xlu0 %3927
        %v3929 = vsel %vm3913, %v3707, -inf
        %3930 = vmax.xlane.f32.xlu0 %v3929
        %v3931 = vpop.xlane.xlu0 %3930
        %v3932 = vsel %vm3913, %v3712, -inf
        %3933 = vmax.xlane.f32.xlu0 %v3932
        %v3934 = vpop.xlane.xlu0 %3933
        %v3935 = vsel %vm3913, %v3715, -inf
        %3936 = vmax.xlane.f32.xlu0 %v3935
        %v3937 = vpop.xlane.xlu0 %3936
        %v3938 = vsel %vm3913, %v3753, -inf
        %3939 = vmax.xlane.f32.xlu0 %v3938
        %v3940 = vpop.xlane.xlu0 %3939
        %v3941 = vsel %vm3913, %v3756, -inf
        %3942 = vmax.xlane.f32.xlu0 %v3941
        %v3943 = vpop.xlane.xlu0 %3942
        %v3944 = vsel %vm3913, %v3761, -inf
        %3945 = vmax.xlane.f32.xlu0 %v3944
        %v3946 = vpop.xlane.xlu0 %3945
        %v3947 = vsel %vm3913, %v3764, -inf
        %3948 = vmax.xlane.f32.xlu0 %v3947
        %v3949 = vpop.xlane.xlu0 %3948
        %v3950 = vsel %vm3913, %v3769, -inf
        %3951 = vmax.xlane.f32.xlu0 %v3950
        %v3952 = vpop.xlane.xlu0 %3951
        %v3953 = vsel %vm3913, %v3772, -inf
        %3954 = vmax.xlane.f32.xlu0 %v3953
        %v3955 = vpop.xlane.xlu0 %3954
        %v3956 = vsel %vm3913, %v3777, -inf
        %3957 = vmax.xlane.f32.xlu0 %v3956
        %v3958 = vpop.xlane.xlu0 %3957
        %v3959 = vsel %vm3913, %v3780, -inf
        %3960 = vmax.xlane.f32.xlu0 %v3959
        %v3961 = vpop.xlane.xlu0 %3960
        %v3962 = vsel %vm3913, %v3818, -inf
        %3963 = vmax.xlane.f32.xlu0 %v3962
        %v3964 = vpop.xlane.xlu0 %3963
        %v3965 = vsel %vm3913, %v3821, -inf
        %3966 = vmax.xlane.f32.xlu0 %v3965
        %v3967 = vpop.xlane.xlu0 %3966
        %v3968 = vsel %vm3913, %v3826, -inf
        %3969 = vmax.xlane.f32.xlu0 %v3968
        %v3970 = vpop.xlane.xlu0 %3969
        %v3971 = vsel %vm3913, %v3829, -inf
        %3972 = vmax.xlane.f32.xlu0 %v3971
        %v3973 = vpop.xlane.xlu0 %3972
        %v3974 = vsel %vm3913, %v3834, -inf
        %3975 = vmax.xlane.f32.xlu0 %v3974
        %v3976 = vpop.xlane.xlu0 %3975
        %v3977 = vsel %vm3913, %v3837, -inf
        %3978 = vmax.xlane.f32.xlu0 %v3977
        %v3979 = vpop.xlane.xlu0 %3978
        %v3980 = vsel %vm3913, %v3842, -inf
        %3981 = vmax.xlane.f32.xlu0 %v3980
        %v3982 = vpop.xlane.xlu0 %3981
        %v3983 = vsel %vm3913, %v3845, -inf
        %3984 = vmax.xlane.f32.xlu0 %v3983
        %v3985 = vpop.xlane.xlu0 %3984
        %v3986 = vsel %vm3913, %v3883, -inf
        %3987 = vmax.xlane.f32.xlu0 %v3986
        %v3988 = vpop.xlane.xlu0 %3987
        %v3989 = vsel %vm3913, %v3886, -inf
        %3990 = vmax.xlane.f32.xlu0 %v3989
        %v3991 = vpop.xlane.xlu0 %3990
        %v3992 = vsel %vm3913, %v3891, -inf
        %3993 = vmax.xlane.f32.xlu0 %v3992
        %v3994 = vpop.xlane.xlu0 %3993
        %v3995 = vsel %vm3913, %v3894, -inf
        %3996 = vmax.xlane.f32.xlu0 %v3995
        %v3997 = vpop.xlane.xlu0 %3996
        %v3998 = vsel %vm3913, %v3899, -inf
        %3999 = vmax.xlane.f32.xlu0 %v3998
        %v4000 = vpop.xlane.xlu0 %3999
        %v4001 = vsel %vm3913, %v3902, -inf
        %4002 = vmax.xlane.f32.xlu0 %v4001
        %v4003 = vpop.xlane.xlu0 %4002
        %v4004 = vsel %vm3913, %v3907, -inf
        %4005 = vmax.xlane.f32.xlu0 %v4004
        %v4006 = vpop.xlane.xlu0 %4005
        %v4007 = vsel %vm3913, %v3910, -inf
        %4008 = vmax.xlane.f32.xlu0 %v4007
        %v4009 = vpop.xlane.xlu0 %4008
        %v4010 = vsub.f32 %v3688, %v3916
        %v4011 = vsub.f32 %v3691, %v3919
        %v4012 = vsub.f32 %v3696, %v3922
        %v4013 = vsub.f32 %v3699, %v3925
        %v4014 = vsub.f32 %v3704, %v3928
        %v4015 = vsub.f32 %v3707, %v3931
        %v4016 = vsub.f32 %v3712, %v3934
        %v4017 = vsub.f32 %v3715, %v3937
        %v4018 = vsub.f32 %v3753, %v3940
        %v4019 = vsub.f32 %v3756, %v3943
        %v4020 = vsub.f32 %v3761, %v3946
        %v4021 = vsub.f32 %v3764, %v3949
        %v4022 = vsub.f32 %v3769, %v3952
        %v4023 = vsub.f32 %v3772, %v3955
        %v4024 = vsub.f32 %v3777, %v3958
        %v4025 = vsub.f32 %v3780, %v3961
        %v4026 = vsub.f32 %v3818, %v3964
        %v4027 = vsub.f32 %v3821, %v3967
        %v4028 = vsub.f32 %v3826, %v3970
        %v4029 = vsub.f32 %v3829, %v3973
        %v4030 = vsub.f32 %v3834, %v3976
        %v4031 = vsub.f32 %v3837, %v3979
        %v4032 = vsub.f32 %v3842, %v3982
        %v4033 = vsub.f32 %v3845, %v3985
        %v4034 = vsub.f32 %v3883, %v3988
        %v4035 = vsub.f32 %v3886, %v3991
        %v4036 = vsub.f32 %v3891, %v3994
        %v4037 = vsub.f32 %v3894, %v3997
        %v4038 = vsub.f32 %v3899, %v4000
        %v4039 = vsub.f32 %v3902, %v4003
        %v4040 = vsub.f32 %v3907, %v4006
        %v4041 = vsub.f32 %v3910, %v4009
        %v4042 = vmul.f32 %v4010, 1.442695
        %v4043 = vpow.pop %v4042
        %v4044 = vmul.f32 %v4011, 1.442695
        %v4045 = vpow.pop %v4044
        %v4046 = vmul.f32 %v4012, 1.442695
        %v4047 = vpow.pop %v4046
        %v4048 = vmul.f32 %v4013, 1.442695
        %v4049 = vpow.pop %v4048
        %v4050 = vmul.f32 %v4014, 1.442695
        %v4051 = vpow.pop %v4050
        %v4052 = vmul.f32 %v4015, 1.442695
        %v4053 = vpow.pop %v4052
        %v4054 = vmul.f32 %v4016, 1.442695
        %v4055 = vpow.pop %v4054
        %v4056 = vmul.f32 %v4017, 1.442695
        %v4057 = vpow.pop %v4056
        %v4058 = vmul.f32 %v4018, 1.442695
        %v4059 = vpow.pop %v4058
        %v4060 = vmul.f32 %v4019, 1.442695
        %v4061 = vpow.pop %v4060
        %v4062 = vmul.f32 %v4020, 1.442695
        %v4063 = vpow.pop %v4062
        %v4064 = vmul.f32 %v4021, 1.442695
        %v4065 = vpow.pop %v4064
        %v4066 = vmul.f32 %v4022, 1.442695
        %v4067 = vpow.pop %v4066
        %v4068 = vmul.f32 %v4023, 1.442695
        %v4069 = vpow.pop %v4068
        %v4070 = vmul.f32 %v4024, 1.442695
        %v4071 = vpow.pop %v4070
        %v4072 = vmul.f32 %v4025, 1.442695
        %v4073 = vpow.pop %v4072
        %v4074 = vmul.f32 %v4026, 1.442695
        %v4075 = vpow.pop %v4074
        %v4076 = vmul.f32 %v4027, 1.442695
        %v4077 = vpow.pop %v4076
        %v4078 = vmul.f32 %v4028, 1.442695
        %v4079 = vpow.pop %v4078
        %v4080 = vmul.f32 %v4029, 1.442695
        %v4081 = vpow.pop %v4080
        %v4082 = vmul.f32 %v4030, 1.442695
        %v4083 = vpow.pop %v4082
        %v4084 = vmul.f32 %v4031, 1.442695
        %v4085 = vpow.pop %v4084
        %v4086 = vmul.f32 %v4032, 1.442695
        %v4087 = vpow.pop %v4086
        %v4088 = vmul.f32 %v4033, 1.442695
        %v4089 = vpow.pop %v4088
        %v4090 = vmul.f32 %v4034, 1.442695
        %v4091 = vpow.pop %v4090
        %v4092 = vmul.f32 %v4035, 1.442695
        %v4093 = vpow.pop %v4092
        %v4094 = vmul.f32 %v4036, 1.442695
        %v4095 = vpow.pop %v4094
        %v4096 = vmul.f32 %v4037, 1.442695
        %v4097 = vpow.pop %v4096
        %v4098 = vmul.f32 %v4038, 1.442695
        %v4099 = vpow.pop %v4098
        %v4100 = vmul.f32 %v4039, 1.442695
        %v4101 = vpow.pop %v4100
        %v4102 = vmul.f32 %v4040, 1.442695
        %v4103 = vpow.pop %v4102
        %v4104 = vmul.f32 %v4041, 1.442695
        %v4105 = vpow.pop %v4104
        %v4106 = vsel %vm3913, %v4043, 0.0
        %4107 = vadd.xlane.f32.xlu0 %v4106
        %v4108 = vpop.xlane.xlu0 %4107
        %v4109 = vsel %vm3913, %v4045, 0.0
        %4110 = vadd.xlane.f32.xlu0 %v4109
        %v4111 = vpop.xlane.xlu0 %4110
        %v4112 = vsel %vm3913, %v4047, 0.0
        %4113 = vadd.xlane.f32.xlu0 %v4112
        %v4114 = vpop.xlane.xlu0 %4113
        %v4115 = vsel %vm3913, %v4049, 0.0
        %4116 = vadd.xlane.f32.xlu0 %v4115
        %v4117 = vpop.xlane.xlu0 %4116
        %v4118 = vsel %vm3913, %v4051, 0.0
        %4119 = vadd.xlane.f32.xlu0 %v4118
        %v4120 = vpop.xlane.xlu0 %4119
        %v4121 = vsel %vm3913, %v4053, 0.0
        %4122 = vadd.xlane.f32.xlu0 %v4121
        %v4123 = vpop.xlane.xlu0 %4122
        %v4124 = vsel %vm3913, %v4055, 0.0
        %4125 = vadd.xlane.f32.xlu0 %v4124
        %v4126 = vpop.xlane.xlu0 %4125
        %v4127 = vsel %vm3913, %v4057, 0.0
        %4128 = vadd.xlane.f32.xlu0 %v4127
        %v4129 = vpop.xlane.xlu0 %4128
        %v4130 = vsel %vm3913, %v4059, 0.0
        %4131 = vadd.xlane.f32.xlu0 %v4130
        %v4132 = vpop.xlane.xlu0 %4131
        %v4133 = vsel %vm3913, %v4061, 0.0
        %4134 = vadd.xlane.f32.xlu0 %v4133
        %v4135 = vpop.xlane.xlu0 %4134
        %v4136 = vsel %vm3913, %v4063, 0.0
        %4137 = vadd.xlane.f32.xlu0 %v4136
        %v4138 = vpop.xlane.xlu0 %4137
        %v4139 = vsel %vm3913, %v4065, 0.0
        %4140 = vadd.xlane.f32.xlu0 %v4139
        %v4141 = vpop.xlane.xlu0 %4140
        %v4142 = vsel %vm3913, %v4067, 0.0
        %4143 = vadd.xlane.f32.xlu0 %v4142
        %v4144 = vpop.xlane.xlu0 %4143
        %v4145 = vsel %vm3913, %v4069, 0.0
        %4146 = vadd.xlane.f32.xlu0 %v4145
        %v4147 = vpop.xlane.xlu0 %4146
        %v4148 = vsel %vm3913, %v4071, 0.0
        %4149 = vadd.xlane.f32.xlu0 %v4148
        %v4150 = vpop.xlane.xlu0 %4149
        %v4151 = vsel %vm3913, %v4073, 0.0
        %4152 = vadd.xlane.f32.xlu0 %v4151
        %v4153 = vpop.xlane.xlu0 %4152
        %v4154 = vsel %vm3913, %v4075, 0.0
        %4155 = vadd.xlane.f32.xlu0 %v4154
        %v4156 = vpop.xlane.xlu0 %4155
        %v4157 = vsel %vm3913, %v4077, 0.0
        %4158 = vadd.xlane.f32.xlu0 %v4157
        %v4159 = vpop.xlane.xlu0 %4158
        %v4160 = vsel %vm3913, %v4079, 0.0
        %4161 = vadd.xlane.f32.xlu0 %v4160
        %v4162 = vpop.xlane.xlu0 %4161
        %v4163 = vsel %vm3913, %v4081, 0.0
        %4164 = vadd.xlane.f32.xlu0 %v4163
        %v4165 = vpop.xlane.xlu0 %4164
        %v4166 = vsel %vm3913, %v4083, 0.0
        %4167 = vadd.xlane.f32.xlu0 %v4166
        %v4168 = vpop.xlane.xlu0 %4167
        %v4169 = vsel %vm3913, %v4085, 0.0
        %4170 = vadd.xlane.f32.xlu0 %v4169
        %v4171 = vpop.xlane.xlu0 %4170
        %v4172 = vsel %vm3913, %v4087, 0.0
        %4173 = vadd.xlane.f32.xlu0 %v4172
        %v4174 = vpop.xlane.xlu0 %4173
        %v4175 = vsel %vm3913, %v4089, 0.0
        %4176 = vadd.xlane.f32.xlu0 %v4175
        %v4177 = vpop.xlane.xlu0 %4176
        %v4178 = vsel %vm3913, %v4091, 0.0
        %4179 = vadd.xlane.f32.xlu0 %v4178
        %v4180 = vpop.xlane.xlu0 %4179
        %v4181 = vsel %vm3913, %v4093, 0.0
        %4182 = vadd.xlane.f32.xlu0 %v4181
        %v4183 = vpop.xlane.xlu0 %4182
        %v4184 = vsel %vm3913, %v4095, 0.0
        %4185 = vadd.xlane.f32.xlu0 %v4184
        %v4186 = vpop.xlane.xlu0 %4185
        %v4187 = vsel %vm3913, %v4097, 0.0
        %4188 = vadd.xlane.f32.xlu0 %v4187
        %v4189 = vpop.xlane.xlu0 %4188
        %v4190 = vsel %vm3913, %v4099, 0.0
        %4191 = vadd.xlane.f32.xlu0 %v4190
        %v4192 = vpop.xlane.xlu0 %4191
        %v4193 = vsel %vm3913, %v4101, 0.0
        %4194 = vadd.xlane.f32.xlu0 %v4193
        %v4195 = vpop.xlane.xlu0 %4194
        %v4196 = vsel %vm3913, %v4103, 0.0
        %4197 = vadd.xlane.f32.xlu0 %v4196
        %v4198 = vpop.xlane.xlu0 %4197
        %v4199 = vsel %vm3913, %v4105, 0.0
        %4200 = vadd.xlane.f32.xlu0 %v4199
        %v4201 = vpop.xlane.xlu0 %4200
        %v4202 = vpack.c.bf16 %v4045, %v4043
        %v4203 = vpack.c.bf16 %v4049, %v4047
        %v4204 = vpack.c.bf16 %v4053, %v4051
        %v4205 = vpack.c.bf16 %v4057, %v4055
        %v4206 = vpack.c.bf16 %v4061, %v4059
        %v4207 = vpack.c.bf16 %v4065, %v4063
        %v4208 = vpack.c.bf16 %v4069, %v4067
        %v4209 = vpack.c.bf16 %v4073, %v4071
        %v4210 = vpack.c.bf16 %v4077, %v4075
        %v4211 = vpack.c.bf16 %v4081, %v4079
        %v4212 = vpack.c.bf16 %v4085, %v4083
        %v4213 = vpack.c.bf16 %v4089, %v4087
        %v4214 = vpack.c.bf16 %v4093, %v4091
        %v4215 = vpack.c.bf16 %v4097, %v4095
        %v4216 = vpack.c.bf16 %v4101, %v4099
        %v4217 = vpack.c.bf16 %v4105, %v4103
        %v4218 = vpack.c.bf16 %v3401, %v3397
        %v4219 = vpack.c.bf16 %v3411, %v3407
        %v4220 = vpack.c.bf16 %v3421, %v3417
        %v4221 = vpack.c.bf16 %v3431, %v3427
        %v4222 = vpack.c.bf16 %v3403, %v3399
        %v4223 = vpack.c.bf16 %v3413, %v3409
        %v4224 = vpack.c.bf16 %v3423, %v3419
        %v4225 = vpack.c.bf16 %v3433, %v3429
        %v4226 = vpack.c.bf16 %v3547, %v3543
        %v4227 = vpack.c.bf16 %v3557, %v3553
        %v4228 = vpack.c.bf16 %v3567, %v3563
        %v4229 = vpack.c.bf16 %v3577, %v3573
        %v4230 = vpack.c.bf16 %v3549, %v3545
        %v4231 = vpack.c.bf16 %v3559, %v3555
        %v4232 = vpack.c.bf16 %v3569, %v3565
        %v4233 = vpack.c.bf16 %v3579, %v3575
        %v4235 = vsel %vm3913, %v4202, 0
        %v4238 = vsel %vm3913, %v4203, 0
        %v4241 = vsel %vm3913, %v4204, 0
        %v4244 = vsel %vm3913, %v4205, 0
        %4246 = vmatprep.subr.bf16.mxu0 0
        %4247 = vmatpush1.bf16.msra.mxu0 %v4218
        %4248 = vmatprep.subr.bf16.mxu0 0
        %4249 = vmatpush1.bf16.msra.mxu0 %v4219
        %4250 = vmatprep.subr.bf16.mxu0 0
        %4251 = vmatpush1.bf16.msra.mxu0 %v4220
        %4252 = vmatprep.subr.bf16.mxu0 0
        %4253 = vmatpush1.bf16.msra.mxu0 %v4221
        %4254 = vmatprep.subr.bf16.mxu0 0
        %4255 = vmatpush1.bf16.msra.mxu0 0
        %4256 = vmatprep.subr.bf16.mxu0 0
        %4257 = vmatpush1.bf16.msra.mxu0 0
        %4258 = vmatprep.subr.bf16.mxu0 0
        %4259 = vmatpush1.bf16.msra.mxu0 0
        %4260 = vmatprep.subr.bf16.mxu0 0
        %4261 = vmatpush1.bf16.msra.mxu0 0
        %4262 = vmatprep.subr.bf16.mxu0 0
        %4263 = vmatpush1.bf16.msra.mxu0 0
        %4264 = vmatprep.subr.bf16.mxu0 0
        %4265 = vmatpush1.bf16.msra.mxu0 0
        %4266 = vmatprep.subr.bf16.mxu0 0
        %4267 = vmatpush1.bf16.msra.mxu0 0
        %4268 = vmatprep.subr.bf16.mxu0 0
        %4269 = vmatpush1.bf16.msra.mxu0 0
        %4270 = vmatprep.subr.bf16.mxu0 0
        %4271 = vmatpush1.bf16.msra.mxu0 0
        %4272 = vmatprep.subr.bf16.mxu0 0
        %4273 = vmatpush1.bf16.msra.mxu0 0
        %4274 = vmatprep.subr.bf16.mxu0 0
        %4275 = vmatpush1.bf16.msra.mxu0 0
        %4276 = vmatprep.subr.bf16.mxu0 0
        %4277 = vmatpush1.bf16.msra.mxu0 0
        %4278 = vmatprep.mubr.bf16.mxu0 0
        %4279 = vmatmul.mubr.bf16.gmra.mrb[0].mxu0 %v4235
        %v4280 = vpop.f32.mrb[0].mxu0
        %v4281 = vadd.f32 0.0, %v4280
        %v4282 = vpop.f32.mrb[0].mxu0
        %v4283 = vpop.f32.mrb[0].mxu0
        %v4284 = vadd.f32 0.0, %v4283
        %v4285 = vpop.f32.mrb[0].mxu0
        %4286 = vmatprep.mubr.bf16.mxu0 0
        %4287 = vmatmul.mubr.bf16.gmra.mrb[0].mxu0 %v4238
        %v4288 = vpop.f32.mrb[0].mxu0
        %v4289 = vadd.f32 0.0, %v4288
        %v4290 = vpop.f32.mrb[0].mxu0
        %v4291 = vpop.f32.mrb[0].mxu0
        %v4292 = vadd.f32 0.0, %v4291
        %v4293 = vpop.f32.mrb[0].mxu0
        %4294 = vmatprep.mubr.bf16.mxu0 0
        %4295 = vmatmul.mubr.bf16.gmra.mrb[0].mxu0 %v4241
        %v4296 = vpop.f32.mrb[0].mxu0
        %v4297 = vadd.f32 0.0, %v4296
        %v4298 = vpop.f32.mrb[0].mxu0
        %v4299 = vpop.f32.mrb[0].mxu0
        %v4300 = vadd.f32 0.0, %v4299
        %v4301 = vpop.f32.mrb[0].mxu0
        %4302 = vmatprep.mubr.bf16.mxu0 0
        %4303 = vmatmul.mubr.bf16.gmra.mrb[0].mxu0 %v4244
        %v4304 = vpop.f32.mrb[0].mxu0
        %v4305 = vadd.f32 0.0, %v4304
        %v4306 = vpop.f32.mrb[0].mxu0
        %v4307 = vpop.f32.mrb[0].mxu0
        %v4308 = vadd.f32 0.0, %v4307
        %v4309 = vpop.f32.mrb[0].mxu0
        %4310 = vdwg.mxu0
        %v4312 = vsel %vm3913, %v4206, 0
        %v4315 = vsel %vm3913, %v4207, 0
        %v4318 = vsel %vm3913, %v4208, 0
        %v4321 = vsel %vm3913, %v4209, 0
        %4323 = vmatprep.subr.bf16.mxu0 0
        %4324 = vmatpush1.bf16.msra.mxu0 %v4222
        %4325 = vmatprep.subr.bf16.mxu0 0
        %4326 = vmatpush1.bf16.msra.mxu0 %v4223
        %4327 = vmatprep.subr.bf16.mxu0 0
        %4328 = vmatpush1.bf16.msra.mxu0 %v4224
        %4329 = vmatprep.subr.bf16.mxu0 0
        %4330 = vmatpush1.bf16.msra.mxu0 %v4225
        %4331 = vmatprep.subr.bf16.mxu0 0
        %4332 = vmatpush1.bf16.msra.mxu0 0
        %4333 = vmatprep.subr.bf16.mxu0 0
        %4334 = vmatpush1.bf16.msra.mxu0 0
        %4335 = vmatprep.subr.bf16.mxu0 0
        %4336 = vmatpush1.bf16.msra.mxu0 0
        %4337 = vmatprep.subr.bf16.mxu0 0
        %4338 = vmatpush1.bf16.msra.mxu0 0
        %4339 = vmatprep.subr.bf16.mxu0 0
        %4340 = vmatpush1.bf16.msra.mxu0 0
        %4341 = vmatprep.subr.bf16.mxu0 0
        %4342 = vmatpush1.bf16.msra.mxu0 0
        %4343 = vmatprep.subr.bf16.mxu0 0
        %4344 = vmatpush1.bf16.msra.mxu0 0
        %4345 = vmatprep.subr.bf16.mxu0 0
        %4346 = vmatpush1.bf16.msra.mxu0 0
        %4347 = vmatprep.subr.bf16.mxu0 0
        %4348 = vmatpush1.bf16.msra.mxu0 0
        %4349 = vmatprep.subr.bf16.mxu0 0
        %4350 = vmatpush1.bf16.msra.mxu0 0
        %4351 = vmatprep.subr.bf16.mxu0 0
        %4352 = vmatpush1.bf16.msra.mxu0 0
        %4353 = vmatprep.subr.bf16.mxu0 0
        %4354 = vmatpush1.bf16.msra.mxu0 0
        %4355 = vmatprep.mubr.bf16.mxu0 0
        %4356 = vmatmul.mubr.bf16.gmra.mrb[0].mxu0 %v4312
        %v4357 = vpop.f32.mrb[0].mxu0
        %v4358 = vadd.f32 0.0, %v4357
        %v4359 = vpop.f32.mrb[0].mxu0
        %v4360 = vpop.f32.mrb[0].mxu0
        %v4361 = vadd.f32 0.0, %v4360
        %v4362 = vpop.f32.mrb[0].mxu0
        %4363 = vmatprep.mubr.bf16.mxu0 0
        %4364 = vmatmul.mubr.bf16.gmra.mrb[0].mxu0 %v4315
        %v4365 = vpop.f32.mrb[0].mxu0
        %v4366 = vadd.f32 0.0, %v4365
        %v4367 = vpop.f32.mrb[0].mxu0
        %v4368 = vpop.f32.mrb[0].mxu0
        %v4369 = vadd.f32 0.0, %v4368
        %v4370 = vpop.f32.mrb[0].mxu0
        %4371 = vmatprep.mubr.bf16.mxu0 0
        %4372 = vmatmul.mubr.bf16.gmra.mrb[0].mxu0 %v4318
        %v4373 = vpop.f32.mrb[0].mxu0
        %v4374 = vadd.f32 0.0, %v4373
        %v4375 = vpop.f32.mrb[0].mxu0
        %v4376 = vpop.f32.mrb[0].mxu0
        %v4377 = vadd.f32 0.0, %v4376
        %v4378 = vpop.f32.mrb[0].mxu0
        %4379 = vmatprep.mubr.bf16.mxu0 0
        %4380 = vmatmul.mubr.bf16.gmra.mrb[0].mxu0 %v4321
        %v4381 = vpop.f32.mrb[0].mxu0
        %v4382 = vadd.f32 0.0, %v4381
        %v4383 = vpop.f32.mrb[0].mxu0
        %v4384 = vpop.f32.mrb[0].mxu0
        %v4385 = vadd.f32 0.0, %v4384
        %v4386 = vpop.f32.mrb[0].mxu0
        %4387 = vdwg.mxu0
        %v4389 = vsel %vm3913, %v4210, 0
        %v4392 = vsel %vm3913, %v4211, 0
        %v4395 = vsel %vm3913, %v4212, 0
        %v4398 = vsel %vm3913, %v4213, 0
        %4400 = vmatprep.subr.bf16.mxu0 0
        %4401 = vmatpush1.bf16.msra.mxu0 %v4226
        %4402 = vmatprep.subr.bf16.mxu0 0
        %4403 = vmatpush1.bf16.msra.mxu0 %v4227
        %4404 = vmatprep.subr.bf16.mxu0 0
        %4405 = vmatpush1.bf16.msra.mxu0 %v4228
        %4406 = vmatprep.subr.bf16.mxu0 0
        %4407 = vmatpush1.bf16.msra.mxu0 %v4229
        %4408 = vmatprep.subr.bf16.mxu0 0
        %4409 = vmatpush1.bf16.msra.mxu0 0
        %4410 = vmatprep.subr.bf16.mxu0 0
        %4411 = vmatpush1.bf16.msra.mxu0 0
        %4412 = vmatprep.subr.bf16.mxu0 0
        %4413 = vmatpush1.bf16.msra.mxu0 0
        %4414 = vmatprep.subr.bf16.mxu0 0
        %4415 = vmatpush1.bf16.msra.mxu0 0
        %4416 = vmatprep.subr.bf16.mxu0 0
        %4417 = vmatpush1.bf16.msra.mxu0 0
        %4418 = vmatprep.subr.bf16.mxu0 0
        %4419 = vmatpush1.bf16.msra.mxu0 0
        %4420 = vmatprep.subr.bf16.mxu0 0
        %4421 = vmatpush1.bf16.msra.mxu0 0
        %4422 = vmatprep.subr.bf16.mxu0 0
        %4423 = vmatpush1.bf16.msra.mxu0 0
        %4424 = vmatprep.subr.bf16.mxu0 0
        %4425 = vmatpush1.bf16.msra.mxu0 0
        %4426 = vmatprep.subr.bf16.mxu0 0
        %4427 = vmatpush1.bf16.msra.mxu0 0
        %4428 = vmatprep.subr.bf16.mxu0 0
        %4429 = vmatpush1.bf16.msra.mxu0 0
        %4430 = vmatprep.subr.bf16.mxu0 0
        %4431 = vmatpush1.bf16.msra.mxu0 0
        %4432 = vmatprep.mubr.bf16.mxu0 0
        %4433 = vmatmul.mubr.bf16.gmra.mrb[0].mxu0 %v4389
        %v4434 = vpop.f32.mrb[0].mxu0
        %v4435 = vadd.f32 0.0, %v4434
        %v4436 = vpop.f32.mrb[0].mxu0
        %v4437 = vpop.f32.mrb[0].mxu0
        %v4438 = vadd.f32 0.0, %v4437
        %v4439 = vpop.f32.mrb[0].mxu0
        %4440 = vmatprep.mubr.bf16.mxu0 0
        %4441 = vmatmul.mubr.bf16.gmra.mrb[0].mxu0 %v4392
        %v4442 = vpop.f32.mrb[0].mxu0
        %v4443 = vadd.f32 0.0, %v4442
        %v4444 = vpop.f32.mrb[0].mxu0
        %v4445 = vpop.f32.mrb[0].mxu0
        %v4446 = vadd.f32 0.0, %v4445
        %v4447 = vpop.f32.mrb[0].mxu0
        %4448 = vmatprep.mubr.bf16.mxu0 0
        %4449 = vmatmul.mubr.bf16.gmra.mrb[0].mxu0 %v4395
        %v4450 = vpop.f32.mrb[0].mxu0
        %v4451 = vadd.f32 0.0, %v4450
        %v4452 = vpop.f32.mrb[0].mxu0
        %v4453 = vpop.f32.mrb[0].mxu0
        %v4454 = vadd.f32 0.0, %v4453
        %v4455 = vpop.f32.mrb[0].mxu0
        %4456 = vmatprep.mubr.bf16.mxu0 0
        %4457 = vmatmul.mubr.bf16.gmra.mrb[0].mxu0 %v4398
        %v4458 = vpop.f32.mrb[0].mxu0
        %v4459 = vadd.f32 0.0, %v4458
        %v4460 = vpop.f32.mrb[0].mxu0
        %v4461 = vpop.f32.mrb[0].mxu0
        %v4462 = vadd.f32 0.0, %v4461
        %v4463 = vpop.f32.mrb[0].mxu0
        %4464 = vdwg.mxu0
        %v4466 = vsel %vm3913, %v4214, 0
        %v4469 = vsel %vm3913, %v4215, 0
        %v4472 = vsel %vm3913, %v4216, 0
        %v4475 = vsel %vm3913, %v4217, 0
        %4477 = vmatprep.subr.bf16.mxu0 0
        %4478 = vmatpush1.bf16.msra.mxu0 %v4230
        %4479 = vmatprep.subr.bf16.mxu0 0
        %4480 = vmatpush1.bf16.msra.mxu0 %v4231
        %4481 = vmatprep.subr.bf16.mxu0 0
        %4482 = vmatpush1.bf16.msra.mxu0 %v4232
        %4483 = vmatprep.subr.bf16.mxu0 0
        %4484 = vmatpush1.bf16.msra.mxu0 %v4233
        %4485 = vmatprep.subr.bf16.mxu0 0
        %4486 = vmatpush1.bf16.msra.mxu0 0
        %4487 = vmatprep.subr.bf16.mxu0 0
        %4488 = vmatpush1.bf16.msra.mxu0 0
        %4489 = vmatprep.subr.bf16.mxu0 0
        %4490 = vmatpush1.bf16.msra.mxu0 0
        %4491 = vmatprep.subr.bf16.mxu0 0
        %4492 = vmatpush1.bf16.msra.mxu0 0
        %4493 = vmatprep.subr.bf16.mxu0 0
        %4494 = vmatpush1.bf16.msra.mxu0 0
        %4495 = vmatprep.subr.bf16.mxu0 0
        %4496 = vmatpush1.bf16.msra.mxu0 0
        %4497 = vmatprep.subr.bf16.mxu0 0
        %4498 = vmatpush1.bf16.msra.mxu0 0
        %4499 = vmatprep.subr.bf16.mxu0 0
        %4500 = vmatpush1.bf16.msra.mxu0 0
        %4501 = vmatprep.subr.bf16.mxu0 0
        %4502 = vmatpush1.bf16.msra.mxu0 0
        %4503 = vmatprep.subr.bf16.mxu0 0
        %4504 = vmatpush1.bf16.msra.mxu0 0
        %4505 = vmatprep.subr.bf16.mxu0 0
        %4506 = vmatpush1.bf16.msra.mxu0 0
        %4507 = vmatprep.subr.bf16.mxu0 0
        %4508 = vmatpush1.bf16.msra.mxu0 0
        %4509 = vmatprep.mubr.bf16.mxu0 0
        %4510 = vmatmul.mubr.bf16.gmra.mrb[0].mxu0 %v4466
        %v4511 = vpop.f32.mrb[0].mxu0
        %v4512 = vadd.f32 0.0, %v4511
        %v4513 = vpop.f32.mrb[0].mxu0
        %v4514 = vpop.f32.mrb[0].mxu0
        %v4515 = vadd.f32 0.0, %v4514
        %v4516 = vpop.f32.mrb[0].mxu0
        %4517 = vmatprep.mubr.bf16.mxu0 0
        %4518 = vmatmul.mubr.bf16.gmra.mrb[0].mxu0 %v4469
        %v4519 = vpop.f32.mrb[0].mxu0
        %v4520 = vadd.f32 0.0, %v4519
        %v4521 = vpop.f32.mrb[0].mxu0
        %v4522 = vpop.f32.mrb[0].mxu0
        %v4523 = vadd.f32 0.0, %v4522
        %v4524 = vpop.f32.mrb[0].mxu0
        %4525 = vmatprep.mubr.bf16.mxu0 0
        %4526 = vmatmul.mubr.bf16.gmra.mrb[0].mxu0 %v4472
        %v4527 = vpop.f32.mrb[0].mxu0
        %v4528 = vadd.f32 0.0, %v4527
        %v4529 = vpop.f32.mrb[0].mxu0
        %v4530 = vpop.f32.mrb[0].mxu0
        %v4531 = vadd.f32 0.0, %v4530
        %v4532 = vpop.f32.mrb[0].mxu0
        %4533 = vmatprep.mubr.bf16.mxu0 0
        %4534 = vmatmul.mubr.bf16.gmra.mrb[0].mxu0 %v4475
        %v4535 = vpop.f32.mrb[0].mxu0
        %v4536 = vadd.f32 0.0, %v4535
        %v4537 = vpop.f32.mrb[0].mxu0
        %v4538 = vpop.f32.mrb[0].mxu0
        %v4539 = vadd.f32 0.0, %v4538
        %v4540 = vpop.f32.mrb[0].mxu0
        %4541 = vdwg.mxu0
        %v4542 = vrcp.pop %v4108
        %v4543 = vrcp.pop %v4111
        %v4544 = vrcp.pop %v4114
        %v4545 = vrcp.pop %v4117
        %v4546 = vrcp.pop %v4120
        %v4547 = vrcp.pop %v4123
        %v4548 = vrcp.pop %v4126
        %v4549 = vrcp.pop %v4129
        %v4550 = vrcp.pop %v4132
        %v4551 = vrcp.pop %v4135
        %v4552 = vrcp.pop %v4138
        %v4553 = vrcp.pop %v4141
        %v4554 = vrcp.pop %v4144
        %v4555 = vrcp.pop %v4147
        %v4556 = vrcp.pop %v4150
        %v4557 = vrcp.pop %v4153
        %v4558 = vrcp.pop %v4156
        %v4559 = vrcp.pop %v4159
        %v4560 = vrcp.pop %v4162
        %v4561 = vrcp.pop %v4165
        %v4562 = vrcp.pop %v4168
        %v4563 = vrcp.pop %v4171
        %v4564 = vrcp.pop %v4174
        %v4565 = vrcp.pop %v4177
        %v4566 = vrcp.pop %v4180
        %v4567 = vrcp.pop %v4183
        %v4568 = vrcp.pop %v4186
        %v4569 = vrcp.pop %v4189
        %v4570 = vrcp.pop %v4192
        %v4571 = vrcp.pop %v4195
        %v4572 = vrcp.pop %v4198
        %v4573 = vrcp.pop %v4201
        %v4574 = vmul.f32 %v4281, %v4542
        %v4575 = vmul.f32 %v4284, %v4543
        %v4576 = vmul.f32 %v4289, %v4544
        %v4577 = vmul.f32 %v4292, %v4545
        %v4578 = vmul.f32 %v4297, %v4546
        %v4579 = vmul.f32 %v4300, %v4547
        %v4580 = vmul.f32 %v4305, %v4548
        %v4581 = vmul.f32 %v4308, %v4549
        %v4582 = vmul.f32 %v4358, %v4550
        %v4583 = vmul.f32 %v4361, %v4551
        %v4584 = vmul.f32 %v4366, %v4552
        %v4585 = vmul.f32 %v4369, %v4553
        %v4586 = vmul.f32 %v4374, %v4554
        %v4587 = vmul.f32 %v4377, %v4555
        %v4588 = vmul.f32 %v4382, %v4556
        %v4589 = vmul.f32 %v4385, %v4557
        %v4590 = vmul.f32 %v4435, %v4558
        %v4591 = vmul.f32 %v4438, %v4559
        %v4592 = vmul.f32 %v4443, %v4560
        %v4593 = vmul.f32 %v4446, %v4561
        %v4594 = vmul.f32 %v4451, %v4562
        %v4595 = vmul.f32 %v4454, %v4563
        %v4596 = vmul.f32 %v4459, %v4564
        %v4597 = vmul.f32 %v4462, %v4565
        %v4598 = vmul.f32 %v4512, %v4566
        %v4599 = vmul.f32 %v4515, %v4567
        %v4600 = vmul.f32 %v4520, %v4568
        %v4601 = vmul.f32 %v4523, %v4569
        %v4602 = vmul.f32 %v4528, %v4570
        %v4603 = vmul.f32 %v4531, %v4571
        %v4604 = vmul.f32 %v4536, %v4572
        %v4605 = vmul.f32 %v4539, %v4573
        %v4606 = vpack.c.bf16 %v4575, %v4574
        %v4607 = vpack.c.bf16 %v4577, %v4576
        %v4608 = vpack.c.bf16 %v4579, %v4578
        %v4609 = vpack.c.bf16 %v4581, %v4580
        %v4610 = vpack.c.bf16 %v4583, %v4582
        %v4611 = vpack.c.bf16 %v4585, %v4584
        %v4612 = vpack.c.bf16 %v4587, %v4586
        %v4613 = vpack.c.bf16 %v4589, %v4588
        %v4614 = vpack.c.bf16 %v4591, %v4590
        %v4615 = vpack.c.bf16 %v4593, %v4592
        %v4616 = vpack.c.bf16 %v4595, %v4594
        %v4617 = vpack.c.bf16 %v4597, %v4596
        %v4618 = vpack.c.bf16 %v4599, %v4598
        %v4619 = vpack.c.bf16 %v4601, %v4600
        %v4620 = vpack.c.bf16 %v4603, %v4602
        %v4621 = vpack.c.bf16 %v4605, %v4604
        %v4622 = vld [vmem:[%s3] sm:$0xf]
        %v4623 = vld [vmem:[%s3 + $0x4] sm:$0xf]
        %v4624 = vld [vmem:[%s3 + $0x8] sm:$0xf]
        %v4625 = vld [vmem:[%s3 + $0xc] sm:$0xf]
        %v4630 = vunpack.c.l.b16 %v4622
        %v4631 = vunpack.c.l.b16 %v4623
        %v4632 = vunpack.c.l.b16 %v4624
        %v4633 = vunpack.c.l.b16 %v4625
        %v4634 = vpack.c.b16 %v4631, %v4630
        %v4635 = vpack.c.b16 %v4633, %v4632
        %v4637 = vsel %vm3913, %v4634, 0
        %v4640 = vsel %vm3913, %v4635, 0
        %4642 = vmatprep.subr.bf16.mxu0 %v4610
        %4643 = vmatpush1.bf16.msra.mxu0 %v4606
        %4644 = vmatprep.subr.bf16.mxu0 %v4611
        %4645 = vmatpush1.bf16.msra.mxu0 %v4607
        %4646 = vmatprep.subr.bf16.mxu0 %v4612
        %4647 = vmatpush1.bf16.msra.mxu0 %v4608
        %4648 = vmatprep.subr.bf16.mxu0 %v4613
        %4649 = vmatpush1.bf16.msra.mxu0 %v4609
        %4650 = vmatprep.subr.bf16.mxu0 0
        %4651 = vmatpush1.bf16.msra.mxu0 0
        %4652 = vmatprep.subr.bf16.mxu0 0
        %4653 = vmatpush1.bf16.msra.mxu0 0
        %4654 = vmatprep.subr.bf16.mxu0 0
        %4655 = vmatpush1.bf16.msra.mxu0 0
        %4656 = vmatprep.subr.bf16.mxu0 0
        %4657 = vmatpush1.bf16.msra.mxu0 0
        %4658 = vmatprep.subr.bf16.mxu0 0
        %4659 = vmatpush1.bf16.msra.mxu0 0
        %4660 = vmatprep.subr.bf16.mxu0 0
        %4661 = vmatpush1.bf16.msra.mxu0 0
        %4662 = vmatprep.subr.bf16.mxu0 0
        %4663 = vmatpush1.bf16.msra.mxu0 0
        %4664 = vmatprep.subr.bf16.mxu0 0
        %4665 = vmatpush1.bf16.msra.mxu0 0
        %4666 = vmatprep.subr.bf16.mxu0 0
        %4667 = vmatpush1.bf16.msra.mxu0 0
        %4668 = vmatprep.subr.bf16.mxu0 0
        %4669 = vmatpush1.bf16.msra.mxu0 0
        %4670 = vmatprep.subr.bf16.mxu0 0
        %4671 = vmatpush1.bf16.msra.mxu0 0
        %4672 = vmatprep.subr.bf16.mxu0 0
        %4673 = vmatpush1.bf16.msra.mxu0 0
        %4674 = vmatprep.mubr.bf16.mxu0 0
        %4675 = vmatmul.mubr.bf16.gmra.mrb[0].mxu0 %v4637
        %v4676 = vpop.f32.mrb[0].mxu0
        %v4677 = vadd.f32 0.0, %v4676
        %v4678 = vpop.f32.mrb[0].mxu0
        %v4679 = vadd.f32 0.0, %v4678
        %v4680 = vpop.f32.mrb[0].mxu0
        %v4681 = vadd.f32 0.0, %v4680
        %v4682 = vpop.f32.mrb[0].mxu0
        %v4683 = vadd.f32 0.0, %v4682
        %4684 = vmatprep.mubr.bf16.mxu0 0
        %4685 = vmatmul.mubr.bf16.gmra.mrb[0].mxu0 %v4640
        %v4686 = vpop.f32.mrb[0].mxu0
        %v4687 = vadd.f32 0.0, %v4686
        %v4688 = vpop.f32.mrb[0].mxu0
        %v4689 = vadd.f32 0.0, %v4688
        %v4690 = vpop.f32.mrb[0].mxu0
        %v4691 = vadd.f32 0.0, %v4690
        %v4692 = vpop.f32.mrb[0].mxu0
        %v4693 = vadd.f32 0.0, %v4692
        %4694 = vdwg.mxu0
        %4695 = vmatprep.subr.bf16.mxu0 %v4618
        %4696 = vmatpush1.bf16.msra.mxu0 %v4614
        %4697 = vmatprep.subr.bf16.mxu0 %v4619
        %4698 = vmatpush1.bf16.msra.mxu0 %v4615
        %4699 = vmatprep.subr.bf16.mxu0 %v4620
        %4700 = vmatpush1.bf16.msra.mxu0 %v4616
        %4701 = vmatprep.subr.bf16.mxu0 %v4621
        %4702 = vmatpush1.bf16.msra.mxu0 %v4617
        %4703 = vmatprep.subr.bf16.mxu0 0
        %4704 = vmatpush1.bf16.msra.mxu0 0
        %4705 = vmatprep.subr.bf16.mxu0 0
        %4706 = vmatpush1.bf16.msra.mxu0 0
        %4707 = vmatprep.subr.bf16.mxu0 0
        %4708 = vmatpush1.bf16.msra.mxu0 0
        %4709 = vmatprep.subr.bf16.mxu0 0
        %4710 = vmatpush1.bf16.msra.mxu0 0
        %4711 = vmatprep.subr.bf16.mxu0 0
        %4712 = vmatpush1.bf16.msra.mxu0 0
        %4713 = vmatprep.subr.bf16.mxu0 0
        %4714 = vmatpush1.bf16.msra.mxu0 0
        %4715 = vmatprep.subr.bf16.mxu0 0
        %4716 = vmatpush1.bf16.msra.mxu0 0
        %4717 = vmatprep.subr.bf16.mxu0 0
        %4718 = vmatpush1.bf16.msra.mxu0 0
        %4719 = vmatprep.subr.bf16.mxu0 0
        %4720 = vmatpush1.bf16.msra.mxu0 0
        %4721 = vmatprep.subr.bf16.mxu0 0
        %4722 = vmatpush1.bf16.msra.mxu0 0
        %4723 = vmatprep.subr.bf16.mxu0 0
        %4724 = vmatpush1.bf16.msra.mxu0 0
        %4725 = vmatprep.subr.bf16.mxu0 0
        %4726 = vmatpush1.bf16.msra.mxu0 0
        %4727 = vmatprep.mubr.bf16.mxu0 0
        %4728 = vmatmul.mubr.bf16.gmra.mrb[0].mxu0 %v4637
        %v4729 = vpop.f32.mrb[0].mxu0
        %v4730 = vadd.f32 0.0, %v4729
        %v4731 = vpop.f32.mrb[0].mxu0
        %v4732 = vadd.f32 0.0, %v4731
        %v4733 = vpop.f32.mrb[0].mxu0
        %v4734 = vadd.f32 0.0, %v4733
        %v4735 = vpop.f32.mrb[0].mxu0
        %v4736 = vadd.f32 0.0, %v4735
        %4737 = vmatprep.mubr.bf16.mxu0 0
        %4738 = vmatmul.mubr.bf16.gmra.mrb[0].mxu0 %v4640
        %v4739 = vpop.f32.mrb[0].mxu0
        %v4740 = vadd.f32 0.0, %v4739
        %v4741 = vpop.f32.mrb[0].mxu0
        %v4742 = vadd.f32 0.0, %v4741
        %v4743 = vpop.f32.mrb[0].mxu0
        %v4744 = vadd.f32 0.0, %v4743
        %v4745 = vpop.f32.mrb[0].mxu0
        %v4746 = vadd.f32 0.0, %v4745
        %4747 = vdwg.mxu0
        %v4748 = vld [vmem:[%s4] sm:$0xf]
        %v4749 = vld [vmem:[%s4 + $0x4] sm:$0xf]
        %v4750 = vld [vmem:[%s4 + $0x8] sm:$0xf]
        %v4751 = vld [vmem:[%s4 + $0xc] sm:$0xf]
        %v4756 = vunpack.c.l.b16 %v4748
        %v4757 = vunpack.c.l.b16 %v4749
        %v4758 = vunpack.c.l.b16 %v4750
        %v4759 = vunpack.c.l.b16 %v4751
        %v4760 = vpack.c.b16 %v4757, %v4756
        %v4761 = vpack.c.b16 %v4759, %v4758
        %v4763 = vsel %vm3913, %v4760, 0
        %v4766 = vsel %vm3913, %v4761, 0
        %4768 = vmatprep.subr.bf16.mxu0 %v754
        %4769 = vmatpush1.bf16.msra.mxu0 %v753
        %4770 = vmatprep.subr.bf16.mxu0 %v758
        %4771 = vmatpush1.bf16.msra.mxu0 %v757
        %4772 = vmatprep.subr.bf16.mxu0 %v762
        %4773 = vmatpush1.bf16.msra.mxu0 %v761
        %4774 = vmatprep.subr.bf16.mxu0 %v766
        %4775 = vmatpush1.bf16.msra.mxu0 %v765
        %4776 = vmatprep.subr.bf16.mxu0 0
        %4777 = vmatpush1.bf16.msra.mxu0 0
        %4778 = vmatprep.subr.bf16.mxu0 0
        %4779 = vmatpush1.bf16.msra.mxu0 0
        %4780 = vmatprep.subr.bf16.mxu0 0
        %4781 = vmatpush1.bf16.msra.mxu0 0
        %4782 = vmatprep.subr.bf16.mxu0 0
        %4783 = vmatpush1.bf16.msra.mxu0 0
        %4784 = vmatprep.subr.bf16.mxu0 0
        %4785 = vmatpush1.bf16.msra.mxu0 0
        %4786 = vmatprep.subr.bf16.mxu0 0
        %4787 = vmatpush1.bf16.msra.mxu0 0
        %4788 = vmatprep.subr.bf16.mxu0 0
        %4789 = vmatpush1.bf16.msra.mxu0 0
        %4790 = vmatprep.subr.bf16.mxu0 0
        %4791 = vmatpush1.bf16.msra.mxu0 0
        %4792 = vmatprep.subr.bf16.mxu0 0
        %4793 = vmatpush1.bf16.msra.mxu0 0
        %4794 = vmatprep.subr.bf16.mxu0 0
        %4795 = vmatpush1.bf16.msra.mxu0 0
        %4796 = vmatprep.subr.bf16.mxu0 0
        %4797 = vmatpush1.bf16.msra.mxu0 0
        %4798 = vmatprep.subr.bf16.mxu0 0
        %4799 = vmatpush1.bf16.msra.mxu0 0
        %4800 = vmatprep.mubr.bf16.mxu0 0
        %4801 = vmatmul.mubr.bf16.gmra.mrb[0].mxu0 %v4763
        %v4802 = vpop.f32.mrb[0].mxu0
        %v4803 = vadd.f32 0.0, %v4802
        %v4804 = vpop.f32.mrb[0].mxu0
        %v4805 = vadd.f32 0.0, %v4804
        %v4806 = vpop.f32.mrb[0].mxu0
        %v4807 = vadd.f32 0.0, %v4806
        %v4808 = vpop.f32.mrb[0].mxu0
        %v4809 = vadd.f32 0.0, %v4808
        %4810 = vmatprep.mubr.bf16.mxu0 0
        %4811 = vmatmul.mubr.bf16.gmra.mrb[0].mxu0 %v4766
        %v4812 = vpop.f32.mrb[0].mxu0
        %v4813 = vadd.f32 0.0, %v4812
        %v4814 = vpop.f32.mrb[0].mxu0
        %v4815 = vadd.f32 0.0, %v4814
        %v4816 = vpop.f32.mrb[0].mxu0
        %v4817 = vadd.f32 0.0, %v4816
        %v4818 = vpop.f32.mrb[0].mxu0
        %v4819 = vadd.f32 0.0, %v4818
        %4820 = vdwg.mxu0
        %4821 = vmatprep.subr.bf16.mxu0 %v756
        %4822 = vmatpush1.bf16.msra.mxu0 %v755
        %4823 = vmatprep.subr.bf16.mxu0 %v760
        %4824 = vmatpush1.bf16.msra.mxu0 %v759
        %4825 = vmatprep.subr.bf16.mxu0 %v764
        %4826 = vmatpush1.bf16.msra.mxu0 %v763
        %4827 = vmatprep.subr.bf16.mxu0 %v768
        %4828 = vmatpush1.bf16.msra.mxu0 %v767
        %4829 = vmatprep.subr.bf16.mxu0 0
        %4830 = vmatpush1.bf16.msra.mxu0 0
        %4831 = vmatprep.subr.bf16.mxu0 0
        %4832 = vmatpush1.bf16.msra.mxu0 0
        %4833 = vmatprep.subr.bf16.mxu0 0
        %4834 = vmatpush1.bf16.msra.mxu0 0
        %4835 = vmatprep.subr.bf16.mxu0 0
        %4836 = vmatpush1.bf16.msra.mxu0 0
        %4837 = vmatprep.subr.bf16.mxu0 0
        %4838 = vmatpush1.bf16.msra.mxu0 0
        %4839 = vmatprep.subr.bf16.mxu0 0
        %4840 = vmatpush1.bf16.msra.mxu0 0
        %4841 = vmatprep.subr.bf16.mxu0 0
        %4842 = vmatpush1.bf16.msra.mxu0 0
        %4843 = vmatprep.subr.bf16.mxu0 0
        %4844 = vmatpush1.bf16.msra.mxu0 0
        %4845 = vmatprep.subr.bf16.mxu0 0
        %4846 = vmatpush1.bf16.msra.mxu0 0
        %4847 = vmatprep.subr.bf16.mxu0 0
        %4848 = vmatpush1.bf16.msra.mxu0 0
        %4849 = vmatprep.subr.bf16.mxu0 0
        %4850 = vmatpush1.bf16.msra.mxu0 0
        %4851 = vmatprep.subr.bf16.mxu0 0
        %4852 = vmatpush1.bf16.msra.mxu0 0
        %4853 = vmatprep.mubr.bf16.mxu0 0
        %4854 = vmatmul.mubr.bf16.gmra.mrb[0].mxu0 %v4763
        %v4855 = vpop.f32.mrb[0].mxu0
        %v4856 = vadd.f32 0.0, %v4855
        %v4857 = vpop.f32.mrb[0].mxu0
        %v4858 = vadd.f32 0.0, %v4857
        %v4859 = vpop.f32.mrb[0].mxu0
        %v4860 = vadd.f32 0.0, %v4859
        %v4861 = vpop.f32.mrb[0].mxu0
        %v4862 = vadd.f32 0.0, %v4861
        %4863 = vmatprep.mubr.bf16.mxu0 0
        %4864 = vmatmul.mubr.bf16.gmra.mrb[0].mxu0 %v4766
        %v4865 = vpop.f32.mrb[0].mxu0
        %v4866 = vadd.f32 0.0, %v4865
        %v4867 = vpop.f32.mrb[0].mxu0
        %v4868 = vadd.f32 0.0, %v4867
        %v4869 = vpop.f32.mrb[0].mxu0
        %v4870 = vadd.f32 0.0, %v4869
        %v4871 = vpop.f32.mrb[0].mxu0
        %v4872 = vadd.f32 0.0, %v4871
        %4873 = vdwg.mxu0
        %v4874 = vld [vmem:[%s5] sm:$0xff]
        %v4875 = vld [vmem:[%s5 + $0x8] sm:$0xff]
        %v4876 = vld [vmem:[%s5 + $0x10] sm:$0xff]
        %v4877 = vld [vmem:[%s5 + $0x18] sm:$0xff]
        %v4878 = vld [vmem:[%s5 + $0x20] sm:$0xff]
        %v4879 = vld [vmem:[%s5 + $0x28] sm:$0xff]
        %v4880 = vld [vmem:[%s5 + $0x30] sm:$0xff]
        %v4881 = vld [vmem:[%s5 + $0x38] sm:$0xff]
        %4883 = vset.pattern.permute.xlu0 0
        %4884 = vperm.xlu0 %4883, %v4874
        %v4885 = vpop.permute.xlu0 %4884
        %4888 = vset.pattern.permute.xlu0 0
        %4889 = vperm.xlu0 %4888, %v4875
        %v4890 = vpop.permute.xlu0 %4889
        %4893 = vset.pattern.permute.xlu0 0
        %4894 = vperm.xlu0 %4893, %v4876
        %v4895 = vpop.permute.xlu0 %4894
        %4898 = vset.pattern.permute.xlu0 0
        %4899 = vperm.xlu0 %4898, %v4877
        %v4900 = vpop.permute.xlu0 %4899
        %4903 = vset.pattern.permute.xlu0 0
        %4904 = vperm.xlu0 %4903, %v4878
        %v4905 = vpop.permute.xlu0 %4904
        %4908 = vset.pattern.permute.xlu0 0
        %4909 = vperm.xlu0 %4908, %v4879
        %v4910 = vpop.permute.xlu0 %4909
        %4913 = vset.pattern.permute.xlu0 0
        %4914 = vperm.xlu0 %4913, %v4880
        %v4915 = vpop.permute.xlu0 %4914
        %4918 = vset.pattern.permute.xlu0 0
        %4919 = vperm.xlu0 %4918, %v4881
        %v4920 = vpop.permute.xlu0 %4919
        %v4922 = vadd.f32 %v4677, %v4885
        %v4923 = vadd.f32 %v4679, %v4885
        %v4924 = vadd.f32 %v4730, %v4885
        %v4925 = vadd.f32 %v4732, %v4885
        %v4926 = vadd.f32 %v4681, %v4890
        %v4927 = vadd.f32 %v4683, %v4890
        %v4928 = vadd.f32 %v4734, %v4890
        %v4929 = vadd.f32 %v4736, %v4890
        %v4930 = vadd.f32 %v4687, %v4895
        %v4931 = vadd.f32 %v4689, %v4895
        %v4932 = vadd.f32 %v4740, %v4895
        %v4933 = vadd.f32 %v4742, %v4895
        %v4934 = vadd.f32 %v4691, %v4900
        %v4935 = vadd.f32 %v4693, %v4900
        %v4936 = vadd.f32 %v4744, %v4900
        %v4937 = vadd.f32 %v4746, %v4900
        %v4938 = vadd.f32 %v4803, %v4905
        %v4939 = vadd.f32 %v4805, %v4905
        %v4940 = vadd.f32 %v4856, %v4905
        %v4941 = vadd.f32 %v4858, %v4905
        %v4942 = vadd.f32 %v4807, %v4910
        %v4943 = vadd.f32 %v4809, %v4910
        %v4944 = vadd.f32 %v4860, %v4910
        %v4945 = vadd.f32 %v4862, %v4910
        %v4946 = vadd.f32 %v4813, %v4915
        %v4947 = vadd.f32 %v4815, %v4915
        %v4948 = vadd.f32 %v4866, %v4915
        %v4949 = vadd.f32 %v4868, %v4915
        %v4950 = vadd.f32 %v4817, %v4920
        %v4951 = vadd.f32 %v4819, %v4920
        %v4952 = vadd.f32 %v4870, %v4920
        %v4953 = vadd.f32 %v4872, %v4920
        %v4954 = vmul.f32 %v4922, 0.5
        %v4955 = vmul.f32 %v4923, 0.5
        %v4956 = vmul.f32 %v4924, 0.5
        %v4957 = vmul.f32 %v4925, 0.5
        %v4958 = vmul.f32 %v4926, 0.5
        %v4959 = vmul.f32 %v4927, 0.5
        %v4960 = vmul.f32 %v4928, 0.5
        %v4961 = vmul.f32 %v4929, 0.5
        %v4962 = vmul.f32 %v4930, 0.5
        %v4963 = vmul.f32 %v4931, 0.5
        %v4964 = vmul.f32 %v4932, 0.5
        %v4965 = vmul.f32 %v4933, 0.5
        %v4966 = vmul.f32 %v4934, 0.5
        %v4967 = vmul.f32 %v4935, 0.5
        %v4968 = vmul.f32 %v4936, 0.5
        %v4969 = vmul.f32 %v4937, 0.5
        %v4970 = vmul.f32 %v4938, 0.5
        %v4971 = vmul.f32 %v4939, 0.5
        %v4972 = vmul.f32 %v4940, 0.5
        %v4973 = vmul.f32 %v4941, 0.5
        %v4974 = vmul.f32 %v4942, 0.5
        %v4975 = vmul.f32 %v4943, 0.5
        %v4976 = vmul.f32 %v4944, 0.5
        %v4977 = vmul.f32 %v4945, 0.5
        %v4978 = vmul.f32 %v4946, 0.5
        %v4979 = vmul.f32 %v4947, 0.5
        %v4980 = vmul.f32 %v4948, 0.5
        %v4981 = vmul.f32 %v4949, 0.5
        %v4982 = vmul.f32 %v4950, 0.5
        %v4983 = vmul.f32 %v4951, 0.5
        %v4984 = vmul.f32 %v4952, 0.5
        %v4985 = vmul.f32 %v4953, 0.5
        %v4986 = vmul.f32 %v4922, 0.044715
        %v4987 = vmul.f32 %v4923, 0.044715
        %v4988 = vmul.f32 %v4924, 0.044715
        %v4989 = vmul.f32 %v4925, 0.044715
        %v4990 = vmul.f32 %v4926, 0.044715
        %v4991 = vmul.f32 %v4927, 0.044715
        %v4992 = vmul.f32 %v4928, 0.044715
        %v4993 = vmul.f32 %v4929, 0.044715
        %v4994 = vmul.f32 %v4930, 0.044715
        %v4995 = vmul.f32 %v4931, 0.044715
        %v4996 = vmul.f32 %v4932, 0.044715
        %v4997 = vmul.f32 %v4933, 0.044715
        %v4998 = vmul.f32 %v4934, 0.044715
        %v4999 = vmul.f32 %v4935, 0.044715
        %v5000 = vmul.f32 %v4936, 0.044715
        %v5001 = vmul.f32 %v4937, 0.044715
        %v5002 = vmul.f32 %v4938, 0.044715
        %v5003 = vmul.f32 %v4939, 0.044715
        %v5004 = vmul.f32 %v4940, 0.044715
        %v5005 = vmul.f32 %v4941, 0.044715
        %v5006 = vmul.f32 %v4942, 0.044715
        %v5007 = vmul.f32 %v4943, 0.044715
        %v5008 = vmul.f32 %v4944, 0.044715
        %v5009 = vmul.f32 %v4945, 0.044715
        %v5010 = vmul.f32 %v4946, 0.044715
        %v5011 = vmul.f32 %v4947, 0.044715
        %v5012 = vmul.f32 %v4948, 0.044715
        %v5013 = vmul.f32 %v4949, 0.044715
        %v5014 = vmul.f32 %v4950, 0.044715
        %v5015 = vmul.f32 %v4951, 0.044715
        %v5016 = vmul.f32 %v4952, 0.044715
        %v5017 = vmul.f32 %v4953, 0.044715
        %v5018 = vmul.f32 %v4986, %v4922
        %v5019 = vmul.f32 %v4987, %v4923
        %v5020 = vmul.f32 %v4988, %v4924
        %v5021 = vmul.f32 %v4989, %v4925
        %v5022 = vmul.f32 %v4990, %v4926
        %v5023 = vmul.f32 %v4991, %v4927
        %v5024 = vmul.f32 %v4992, %v4928
        %v5025 = vmul.f32 %v4993, %v4929
        %v5026 = vmul.f32 %v4994, %v4930
        %v5027 = vmul.f32 %v4995, %v4931
        %v5028 = vmul.f32 %v4996, %v4932
        %v5029 = vmul.f32 %v4997, %v4933
        %v5030 = vmul.f32 %v4998, %v4934
        %v5031 = vmul.f32 %v4999, %v4935
        %v5032 = vmul.f32 %v5000, %v4936
        %v5033 = vmul.f32 %v5001, %v4937
        %v5034 = vmul.f32 %v5002, %v4938
        %v5035 = vmul.f32 %v5003, %v4939
        %v5036 = vmul.f32 %v5004, %v4940
        %v5037 = vmul.f32 %v5005, %v4941
        %v5038 = vmul.f32 %v5006, %v4942
        %v5039 = vmul.f32 %v5007, %v4943
        %v5040 = vmul.f32 %v5008, %v4944
        %v5041 = vmul.f32 %v5009, %v4945
        %v5042 = vmul.f32 %v5010, %v4946
        %v5043 = vmul.f32 %v5011, %v4947
        %v5044 = vmul.f32 %v5012, %v4948
        %v5045 = vmul.f32 %v5013, %v4949
        %v5046 = vmul.f32 %v5014, %v4950
        %v5047 = vmul.f32 %v5015, %v4951
        %v5048 = vmul.f32 %v5016, %v4952
        %v5049 = vmul.f32 %v5017, %v4953
        %v5050 = vmul.f32 %v5018, %v4922
        %v5051 = vmul.f32 %v5019, %v4923
        %v5052 = vmul.f32 %v5020, %v4924
        %v5053 = vmul.f32 %v5021, %v4925
        %v5054 = vmul.f32 %v5022, %v4926
        %v5055 = vmul.f32 %v5023, %v4927
        %v5056 = vmul.f32 %v5024, %v4928
        %v5057 = vmul.f32 %v5025, %v4929
        %v5058 = vmul.f32 %v5026, %v4930
        %v5059 = vmul.f32 %v5027, %v4931
        %v5060 = vmul.f32 %v5028, %v4932
        %v5061 = vmul.f32 %v5029, %v4933
        %v5062 = vmul.f32 %v5030, %v4934
        %v5063 = vmul.f32 %v5031, %v4935
        %v5064 = vmul.f32 %v5032, %v4936
        %v5065 = vmul.f32 %v5033, %v4937
        %v5066 = vmul.f32 %v5034, %v4938
        %v5067 = vmul.f32 %v5035, %v4939
        %v5068 = vmul.f32 %v5036, %v4940
        %v5069 = vmul.f32 %v5037, %v4941
        %v5070 = vmul.f32 %v5038, %v4942
        %v5071 = vmul.f32 %v5039, %v4943
        %v5072 = vmul.f32 %v5040, %v4944
        %v5073 = vmul.f32 %v5041, %v4945
        %v5074 = vmul.f32 %v5042, %v4946
        %v5075 = vmul.f32 %v5043, %v4947
        %v5076 = vmul.f32 %v5044, %v4948
        %v5077 = vmul.f32 %v5045, %v4949
        %v5078 = vmul.f32 %v5046, %v4950
        %v5079 = vmul.f32 %v5047, %v4951
        %v5080 = vmul.f32 %v5048, %v4952
        %v5081 = vmul.f32 %v5049, %v4953
        %v5082 = vadd.f32 %v4922, %v5050
        %v5083 = vadd.f32 %v4923, %v5051
        %v5084 = vadd.f32 %v4924, %v5052
        %v5085 = vadd.f32 %v4925, %v5053
        %v5086 = vadd.f32 %v4926, %v5054
        %v5087 = vadd.f32 %v4927, %v5055
        %v5088 = vadd.f32 %v4928, %v5056
        %v5089 = vadd.f32 %v4929, %v5057
        %v5090 = vadd.f32 %v4930, %v5058
        %v5091 = vadd.f32 %v4931, %v5059
        %v5092 = vadd.f32 %v4932, %v5060
        %v5093 = vadd.f32 %v4933, %v5061
        %v5094 = vadd.f32 %v4934, %v5062
        %v5095 = vadd.f32 %v4935, %v5063
        %v5096 = vadd.f32 %v4936, %v5064
        %v5097 = vadd.f32 %v4937, %v5065
        %v5098 = vadd.f32 %v4938, %v5066
        %v5099 = vadd.f32 %v4939, %v5067
        %v5100 = vadd.f32 %v4940, %v5068
        %v5101 = vadd.f32 %v4941, %v5069
        %v5102 = vadd.f32 %v4942, %v5070
        %v5103 = vadd.f32 %v4943, %v5071
        %v5104 = vadd.f32 %v4944, %v5072
        %v5105 = vadd.f32 %v4945, %v5073
        %v5106 = vadd.f32 %v4946, %v5074
        %v5107 = vadd.f32 %v4947, %v5075
        %v5108 = vadd.f32 %v4948, %v5076
        %v5109 = vadd.f32 %v4949, %v5077
        %v5110 = vadd.f32 %v4950, %v5078
        %v5111 = vadd.f32 %v4951, %v5079
        %v5112 = vadd.f32 %v4952, %v5080
        %v5113 = vadd.f32 %v4953, %v5081
        %v5114 = vmul.f32 %v5082, 0.7978846
        %v5115 = vmul.f32 %v5083, 0.7978846
        %v5116 = vmul.f32 %v5084, 0.7978846
        %v5117 = vmul.f32 %v5085, 0.7978846
        %v5118 = vmul.f32 %v5086, 0.7978846
        %v5119 = vmul.f32 %v5087, 0.7978846
        %v5120 = vmul.f32 %v5088, 0.7978846
        %v5121 = vmul.f32 %v5089, 0.7978846
        %v5122 = vmul.f32 %v5090, 0.7978846
        %v5123 = vmul.f32 %v5091, 0.7978846
        %v5124 = vmul.f32 %v5092, 0.7978846
        %v5125 = vmul.f32 %v5093, 0.7978846
        %v5126 = vmul.f32 %v5094, 0.7978846
        %v5127 = vmul.f32 %v5095, 0.7978846
        %v5128 = vmul.f32 %v5096, 0.7978846
        %v5129 = vmul.f32 %v5097, 0.7978846
        %v5130 = vmul.f32 %v5098, 0.7978846
        %v5131 = vmul.f32 %v5099, 0.7978846
        %v5132 = vmul.f32 %v5100, 0.7978846
        %v5133 = vmul.f32 %v5101, 0.7978846
        %v5134 = vmul.f32 %v5102, 0.7978846
        %v5135 = vmul.f32 %v5103, 0.7978846
        %v5136 = vmul.f32 %v5104, 0.7978846
        %v5137 = vmul.f32 %v5105, 0.7978846
        %v5138 = vmul.f32 %v5106, 0.7978846
        %v5139 = vmul.f32 %v5107, 0.7978846
        %v5140 = vmul.f32 %v5108, 0.7978846
        %v5141 = vmul.f32 %v5109, 0.7978846
        %v5142 = vmul.f32 %v5110, 0.7978846
        %v5143 = vmul.f32 %v5111, 0.7978846
        %v5144 = vmul.f32 %v5112, 0.7978846
        %v5145 = vmul.f32 %v5113, 0.7978846
        %v5146 = vtanh.pop %v5114
        %v5147 = vtanh.pop %v5115
        %v5148 = vtanh.pop %v5116
        %v5149 = vtanh.pop %v5117
        %v5150 = vtanh.pop %v5118
        %v5151 = vtanh.pop %v5119
        %v5152 = vtanh.pop %v5120
        %v5153 = vtanh.pop %v5121
        %v5154 = vtanh.pop %v5122
        %v5155 = vtanh.pop %v5123
        %v5156 = vtanh.pop %v5124
        %v5157 = vtanh.pop %v5125
        %v5158 = vtanh.pop %v5126
        %v5159 = vtanh.pop %v5127
        %v5160 = vtanh.pop %v5128
        %v5161 = vtanh.pop %v5129
        %v5162 = vtanh.pop %v5130
        %v5163 = vtanh.pop %v5131
        %v5164 = vtanh.pop %v5132
        %v5165 = vtanh.pop %v5133
        %v5166 = vtanh.pop %v5134
        %v5167 = vtanh.pop %v5135
        %v5168 = vtanh.pop %v5136
        %v5169 = vtanh.pop %v5137
        %v5170 = vtanh.pop %v5138
        %v5171 = vtanh.pop %v5139
        %v5172 = vtanh.pop %v5140
        %v5173 = vtanh.pop %v5141
        %v5174 = vtanh.pop %v5142
        %v5175 = vtanh.pop %v5143
        %v5176 = vtanh.pop %v5144
        %v5177 = vtanh.pop %v5145
        %v5178 = vadd.f32 %v5146, 1.0
        %v5179 = vadd.f32 %v5147, 1.0
        %v5180 = vadd.f32 %v5148, 1.0
        %v5181 = vadd.f32 %v5149, 1.0
        %v5182 = vadd.f32 %v5150, 1.0
        %v5183 = vadd.f32 %v5151, 1.0
        %v5184 = vadd.f32 %v5152, 1.0
        %v5185 = vadd.f32 %v5153, 1.0
        %v5186 = vadd.f32 %v5154, 1.0
        %v5187 = vadd.f32 %v5155, 1.0
        %v5188 = vadd.f32 %v5156, 1.0
        %v5189 = vadd.f32 %v5157, 1.0
        %v5190 = vadd.f32 %v5158, 1.0
        %v5191 = vadd.f32 %v5159, 1.0
        %v5192 = vadd.f32 %v5160, 1.0
        %v5193 = vadd.f32 %v5161, 1.0
        %v5194 = vadd.f32 %v5162, 1.0
        %v5195 = vadd.f32 %v5163, 1.0
        %v5196 = vadd.f32 %v5164, 1.0
        %v5197 = vadd.f32 %v5165, 1.0
        %v5198 = vadd.f32 %v5166, 1.0
        %v5199 = vadd.f32 %v5167, 1.0
        %v5200 = vadd.f32 %v5168, 1.0
        %v5201 = vadd.f32 %v5169, 1.0
        %v5202 = vadd.f32 %v5170, 1.0
        %v5203 = vadd.f32 %v5171, 1.0
        %v5204 = vadd.f32 %v5172, 1.0
        %v5205 = vadd.f32 %v5173, 1.0
        %v5206 = vadd.f32 %v5174, 1.0
        %v5207 = vadd.f32 %v5175, 1.0
        %v5208 = vadd.f32 %v5176, 1.0
        %v5209 = vadd.f32 %v5177, 1.0
        %v5210 = vmul.f32 %v4954, %v5178
        %v5211 = vmul.f32 %v4955, %v5179
        %v5212 = vmul.f32 %v4956, %v5180
        %v5213 = vmul.f32 %v4957, %v5181
        %v5214 = vmul.f32 %v4958, %v5182
        %v5215 = vmul.f32 %v4959, %v5183
        %v5216 = vmul.f32 %v4960, %v5184
        %v5217 = vmul.f32 %v4961, %v5185
        %v5218 = vmul.f32 %v4962, %v5186
        %v5219 = vmul.f32 %v4963, %v5187
        %v5220 = vmul.f32 %v4964, %v5188
        %v5221 = vmul.f32 %v4965, %v5189
        %v5222 = vmul.f32 %v4966, %v5190
        %v5223 = vmul.f32 %v4967, %v5191
        %v5224 = vmul.f32 %v4968, %v5192
        %v5225 = vmul.f32 %v4969, %v5193
        %v5226 = vmul.f32 %v4970, %v5194
        %v5227 = vmul.f32 %v4971, %v5195
        %v5228 = vmul.f32 %v4972, %v5196
        %v5229 = vmul.f32 %v4973, %v5197
        %v5230 = vmul.f32 %v4974, %v5198
        %v5231 = vmul.f32 %v4975, %v5199
        %v5232 = vmul.f32 %v4976, %v5200
        %v5233 = vmul.f32 %v4977, %v5201
        %v5234 = vmul.f32 %v4978, %v5202
        %v5235 = vmul.f32 %v4979, %v5203
        %v5236 = vmul.f32 %v4980, %v5204
        %v5237 = vmul.f32 %v4981, %v5205
        %v5238 = vmul.f32 %v4982, %v5206
        %v5239 = vmul.f32 %v4983, %v5207
        %v5240 = vmul.f32 %v4984, %v5208
        %v5241 = vmul.f32 %v4985, %v5209
        %v5242 = vpack.c.bf16 %v5214, %v5210
        %v5243 = vpack.c.bf16 %v5215, %v5211
        %v5244 = vpack.c.bf16 %v5216, %v5212
        %v5245 = vpack.c.bf16 %v5217, %v5213
        %v5246 = vpack.c.bf16 %v5222, %v5218
        %v5247 = vpack.c.bf16 %v5223, %v5219
        %v5248 = vpack.c.bf16 %v5224, %v5220
        %v5249 = vpack.c.bf16 %v5225, %v5221
        %v5250 = vpack.c.bf16 %v5230, %v5226
        %v5251 = vpack.c.bf16 %v5231, %v5227
        %v5252 = vpack.c.bf16 %v5232, %v5228
        %v5253 = vpack.c.bf16 %v5233, %v5229
        %v5254 = vpack.c.bf16 %v5238, %v5234
        %v5255 = vpack.c.bf16 %v5239, %v5235
        %v5256 = vpack.c.bf16 %v5240, %v5236
        %v5257 = vpack.c.bf16 %v5241, %v5237
        %v5258 = vld [vmem:[%s6] sm:$0xf]
        %v5259 = vld [vmem:[%s6 + $0x4] sm:$0xf]
        %v5260 = vld [vmem:[%s6 + $0x8] sm:$0xf]
        %v5261 = vld [vmem:[%s6 + $0xc] sm:$0xf]
        %v5262 = vld [vmem:[%s6 + $0x10] sm:$0xf]
        %v5263 = vld [vmem:[%s6 + $0x14] sm:$0xf]
        %v5264 = vld [vmem:[%s6 + $0x18] sm:$0xf]
        %v5265 = vld [vmem:[%s6 + $0x1c] sm:$0xf]
        %v5266 = vld [vmem:[%s7] sm:$0xff]
        %v5267 = vld [vmem:[%s7 + $0x8] sm:$0xff]
        %v5268 = vld [vmem:[%s7 + $0x10] sm:$0xff]
        %v5269 = vld [vmem:[%s7 + $0x18] sm:$0xff]
        %v5270 = vld [vmem:[%s7 + $0x20] sm:$0xff]
        %v5271 = vld [vmem:[%s7 + $0x28] sm:$0xff]
        %v5272 = vld [vmem:[%s7 + $0x30] sm:$0xff]
        %v5273 = vld [vmem:[%s7 + $0x38] sm:$0xff]
        %5275 = vset.pattern.permute.xlu0 0
        %5276 = vperm.xlu0 %5275, %v5266
        %v5277 = vpop.permute.xlu0 %5276
        %5280 = vset.pattern.permute.xlu0 0
        %5281 = vperm.xlu0 %5280, %v5267
        %v5282 = vpop.permute.xlu0 %5281
        %5285 = vset.pattern.permute.xlu0 0
        %5286 = vperm.xlu0 %5285, %v5268
        %v5287 = vpop.permute.xlu0 %5286
        %5290 = vset.pattern.permute.xlu0 0
        %5291 = vperm.xlu0 %5290, %v5269
        %v5292 = vpop.permute.xlu0 %5291
        %5295 = vset.pattern.permute.xlu0 0
        %5296 = vperm.xlu0 %5295, %v5270
        %v5297 = vpop.permute.xlu0 %5296
        %5300 = vset.pattern.permute.xlu0 0
        %5301 = vperm.xlu0 %5300, %v5271
        %v5302 = vpop.permute.xlu0 %5301
        %5305 = vset.pattern.permute.xlu0 0
        %5306 = vperm.xlu0 %5305, %v5272
        %v5307 = vpop.permute.xlu0 %5306
        %5310 = vset.pattern.permute.xlu0 0
        %5311 = vperm.xlu0 %5310, %v5273
        %v5312 = vpop.permute.xlu0 %5311
        %v5322 = vunpack.c.l.b16 %v5258
        %v5323 = vunpack.c.l.b16 %v5259
        %v5324 = vunpack.c.l.b16 %v5260
        %v5325 = vunpack.c.l.b16 %v5261
        %v5326 = vunpack.c.l.b16 %v5262
        %v5327 = vunpack.c.l.b16 %v5263
        %v5328 = vunpack.c.l.b16 %v5264
        %v5329 = vunpack.c.l.b16 %v5265
        %v5330 = vpack.c.b16 %v5323, %v5322
        %v5331 = vpack.c.b16 %v5325, %v5324
        %v5332 = vpack.c.b16 %v5327, %v5326
        %v5333 = vpack.c.b16 %v5329, %v5328
        %v5335 = vsel %vm3913, %v5330, 0
        %v5338 = vsel %vm3913, %v5331, 0
        %v5341 = vsel %vm3913, %v5332, 0
        %v5344 = vsel %vm3913, %v5333, 0
        %5346 = vmatprep.subr.bf16.mxu0 %v5243
        %5347 = vmatpush1.bf16.msra.mxu0 %v5242
        %5348 = vmatprep.subr.bf16.mxu0 %v5247
        %5349 = vmatpush1.bf16.msra.mxu0 %v5246
        %5350 = vmatprep.subr.bf16.mxu0 %v5251
        %5351 = vmatpush1.bf16.msra.mxu0 %v5250
        %5352 = vmatprep.subr.bf16.mxu0 %v5255
        %5353 = vmatpush1.bf16.msra.mxu0 %v5254
        %5354 = vmatprep.subr.bf16.mxu0 0
        %5355 = vmatpush1.bf16.msra.mxu0 0
        %5356 = vmatprep.subr.bf16.mxu0 0
        %5357 = vmatpush1.bf16.msra.mxu0 0
        %5358 = vmatprep.subr.bf16.mxu0 0
        %5359 = vmatpush1.bf16.msra.mxu0 0
        %5360 = vmatprep.subr.bf16.mxu0 0
        %5361 = vmatpush1.bf16.msra.mxu0 0
        %5362 = vmatprep.subr.bf16.mxu0 0
        %5363 = vmatpush1.bf16.msra.mxu0 0
        %5364 = vmatprep.subr.bf16.mxu0 0
        %5365 = vmatpush1.bf16.msra.mxu0 0
        %5366 = vmatprep.subr.bf16.mxu0 0
        %5367 = vmatpush1.bf16.msra.mxu0 0
        %5368 = vmatprep.subr.bf16.mxu0 0
        %5369 = vmatpush1.bf16.msra.mxu0 0
        %5370 = vmatprep.subr.bf16.mxu0 0
        %5371 = vmatpush1.bf16.msra.mxu0 0
        %5372 = vmatprep.subr.bf16.mxu0 0
        %5373 = vmatpush1.bf16.msra.mxu0 0
        %5374 = vmatprep.subr.bf16.mxu0 0
        %5375 = vmatpush1.bf16.msra.mxu0 0
        %5376 = vmatprep.subr.bf16.mxu0 0
        %5377 = vmatpush1.bf16.msra.mxu0 0
        %5378 = vmatprep.mubr.bf16.mxu0 0
        %5379 = vmatmul.mubr.bf16.gmra.mrb[0].mxu0 %v5335
        %v5380 = vpop.f32.mrb[0].mxu0
        %v5381 = vadd.f32 %v5277, %v5380
        %v5382 = vpop.f32.mrb[0].mxu0
        %v5383 = vadd.f32 %v5277, %v5382
        %v5384 = vpop.f32.mrb[0].mxu0
        %v5385 = vadd.f32 %v5282, %v5384
        %v5386 = vpop.f32.mrb[0].mxu0
        %v5387 = vadd.f32 %v5282, %v5386
        %5388 = vmatprep.mubr.bf16.mxu0 0
        %5389 = vmatmul.mubr.bf16.gmra.mrb[0].mxu0 %v5338
        %v5390 = vpop.f32.mrb[0].mxu0
        %v5391 = vadd.f32 %v5287, %v5390
        %v5392 = vpop.f32.mrb[0].mxu0
        %v5393 = vadd.f32 %v5287, %v5392
        %v5394 = vpop.f32.mrb[0].mxu0
        %v5395 = vadd.f32 %v5292, %v5394
        %v5396 = vpop.f32.mrb[0].mxu0
        %v5397 = vadd.f32 %v5292, %v5396
        %5398 = vmatprep.mubr.bf16.mxu0 0
        %5399 = vmatmul.mubr.bf16.gmra.mrb[0].mxu0 %v5341
        %v5400 = vpop.f32.mrb[0].mxu0
        %v5401 = vadd.f32 %v5297, %v5400
        %v5402 = vpop.f32.mrb[0].mxu0
        %v5403 = vadd.f32 %v5297, %v5402
        %v5404 = vpop.f32.mrb[0].mxu0
        %v5405 = vadd.f32 %v5302, %v5404
        %v5406 = vpop.f32.mrb[0].mxu0
        %v5407 = vadd.f32 %v5302, %v5406
        %5408 = vmatprep.mubr.bf16.mxu0 0
        %5409 = vmatmul.mubr.bf16.gmra.mrb[0].mxu0 %v5344
        %v5410 = vpop.f32.mrb[0].mxu0
        %v5411 = vadd.f32 %v5307, %v5410
        %v5412 = vpop.f32.mrb[0].mxu0
        %v5413 = vadd.f32 %v5307, %v5412
        %v5414 = vpop.f32.mrb[0].mxu0
        %v5415 = vadd.f32 %v5312, %v5414
        %v5416 = vpop.f32.mrb[0].mxu0
        %v5417 = vadd.f32 %v5312, %v5416
        %5418 = vdwg.mxu0
        %5419 = vmatprep.subr.bf16.mxu0 %v5245
        %5420 = vmatpush1.bf16.msra.mxu0 %v5244
        %5421 = vmatprep.subr.bf16.mxu0 %v5249
        %5422 = vmatpush1.bf16.msra.mxu0 %v5248
        %5423 = vmatprep.subr.bf16.mxu0 %v5253
        %5424 = vmatpush1.bf16.msra.mxu0 %v5252
        %5425 = vmatprep.subr.bf16.mxu0 %v5257
        %5426 = vmatpush1.bf16.msra.mxu0 %v5256
        %5427 = vmatprep.subr.bf16.mxu0 0
        %5428 = vmatpush1.bf16.msra.mxu0 0
        %5429 = vmatprep.subr.bf16.mxu0 0
        %5430 = vmatpush1.bf16.msra.mxu0 0
        %5431 = vmatprep.subr.bf16.mxu0 0
        %5432 = vmatpush1.bf16.msra.mxu0 0
        %5433 = vmatprep.subr.bf16.mxu0 0
        %5434 = vmatpush1.bf16.msra.mxu0 0
        %5435 = vmatprep.subr.bf16.mxu0 0
        %5436 = vmatpush1.bf16.msra.mxu0 0
        %5437 = vmatprep.subr.bf16.mxu0 0
        %5438 = vmatpush1.bf16.msra.mxu0 0
        %5439 = vmatprep.subr.bf16.mxu0 0
        %5440 = vmatpush1.bf16.msra.mxu0 0
        %5441 = vmatprep.subr.bf16.mxu0 0
        %5442 = vmatpush1.bf16.msra.mxu0 0
        %5443 = vmatprep.subr.bf16.mxu0 0
        %5444 = vmatpush1.bf16.msra.mxu0 0
        %5445 = vmatprep.subr.bf16.mxu0 0
        %5446 = vmatpush1.bf16.msra.mxu0 0
        %5447 = vmatprep.subr.bf16.mxu0 0
        %5448 = vmatpush1.bf16.msra.mxu0 0
        %5449 = vmatprep.subr.bf16.mxu0 0
        %5450 = vmatpush1.bf16.msra.mxu0 0
        %5451 = vmatprep.mubr.bf16.mxu0 0
        %5452 = vmatmul.mubr.bf16.gmra.mrb[0].mxu0 %v5335
        %v5453 = vpop.f32.mrb[0].mxu0
        %v5454 = vadd.f32 %v5277, %v5453
        %v5455 = vpop.f32.mrb[0].mxu0
        %v5456 = vadd.f32 %v5277, %v5455
        %v5457 = vpop.f32.mrb[0].mxu0
        %v5458 = vadd.f32 %v5282, %v5457
        %v5459 = vpop.f32.mrb[0].mxu0
        %v5460 = vadd.f32 %v5282, %v5459
        %5461 = vmatprep.mubr.bf16.mxu0 0
        %5462 = vmatmul.mubr.bf16.gmra.mrb[0].mxu0 %v5338
        %v5463 = vpop.f32.mrb[0].mxu0
        %v5464 = vadd.f32 %v5287, %v5463
        %v5465 = vpop.f32.mrb[0].mxu0
        %v5466 = vadd.f32 %v5287, %v5465
        %v5467 = vpop.f32.mrb[0].mxu0
        %v5468 = vadd.f32 %v5292, %v5467
        %v5469 = vpop.f32.mrb[0].mxu0
        %v5470 = vadd.f32 %v5292, %v5469
        %5471 = vmatprep.mubr.bf16.mxu0 0
        %5472 = vmatmul.mubr.bf16.gmra.mrb[0].mxu0 %v5341
        %v5473 = vpop.f32.mrb[0].mxu0
        %v5474 = vadd.f32 %v5297, %v5473
        %v5475 = vpop.f32.mrb[0].mxu0
        %v5476 = vadd.f32 %v5297, %v5475
        %v5477 = vpop.f32.mrb[0].mxu0
        %v5478 = vadd.f32 %v5302, %v5477
        %v5479 = vpop.f32.mrb[0].mxu0
        %v5480 = vadd.f32 %v5302, %v5479
        %5481 = vmatprep.mubr.bf16.mxu0 0
        %5482 = vmatmul.mubr.bf16.gmra.mrb[0].mxu0 %v5344
        %v5483 = vpop.f32.mrb[0].mxu0
        %v5484 = vadd.f32 %v5307, %v5483
        %v5485 = vpop.f32.mrb[0].mxu0
        %v5486 = vadd.f32 %v5307, %v5485
        %v5487 = vpop.f32.mrb[0].mxu0
        %v5488 = vadd.f32 %v5312, %v5487
        %v5489 = vpop.f32.mrb[0].mxu0
        %v5490 = vadd.f32 %v5312, %v5489
        %5491 = vdwg.mxu0
        %5492 = vst [vmem:[%s298] sm:$0xff] %v5381
        %5493 = vst [vmem:[%s298 + $0x8] sm:$0xff] %v5383
        %5494 = vst [vmem:[%s298 + $0x10] sm:$0xff] %v5454
        %5495 = vst [vmem:[%s298 + $0x18] sm:$0xff] %v5456
        %5496 = vst [vmem:[%s298 + $0x20] sm:$0xff] %v5385
        %5497 = vst [vmem:[%s298 + $0x28] sm:$0xff] %v5387
        %5498 = vst [vmem:[%s298 + $0x30] sm:$0xff] %v5458
        %5499 = vst [vmem:[%s298 + $0x38] sm:$0xff] %v5460
        %5500 = vst [vmem:[%s298 + $0x40] sm:$0xff] %v5391
        %5501 = vst [vmem:[%s298 + $0x48] sm:$0xff] %v5393
        %5502 = vst [vmem:[%s298 + $0x50] sm:$0xff] %v5464
        %5503 = vst [vmem:[%s298 + $0x58] sm:$0xff] %v5466
        %5504 = vst [vmem:[%s298 + $0x60] sm:$0xff] %v5395
        %5505 = vst [vmem:[%s298 + $0x68] sm:$0xff] %v5397
        %5506 = vst [vmem:[%s298 + $0x70] sm:$0xff] %v5468
        %5507 = vst [vmem:[%s298 + $0x78] sm:$0xff] %v5470
        %5508 = vst [vmem:[%s298 + $0x80] sm:$0xff] %v5401
        %5509 = vst [vmem:[%s298 + $0x88] sm:$0xff] %v5403
        %5510 = vst [vmem:[%s298 + $0x90] sm:$0xff] %v5474
        %5511 = vst [vmem:[%s298 + $0x98] sm:$0xff] %v5476
        %5512 = vst [vmem:[%s298 + $0xa0] sm:$0xff] %v5405
        %5513 = vst [vmem:[%s298 + $0xa8] sm:$0xff] %v5407
        %5514 = vst [vmem:[%s298 + $0xb0] sm:$0xff] %v5478
        %5515 = vst [vmem:[%s298 + $0xb8] sm:$0xff] %v5480
        %5516 = vst [vmem:[%s298 + $0xc0] sm:$0xff] %v5411
        %5517 = vst [vmem:[%s298 + $0xc8] sm:$0xff] %v5413
        %5518 = vst [vmem:[%s298 + $0xd0] sm:$0xff] %v5484
        %5519 = vst [vmem:[%s298 + $0xd8] sm:$0xff] %v5486
        %5520 = vst [vmem:[%s298 + $0xe0] sm:$0xff] %v5415
        %5521 = vst [vmem:[%s298 + $0xe8] sm:$0xff] %v5417
        %5522 = vst [vmem:[%s298 + $0xf0] sm:$0xff] %v5488
        %5523 = vst [vmem:[%s298 + $0xf8] sm:$0xff] %v5490
        %s5524 = sand.u32 %s203, 1
        %s5525 = scalar_lea.sflag [#allocation3], %s5524
        %s5526 = sand.u32 %s203, 1
        %s5527 = smul.addr %s5526, 256
        %s5528 = scalar_lea.vmem [#allocation2], %s5527
        // Predicated region
        $region53: #{metamixer_pallas.1} parent=51 // pred_check
          %p5529 = pneg %p213
        $region54: #{metamixer_pallas.1} parent=51 // pred_check_branch
          %5531 = sbr.rel (%p5529) target = $region56
        $region55: #{metamixer_pallas.1} parent=51 // pred_region
          %s5533 = ssub.s32 4096, 4096
          %5534 = vsyncadd %s5525, %s5533
          %s5535 = smul.addr %s22, 32
          %s5536 = smul.addr %s5535, 128
          %s5537 = scalar_lea.hbm %s8, %s5536
          %s5538 = sshll.u32 %s5528, 4
          %s5539 = int_to_ptr.vmem [resolvable:$true] %s5538
          %5544 = dma.vmem_to_hbm [thread:$0]  %s5539, 4096, %s5537, %s5525, 512, 512, 32
        $region56: #{metamixer_pallas.1} parent=51 // pred_fallthru
          _
      $region52: #{metamixer_pallas.1} parent=5 // pred_fallthru
        _
      %p5545 = scmp.le.s32.totalorder 2, %s17
      // Predicated region
      $region57: #{metamixer_pallas.1} parent=5 // pred_check
        %p5546 = pneg %p5545
      $region58: #{metamixer_pallas.1} parent=5 // pred_check_branch
        %5548 = sbr.rel (%p5546) target = $region60
      $region59: #{metamixer_pallas.1} parent=5 // pred_region
        %s5549 = ssub.s32 %s17, 2
        // Predicated region
        $region61: #{metamixer_pallas.1} parent=59 // pred_check
          %p5550 = pneg %p219
        $region62: #{metamixer_pallas.1} parent=59 // pred_check_branch
          %5552 = sbr.rel (%p5550) target = $region64
        $region63: #{metamixer_pallas.1} parent=59 // pred_region
          %s5553 = sand.u32 %s204, 1
          %s5554 = scalar_lea.sflag [#allocation3], %s5553
          %s5555 = sand.u32 %s204, 1
          %s5556 = smul.addr %s5555, 256
          %s5557 = scalar_lea.vmem [#allocation2], %s5556
          %5558 = dma.done %s5554, 4096
        $region64: #{metamixer_pallas.1} parent=59 // pred_fallthru
          _
      $region60: #{metamixer_pallas.1} parent=5 // pred_fallthru
        _
    $region6: #{metamixer_pallas.1} parent=1 // loop_footer
      %s21 = sadd.s32 1, %s17
    $region7: #{metamixer_pallas.1} parent=1 // loop_footer_branch
      %16 = sbr.rel target = $region3
    $region8: #{metamixer_pallas.1} parent=1 // loop_exit
      _
    %5559 = vsyncpa [#allocation3], 1
    %s5560 = scalar_lea.sflag [#allocation3], 1
    %5561 = vsyncpa %s5560, 1

</llo_original>
